<compile_context>
chip_gen: v7x
topology: tpu7x:2x2x1
jax: 0.10.0
libtpu: 0.0.40
codegen_flags: <defaults>
</compile_context>

<pallas_src>
import functools
import math

import jax
import jax.numpy as jnp
from jax.experimental import pallas as pl
from jax.experimental.pallas import tpu as pltpu

LN_EPS = 1e-6


# ---------------------------------------------------------------------------
# helpers
# ---------------------------------------------------------------------------
def _row_tile(m, target=128):
    """Row tile: multiple of 8 (f32 sublane), divides m, prefer >= 2 tiles."""
    tm = min(target, m)
    if m % tm != 0:
        return m                                   # single full block fallback
    if m // tm == 1 and m >= 16 and m % 2 == 0 and (m // 2) % 8 == 0:
        return m // 2                              # give both TensorCores work
    return tm


def _ln(x, g, b):
    """Torch-style LayerNorm: unbiased std, eps added to std."""
    d = x.shape[-1]
    mean = jnp.mean(x, axis=-1, keepdims=True)
    diff = x - mean
    var = jnp.sum(diff * diff, axis=-1, keepdims=True) * (1.0 / (d - 1))
    std = jnp.sqrt(var)
    return g * diff / (std + LN_EPS) + b


# ---------------------------------------------------------------------------
# kernel bodies
# ---------------------------------------------------------------------------
def _ln_qkv_kernel(x_ref, g_ref, b_ref, wq_ref, bq_ref, wkv_ref, bkv_ref,
                   q_ref, kv_ref):
    """Fused LayerNorm + Q projection + (K|V) projection (self-attention)."""
    nx = _ln(x_ref[...], g_ref[...], b_ref[...])
    q = jnp.dot(nx, wq_ref[...], preferred_element_type=jnp.float32) + bq_ref[...]
    kv = jnp.dot(nx, wkv_ref[...], preferred_element_type=jnp.float32) + bkv_ref[...]
    q_ref[...] = q.astype(q_ref.dtype)
    kv_ref[...] = kv.astype(kv_ref.dtype)


def _ln_proj_kernel(x_ref, g_ref, b_ref, w_ref, bias_ref, o_ref):
    """Fused LayerNorm + Linear (src-attention query projection)."""
    nx = _ln(x_ref[...], g_ref[...], b_ref[...])
    y = jnp.dot(nx, w_ref[...], preferred_element_type=jnp.float32) + bias_ref[...]
    o_ref[...] = y.astype(o_ref.dtype)


def _proj_kernel(x_ref, w_ref, bias_ref, o_ref):
    """Plain Linear (encoder-memory K|V projection, no LayerNorm)."""
    y = jnp.dot(x_ref[...], w_ref[...], preferred_element_type=jnp.float32) + bias_ref[...]
    o_ref[...] = y.astype(o_ref.dtype)


def _out_res_kernel(ctx_ref, res_ref, w_ref, bias_ref, o_ref):
    """Fused attention output projection + residual add."""
    y = jnp.dot(ctx_ref[...], w_ref[...], preferred_element_type=jnp.float32) + bias_ref[...]
    o_ref[...] = (res_ref[...] + y).astype(o_ref.dtype)


def _ffn_kernel(x_ref, g_ref, b_ref, w1_ref, b1_ref, w2_ref, b2_ref, o_ref):
    """Fused LayerNorm + W1 + ReLU + W2 + residual add (whole FFN sublayer)."""
    x = x_ref[...]
    nx = _ln(x, g_ref[...], b_ref[...])
    h = jnp.dot(nx, w1_ref[...], preferred_element_type=jnp.float32) + b1_ref[...]
    h = jnp.maximum(h, 0.0)
    y = jnp.dot(h, w2_ref[...], preferred_element_type=jnp.float32) + b2_ref[...]
    o_ref[...] = (x + y).astype(o_ref.dtype)


def _layernorm_kernel(x_ref, g_ref, b_ref, o_ref):
    o_ref[...] = _ln(x_ref[...], g_ref[...], b_ref[...]).astype(o_ref.dtype)


def _attention_kernel(q_ref, kv_ref, m_ref, o_ref, *, num_heads, scale):
    """Scaled-dot-product attention, all heads of one batch element per step."""
    q = q_ref[0]        # [Tq, D]
    kv = kv_ref[0]      # [Tk, 2D]  (K | V concatenated along features)
    mask = m_ref[0]     # [Tq, Tk] or [1, Tk] -- broadcast in-kernel
    d = q.shape[-1]
    dk = d // num_heads

    ctx_heads = []
    for h in range(num_heads):          # static unroll over heads
        qh = q[:, h * dk:(h + 1) * dk]
        kh = kv[:, h * dk:(h + 1) * dk]
        vh = kv[:, d + h * dk: d + (h + 1) * dk]
        s = jax.lax.dot_general(qh, kh, (((1,), (1,)), ((), ())),
                                preferred_element_type=jnp.float32) * scale
        s = jnp.where(mask == 0, -1e9, s)                 # masked_fill(mask==0, -1e9)
        s = s - jnp.max(s, axis=-1, keepdims=True)
        p = jnp.exp(s)
        p = p / jnp.sum(p, axis=-1, keepdims=True)        # softmax over keys
        ctx_heads.append(jnp.dot(p, vh, preferred_element_type=jnp.float32))
    # single lane-dense [Tq, D] store (concat of all heads)
    o_ref[0] = jnp.concatenate(ctx_heads, axis=-1).astype(o_ref.dtype)


# ---------------------------------------------------------------------------
# pallas_call wrappers
# ---------------------------------------------------------------------------
_PAR1 = pltpu.CompilerParams(dimension_semantics=("parallel",))


def ln_qkv(x2d, g, b, wq, bq, wkv, bkv):
    m, d = x2d.shape
    d2 = wkv.shape[1]
    tm = _row_tile(m)
    return pl.pallas_call(
        _ln_qkv_kernel,
        out_shape=(jax.ShapeDtypeStruct((m, d), x2d.dtype),
                   jax.ShapeDtypeStruct((m, d2), x2d.dtype)),
        grid=(m // tm,),
        in_specs=[
            pl.BlockSpec((tm, d), lambda i: (i, 0)),
            pl.BlockSpec((1, d), lambda i: (0, 0)),
            pl.BlockSpec((1, d), lambda i: (0, 0)),
            pl.BlockSpec((d, d), lambda i: (0, 0)),
            pl.BlockSpec((1, d), lambda i: (0, 0)),
            pl.BlockSpec((d, d2), lambda i: (0, 0)),
            pl.BlockSpec((1, d2), lambda i: (0, 0)),
        ],
        out_specs=(pl.BlockSpec((tm, d), lambda i: (i, 0)),
                   pl.BlockSpec((tm, d2), lambda i: (i, 0))),
        compiler_params=_PAR1,
    )(x2d, g, b, wq, bq, wkv, bkv)


def ln_proj(x2d, g, b, w, bias):
    m, din = x2d.shape
    dout = w.shape[1]
    tm = _row_tile(m)
    return pl.pallas_call(
        _ln_proj_kernel,
        out_shape=jax.ShapeDtypeStruct((m, dout), x2d.dtype),
        grid=(m // tm,),
        in_specs=[
            pl.BlockSpec((tm, din), lambda i: (i, 0)),
            pl.BlockSpec((1, din), lambda i: (0, 0)),
            pl.BlockSpec((1, din), lambda i: (0, 0)),
            pl.BlockSpec((din, dout), lambda i: (0, 0)),
            pl.BlockSpec((1, dout), lambda i: (0, 0)),
        ],
        out_specs=pl.BlockSpec((tm, dout), lambda i: (i, 0)),
        compiler_params=_PAR1,
    )(x2d, g, b, w, bias)


def proj(x2d, w, bias):
    m, din = x2d.shape
    dout = w.shape[1]
    tm = _row_tile(m)
    return pl.pallas_call(
        _proj_kernel,
        out_shape=jax.ShapeDtypeStruct((m, dout), x2d.dtype),
        grid=(m // tm,),
        in_specs=[
            pl.BlockSpec((tm, din), lambda i: (i, 0)),
            pl.BlockSpec((din, dout), lambda i: (0, 0)),
            pl.BlockSpec((1, dout), lambda i: (0, 0)),
        ],
        out_specs=pl.BlockSpec((tm, dout), lambda i: (i, 0)),
        compiler_params=_PAR1,
    )(x2d, w, bias)


def out_proj_residual(ctx2d, res2d, w, bias):
    m, d = ctx2d.shape
    tm = _row_tile(m)
    return pl.pallas_call(
        _out_res_kernel,
        out_shape=jax.ShapeDtypeStruct((m, d), ctx2d.dtype),
        grid=(m // tm,),
        in_specs=[
            pl.BlockSpec((tm, d), lambda i: (i, 0)),
            pl.BlockSpec((tm, d), lambda i: (i, 0)),
            pl.BlockSpec((d, d), lambda i: (0, 0)),
            pl.BlockSpec((1, d), lambda i: (0, 0)),
        ],
        out_specs=pl.BlockSpec((tm, d), lambda i: (i, 0)),
        compiler_params=_PAR1,
    )(ctx2d, res2d, w, bias)


def ffn(x2d, g, b, w1, b1, w2, b2):
    m, d = x2d.shape
    dff = w1.shape[1]
    tm = _row_tile(m)
    return pl.pallas_call(
        _ffn_kernel,
        out_shape=jax.ShapeDtypeStruct((m, d), x2d.dtype),
        grid=(m // tm,),
        in_specs=[
            pl.BlockSpec((tm, d), lambda i: (i, 0)),
            pl.BlockSpec((1, d), lambda i: (0, 0)),
            pl.BlockSpec((1, d), lambda i: (0, 0)),
            pl.BlockSpec((d, dff), lambda i: (0, 0)),
            pl.BlockSpec((1, dff), lambda i: (0, 0)),
            pl.BlockSpec((dff, d), lambda i: (0, 0)),
            pl.BlockSpec((1, d), lambda i: (0, 0)),
        ],
        out_specs=pl.BlockSpec((tm, d), lambda i: (i, 0)),
        compiler_params=_PAR1,
    )(x2d, g, b, w1, b1, w2, b2)


def layernorm(x2d, g, b):
    m, d = x2d.shape
    tm = _row_tile(m)
    return pl.pallas_call(
        _layernorm_kernel,
        out_shape=jax.ShapeDtypeStruct((m, d), x2d.dtype),
        grid=(m // tm,),
        in_specs=[
            pl.BlockSpec((tm, d), lambda i: (i, 0)),
            pl.BlockSpec((1, d), lambda i: (0, 0)),
            pl.BlockSpec((1, d), lambda i: (0, 0)),
        ],
        out_specs=pl.BlockSpec((tm, d), lambda i: (i, 0)),
        compiler_params=_PAR1,
    )(x2d, g, b)


def attention(q, kv, mask, num_heads):
    """q: [B,Tq,D], kv: [B,Tk,2D], mask: [B|1, Tq|1, Tk] -> ctx [B,Tq,D]."""
    b, tq, d = q.shape
    tk = kv.shape[1]
    mq = mask.shape[1]
    scale = 1.0 / math.sqrt(d // num_heads)
    if mask.shape[0] == b:
        mask_idx = lambda bi: (bi, 0, 0)
    else:
        mask_idx = lambda bi: (0, 0, 0)
    return pl.pallas_call(
        functools.partial(_attention_kernel, num_heads=num_heads, scale=scale),
        out_shape=jax.ShapeDtypeStruct((b, tq, d), q.dtype),
        grid=(b,),
        in_specs=[
            pl.BlockSpec((1, tq, d), lambda bi: (bi, 0, 0)),
            pl.BlockSpec((1, tk, 2 * d), lambda bi: (bi, 0, 0)),
            pl.BlockSpec((1, mq, tk), mask_idx),
        ],
        out_specs=pl.BlockSpec((1, tq, d), lambda bi: (bi, 0, 0)),
        compiler_params=_PAR1,
    )(q, kv, mask)


# ---------------------------------------------------------------------------
# decoder layer / decoder stack
# ---------------------------------------------------------------------------
def decoder_layer(x, kv_mem, src_mask, tgt_mask, p, num_heads):
    b, t, d = x.shape
    x2 = x.reshape(-1, d)

    # sublayer 0: x + self_attn(LN(x), LN(x), LN(x), tgt_mask)
    q, kv = ln_qkv(x2, p["ln0_g"], p["ln0_b"],
                   p["self_attn"]["wq"], p["self_attn"]["bq"],
                   p["self_attn"]["wkv"], p["self_attn"]["bkv"])
    ctx = attention(q.reshape(b, t, d), kv.reshape(b, t, 2 * d), tgt_mask, num_heads)
    x2 = out_proj_residual(ctx.reshape(-1, d), x2,
                           p["self_attn"]["wo"], p["self_attn"]["bo"])

    # sublayer 1: x + src_attn(LN(x), memory, memory, src_mask)
    q = ln_proj(x2, p["ln1_g"], p["ln1_b"],
                p["src_attn"]["wq"], p["src_attn"]["bq"])
    ctx = attention(q.reshape(b, t, d), kv_mem, src_mask, num_heads)
    x2 = out_proj_residual(ctx.reshape(-1, d), x2,
                           p["src_attn"]["wo"], p["src_attn"]["bo"])

    # sublayer 2: x + FFN(LN(x))   (one fused kernel)
    x2 = ffn(x2, p["ln2_g"], p["ln2_b"],
             p["ff"]["w1"], p["ff"]["b1"], p["ff"]["w2"], p["ff"]["b2"])
    return x2.reshape(b, t, d)


@functools.partial(jax.jit, static_argnames=("num_heads", "n_layers"))
def decoder_forward(x, memory, src_mask, tgt_mask, params, *, num_heads, n_layers):
    lp = params["layer"]
    bm, s, d = memory.shape
    # Encoder-memory K/V projections hoisted out of the layer loop: the Decoder
    # shares one layer object across all N layers, so Wk/Wv are identical.
    kv_mem = proj(memory.reshape(-1, d),
                  lp["src_attn"]["wkv"], lp["src_attn"]["bkv"]).reshape(bm, s, 2 * d)
    for _ in range(n_layers):
        x = decoder_layer(x, kv_mem, src_mask, tgt_mask, lp, num_heads)
    b, t, _ = x.shape
    out = layernorm(x.reshape(-1, d), params["ln_g"], params["ln_b"])
    return out.reshape(b, t, d)


# ---------------------------------------------------------------------------
# deterministic parameters
# ---------------------------------------------------------------------------
def init_params(key, d_model, d_ff):
    def dense(k, din, dout):
        return 0.02 * jax.random.normal(k, (din, dout), jnp.float32)

    keys = jax.random.split(key, 10)

    def attn_params(ks):
        return {
            "wq": dense(ks[0], d_model, d_model),
            "bq": jnp.zeros((1, d_model), jnp.float32),
            "wkv": jnp.concatenate([dense(ks[1], d_model, d_model),
                                    dense(ks[2], d_model, d_model)], axis=1),
            "bkv": jnp.zeros((1, 2 * d_model), jnp.float32),
            "wo": dense(ks[3], d_model, d_model),
            "bo": jnp.zeros((1, d_model), jnp.float32),
        }

    layer = {
        "self_attn": attn_params(keys[0:4]),
        "src_attn": attn_params(keys[4:8]),
        "ff": {
            "w1": dense(keys[8], d_model, d_ff), "b1": jnp.zeros((1, d_ff), jnp.float32),
            "w2": dense(keys[9], d_ff, d_model), "b2": jnp.zeros((1, d_model), jnp.float32),
        },
        "ln0_g": jnp.ones((1, d_model), jnp.float32), "ln0_b": jnp.zeros((1, d_model), jnp.float32),
        "ln1_g": jnp.ones((1, d_model), jnp.float32), "ln1_b": jnp.zeros((1, d_model), jnp.float32),
        "ln2_g": jnp.ones((1, d_model), jnp.float32), "ln2_b": jnp.zeros((1, d_model), jnp.float32),
    }
    return {"layer": layer,
            "ln_g": jnp.ones((1, d_model), jnp.float32),
            "ln_b": jnp.zeros((1, d_model), jnp.float32)}


# ---------------------------------------------------------------------------
# plain-JAX reference (for a sanity check in __main__)
# ---------------------------------------------------------------------------
def _reference_decoder(x, memory, src_mask, tgt_mask, params, num_heads, n_layers):
    hp = jax.lax.Precision.HIGHEST

    def ln(v, g, b):
        mean = v.mean(-1, keepdims=True)
        std = jnp.sqrt(((v - mean) ** 2).sum(-1, keepdims=True) / (v.shape[-1] - 1))
        return g.reshape(-1) * (v - mean) / (std + LN_EPS) + b.reshape(-1)

    def mha(q_in, k_in, v_in, mask, p):
        b, tq, d = q_in.shape
        tk = k_in.shape[1]
        dk = d // num_heads
        wk, wv = p["wkv"][:, :d], p["wkv"][:, d:]
        bk, bv = p["bkv"][0, :d], p["bkv"][0, d:]
        q = (q_in @ p["wq"] + p["bq"][0]).reshape(b, tq, num_heads, dk).transpose(0, 2, 1, 3)
        k = (k_in @ wk + bk).reshape(b, tk, num_heads, dk).transpose(0, 2, 1, 3)
        v = (v_in @ wv + bv).reshape(b, tk, num_heads, dk).transpose(0, 2, 1, 3)
        s = jnp.einsum("bhqd,bhkd->bhqk", q, k, precision=hp) / math.sqrt(dk)
        s = jnp.where(mask[:, None, :, :] == 0, -1e9, s)
        p_att = jax.nn.softmax(s, axis=-1)
        ctx = jnp.einsum("bhqk,bhkd->bhqd", p_att, v, precision=hp)
        ctx = ctx.transpose(0, 2, 1, 3).reshape(b, tq, d)
        return ctx @ p["wo"] + p["bo"][0]

    lp = params["layer"]
    for _ in range(n_layers):
        nx = ln(x, lp["ln0_g"], lp["ln0_b"])
        x = x + mha(nx, nx, nx, tgt_mask, lp["self_attn"])
        nx = ln(x, lp["ln1_g"], lp["ln1_b"])
        x = x + mha(nx, memory, memory, src_mask, lp["src_attn"])
        nx = ln(x, lp["ln2_g"], lp["ln2_b"])
        h1 = jnp.maximum(nx @ lp["ff"]["w1"] + lp["ff"]["b1"][0], 0.0)
        x = x + h1 @ lp["ff"]["w2"] + lp["ff"]["b2"][0]
    return ln(x, params["ln_g"], params["ln_b"])


if __name__ == "__main__":
    B, T, S, D, H, D_FF, N_LAYERS = 2, 8, 8, 32, 4, 64, 2

    key = jax.random.PRNGKey(0)
    kx, km, kp = jax.random.split(key, 3)

    x = jax.random.normal(kx, (B, T, D), jnp.float32)
    memory = jax.random.normal(km, (B, S, D), jnp.float32)

    # causal mask for self-attention, padding-style mask for src-attention
    tgt_mask = jnp.broadcast_to(jnp.tril(jnp.ones((T, T), jnp.float32))[None], (B, T, T))
    src_mask = jnp.ones((B, 1, S), jnp.float32).at[1, 0, S - 2:].set(0.0)

    params = init_params(kp, D, D_FF)

    out = decoder_forward(x, memory, src_mask, tgt_mask, params,
                          num_heads=H, n_layers=N_LAYERS)
    jax.block_until_ready(out)

    ref = _reference_decoder(x, memory, src_mask, tgt_mask, params, H, N_LAYERS)
    assert out.shape == (B, T, D) and out.dtype == jnp.float32
    assert bool(jnp.isfinite(out).all())
    assert bool(jnp.allclose(out, ref, atol=1e-2, rtol=1e-2)), \
        f"max abs err {float(jnp.max(jnp.abs(out - ref)))}"
    print("KERNEL_OK")
</pallas_src>

<mosaic_0001>
module attributes {stable_mosaic.version = 11 : i64} {
  func.func @_proj_kernel(%arg0: i32, %arg1: memref<8x32xf32, #tpu.memory_space<vmem>>, %arg2: memref<32x64xf32, #tpu.memory_space<vmem>>, %arg3: memref<1x64xf32, #tpu.memory_space<vmem>>, %arg4: memref<8x64xf32, #tpu.memory_space<vmem>>) attributes {dimension_semantics = [#tpu.dimension_semantics<parallel>], iteration_bounds = array<i64: 2>, scalar_prefetch = 0 : i64, scratch_operands = 0 : i64, tpu.core_type = #tpu.core_type<tc>, window_params = [{transform_indices = @transform_0, window_bounds = array<i64: 8, 32>}, {pipeline_mode = #tpu.pipeline_mode<synchronous>, transform_indices = @transform_1, window_bounds = array<i64: 32, 64>}, {pipeline_mode = #tpu.pipeline_mode<synchronous>, transform_indices = @transform_2, window_bounds = array<i64: 1, 64>}, {transform_indices = @transform_3, window_bounds = array<i64: 8, 64>}]} {
    %c0 = arith.constant 0 : index
    %c0_0 = arith.constant 0 : index
    %0 = vector.load %arg1[%c0, %c0_0] : memref<8x32xf32, #tpu.memory_space<vmem>>, vector<8x32xf32>
    %c0_1 = arith.constant 0 : index
    %c0_2 = arith.constant 0 : index
    %1 = vector.load %arg2[%c0_1, %c0_2] : memref<32x64xf32, #tpu.memory_space<vmem>>, vector<32x64xf32>
    %cst = arith.constant dense<0.000000e+00> : vector<8x64xf32>
    %2 = tpu.matmul %0, %1, %cst {dimension_numbers = #tpu.dot_dimension_numbers<[1], [0], [0], [1], [0, 0, 1, 1], [], []>} : vector<8x32xf32>, vector<32x64xf32>, vector<8x64xf32> -> vector<8x64xf32>
    %c0_3 = arith.constant 0 : index
    %c0_4 = arith.constant 0 : index
    %3 = vector.load %arg3[%c0_3, %c0_4] : memref<1x64xf32, #tpu.memory_space<vmem>>, vector<1x64xf32>
    %4 = vector.broadcast %3 : vector<1x64xf32> to vector<8x64xf32>
    %5 = arith.addf %2, %4 : vector<8x64xf32>
    %c0_5 = arith.constant 0 : index
    %c0_6 = arith.constant 0 : index
    %6 = vector.load %arg4[%c0_5, %c0_6] : memref<8x64xf32, #tpu.memory_space<vmem>>, vector<8x64xf32>
    tpu.vector_store %arg4[%c0_5, %c0_6], %5 {strides = array<i32>} : memref<8x64xf32, #tpu.memory_space<vmem>>, vector<8x64xf32>,
    return
  }
  func.func @transform_0(%arg0: i32) -> (i32, i32) {
    %c0_i32 = arith.constant 0 : i32
    %c0_i32_0 = arith.constant 0 : i32
    return %arg0, %c0_i32 : i32, i32
  }
  func.func @transform_1(%arg0: i32) -> (i32, i32) {
    %c0_i32 = arith.constant 0 : i32
    %c0_i32_0 = arith.constant 0 : i32
    %c0_i32_1 = arith.constant 0 : i32
    return %c0_i32, %c0_i32_0 : i32, i32
  }
  func.func @transform_2(%arg0: i32) -> (i32, i32) {
    %c0_i32 = arith.constant 0 : i32
    %c0_i32_0 = arith.constant 0 : i32
    %c0_i32_1 = arith.constant 0 : i32
    return %c0_i32, %c0_i32_0 : i32, i32
  }
  func.func @transform_3(%arg0: i32) -> (i32, i32) {
    %c0_i32 = arith.constant 0 : i32
    %c0_i32_0 = arith.constant 0 : i32
    return %arg0, %c0_i32 : i32, i32
  }
}

module attributes {stable_mosaic.version = 11 : i64} {
  func.func @_attention_kernel(%arg0: i32, %arg1: memref<1x8x32xf32, #tpu.memory_space<vmem>>, %arg2: memref<1x8x64xf32, #tpu.memory_space<vmem>>, %arg3: memref<1x8x8xf32, #tpu.memory_space<vmem>>, %arg4: memref<1x8x32xf32, #tpu.memory_space<vmem>>) attributes {dimension_semantics = [#tpu.dimension_semantics<parallel>], iteration_bounds = array<i64: 2>, scalar_prefetch = 0 : i64, scratch_operands = 0 : i64, tpu.core_type = #tpu.core_type<tc>, window_params = [{transform_indices = @transform_0, window_bounds = array<i64: 1, 8, 32>}, {transform_indices = @transform_1, window_bounds = array<i64: 1, 8, 64>}, {transform_indices = @transform_2, window_bounds = array<i64: 1, 8, 8>}, {transform_indices = @transform_3, window_bounds = array<i64: 1, 8, 32>}]} {
    %c0 = arith.constant 0 : index
    %c0_0 = arith.constant 0 : index
    %c0_1 = arith.constant 0 : index
    %0 = vector.load %arg1[%c0, %c0_0, %c0_1] : memref<1x8x32xf32, #tpu.memory_space<vmem>>, vector<1x8x32xf32>
    %1 = vector.shape_cast %0 : vector<1x8x32xf32> to vector<8x32xf32>
    %c0_2 = arith.constant 0 : index
    %c0_3 = arith.constant 0 : index
    %c0_4 = arith.constant 0 : index
    %2 = vector.load %arg2[%c0_2, %c0_3, %c0_4] : memref<1x8x64xf32, #tpu.memory_space<vmem>>, vector<1x8x64xf32>
    %3 = vector.shape_cast %2 : vector<1x8x64xf32> to vector<8x64xf32>
    %c0_5 = arith.constant 0 : index
    %c0_6 = arith.constant 0 : index
    %c0_7 = arith.constant 0 : index
    %4 = vector.load %arg3[%c0_5, %c0_6, %c0_7] : memref<1x8x8xf32, #tpu.memory_space<vmem>>, vector<1x8x8xf32>
    %5 = vector.shape_cast %4 : vector<1x8x8xf32> to vector<8x8xf32>
    %6 = vector.extract_strided_slice %1 {offsets = [0, 0], sizes = [8, 8], strides = [1, 1]} : vector<8x32xf32> to vector<8x8xf32>
    %7 = vector.extract_strided_slice %3 {offsets = [0, 0], sizes = [8, 8], strides = [1, 1]} : vector<8x64xf32> to vector<8x8xf32>
    %8 = vector.extract_strided_slice %3 {offsets = [0, 32], sizes = [8, 8], strides = [1, 1]} : vector<8x64xf32> to vector<8x8xf32>
    %cst = arith.constant dense<0.000000e+00> : vector<8x8xf32>
    %9 = tpu.matmul %6, %7, %cst {dimension_numbers = #tpu.dot_dimension_numbers<[1], [1], [0], [0], [0, 0, 1, 0], [], []>} : vector<8x8xf32>, vector<8x8xf32>, vector<8x8xf32> -> vector<8x8xf32>
    %cst_8 = arith.constant 0.353553385 : f32
    %10 = vector.broadcast %cst_8 : f32 to vector<8x8xf32>
    %11 = arith.mulf %9, %10 : vector<8x8xf32>
    %cst_9 = arith.constant 0.000000e+00 : f32
    %12 = vector.broadcast %cst_9 : f32 to vector<8x8xf32>
    %13 = arith.cmpf oeq, %5, %12 : vector<8x8xf32>
    %cst_10 = arith.constant -1.000000e+09 : f32
    %14 = vector.broadcast %cst_10 : f32 to vector<8x8xf32>
    %15 = arith.select %13, %14, %11 : vector<8x8xi1>, vector<8x8xf32>
    %cst_11 = arith.constant dense<0xFF800000> : vector<8xf32>
    %16 = vector.multi_reduction <maximumf>, %15, %cst_11 [1] : vector<8x8xf32> to vector<8xf32>
    %17 = vector.shape_cast %16 : vector<8xf32> to vector<8x1xf32>
    %18 = vector.broadcast %17 : vector<8x1xf32> to vector<8x8xf32>
    %19 = arith.subf %15, %18 : vector<8x8xf32>
    %20 = math.exp %19 : vector<8x8xf32>
    %cst_12 = arith.constant dense<0.000000e+00> : vector<8xf32>
    %21 = vector.multi_reduction <add>, %20, %cst_12 [1] : vector<8x8xf32> to vector<8xf32>
    %22 = vector.shape_cast %21 : vector<8xf32> to vector<8x1xf32>
    %23 = vector.broadcast %22 : vector<8x1xf32> to vector<8x8xf32>
    %24 = arith.divf %20, %23 : vector<8x8xf32>
    %cst_13 = arith.constant dense<0.000000e+00> : vector<8x8xf32>
    %25 = tpu.matmul %24, %8, %cst_13 {dimension_numbers = #tpu.dot_dimension_numbers<[1], [0], [0], [1], [0, 0, 1, 1], [], []>} : vector<8x8xf32>, vector<8x8xf32>, vector<8x8xf32> -> vector<8x8xf32>
    %26 = vector.extract_strided_slice %1 {offsets = [0, 8], sizes = [8, 8], strides = [1, 1]} : vector<8x32xf32> to vector<8x8xf32>
    %27 = vector.extract_strided_slice %3 {offsets = [0, 8], sizes = [8, 8], strides = [1, 1]} : vector<8x64xf32> to vector<8x8xf32>
    %28 = vector.extract_strided_slice %3 {offsets = [0, 40], sizes = [8, 8], strides = [1, 1]} : vector<8x64xf32> to vector<8x8xf32>
    %cst_14 = arith.constant dense<0.000000e+00> : vector<8x8xf32>
    %29 = tpu.matmul %26, %27, %cst_14 {dimension_numbers = #tpu.dot_dimension_numbers<[1], [1], [0], [0], [0, 0, 1, 0], [], []>} : vector<8x8xf32>, vector<8x8xf32>, vector<8x8xf32> -> vector<8x8xf32>
    %cst_15 = arith.constant 0.353553385 : f32
    %30 = vector.broadcast %cst_15 : f32 to vector<8x8xf32>
    %31 = arith.mulf %29, %30 : vector<8x8xf32>
    %cst_16 = arith.constant 0.000000e+00 : f32
    %32 = vector.broadcast %cst_16 : f32 to vector<8x8xf32>
    %33 = arith.cmpf oeq, %5, %32 : vector<8x8xf32>
    %cst_17 = arith.constant -1.000000e+09 : f32
    %34 = vector.broadcast %cst_17 : f32 to vector<8x8xf32>
    %35 = arith.select %33, %34, %31 : vector<8x8xi1>, vector<8x8xf32>
    %cst_18 = arith.constant dense<0xFF800000> : vector<8xf32>
    %36 = vector.multi_reduction <maximumf>, %35, %cst_18 [1] : vector<8x8xf32> to vector<8xf32>
    %37 = vector.shape_cast %36 : vector<8xf32> to vector<8x1xf32>
    %38 = vector.broadcast %37 : vector<8x1xf32> to vector<8x8xf32>
    %39 = arith.subf %35, %38 : vector<8x8xf32>
    %40 = math.exp %39 : vector<8x8xf32>
    %cst_19 = arith.constant dense<0.000000e+00> : vector<8xf32>
    %41 = vector.multi_reduction <add>, %40, %cst_19 [1] : vector<8x8xf32> to vector<8xf32>
    %42 = vector.shape_cast %41 : vector<8xf32> to vector<8x1xf32>
    %43 = vector.broadcast %42 : vector<8x1xf32> to vector<8x8xf32>
    %44 = arith.divf %40, %43 : vector<8x8xf32>
    %cst_20 = arith.constant dense<0.000000e+00> : vector<8x8xf32>
    %45 = tpu.matmul %44, %28, %cst_20 {dimension_numbers = #tpu.dot_dimension_numbers<[1], [0], [0], [1], [0, 0, 1, 1], [], []>} : vector<8x8xf32>, vector<8x8xf32>, vector<8x8xf32> -> vector<8x8xf32>
    %46 = vector.extract_strided_slice %1 {offsets = [0, 16], sizes = [8, 8], strides = [1, 1]} : vector<8x32xf32> to vector<8x8xf32>
    %47 = vector.extract_strided_slice %3 {offsets = [0, 16], sizes = [8, 8], strides = [1, 1]} : vector<8x64xf32> to vector<8x8xf32>
    %48 = vector.extract_strided_slice %3 {offsets = [0, 48], sizes = [8, 8], strides = [1, 1]} : vector<8x64xf32> to vector<8x8xf32>
    %cst_21 = arith.constant dense<0.000000e+00> : vector<8x8xf32>
    %49 = tpu.matmul %46, %47, %cst_21 {dimension_numbers = #tpu.dot_dimension_numbers<[1], [1], [0], [0], [0, 0, 1, 0], [], []>} : vector<8x8xf32>, vector<8x8xf32>, vector<8x8xf32> -> vector<8x8xf32>
    %cst_22 = arith.constant 0.353553385 : f32
    %50 = vector.broadcast %cst_22 : f32 to vector<8x8xf32>
    %51 = arith.mulf %49, %50 : vector<8x8xf32>
    %cst_23 = arith.constant 0.000000e+00 : f32
    %52 = vector.broadcast %cst_23 : f32 to vector<8x8xf32>
    %53 = arith.cmpf oeq, %5, %52 : vector<8x8xf32>
    %cst_24 = arith.constant -1.000000e+09 : f32
    %54 = vector.broadcast %cst_24 : f32 to vector<8x8xf32>
    %55 = arith.select %53, %54, %51 : vector<8x8xi1>, vector<8x8xf32>
    %cst_25 = arith.constant dense<0xFF800000> : vector<8xf32>
    %56 = vector.multi_reduction <maximumf>, %55, %cst_25 [1] : vector<8x8xf32> to vector<8xf32>
    %57 = vector.shape_cast %56 : vector<8xf32> to vector<8x1xf32>
    %58 = vector.broadcast %57 : vector<8x1xf32> to vector<8x8xf32>
    %59 = arith.subf %55, %58 : vector<8x8xf32>
    %60 = math.exp %59 : vector<8x8xf32>
    %cst_26 = arith.constant dense<0.000000e+00> : vector<8xf32>
    %61 = vector.multi_reduction <add>, %60, %cst_26 [1] : vector<8x8xf32> to vector<8xf32>
    %62 = vector.shape_cast %61 : vector<8xf32> to vector<8x1xf32>
    %63 = vector.broadcast %62 : vector<8x1xf32> to vector<8x8xf32>
    %64 = arith.divf %60, %63 : vector<8x8xf32>
    %cst_27 = arith.constant dense<0.000000e+00> : vector<8x8xf32>
    %65 = tpu.matmul %64, %48, %cst_27 {dimension_numbers = #tpu.dot_dimension_numbers<[1], [0], [0], [1], [0, 0, 1, 1], [], []>} : vector<8x8xf32>, vector<8x8xf32>, vector<8x8xf32> -> vector<8x8xf32>
    %66 = vector.extract_strided_slice %1 {offsets = [0, 24], sizes = [8, 8], strides = [1, 1]} : vector<8x32xf32> to vector<8x8xf32>
    %67 = vector.extract_strided_slice %3 {offsets = [0, 24], sizes = [8, 8], strides = [1, 1]} : vector<8x64xf32> to vector<8x8xf32>
    %68 = vector.extract_strided_slice %3 {offsets = [0, 56], sizes = [8, 8], strides = [1, 1]} : vector<8x64xf32> to vector<8x8xf32>
    %cst_28 = arith.constant dense<0.000000e+00> : vector<8x8xf32>
    %69 = tpu.matmul %66, %67, %cst_28 {dimension_numbers = #tpu.dot_dimension_numbers<[1], [1], [0], [0], [0, 0, 1, 0], [], []>} : vector<8x8xf32>, vector<8x8xf32>, vector<8x8xf32> -> vector<8x8xf32>
    %cst_29 = arith.constant 0.353553385 : f32
    %70 = vector.broadcast %cst_29 : f32 to vector<8x8xf32>
    %71 = arith.mulf %69, %70 : vector<8x8xf32>
    %cst_30 = arith.constant 0.000000e+00 : f32
    %72 = vector.broadcast %cst_30 : f32 to vector<8x8xf32>
    %73 = arith.cmpf oeq, %5, %72 : vector<8x8xf32>
    %cst_31 = arith.constant -1.000000e+09 : f32
    %74 = vector.broadcast %cst_31 : f32 to vector<8x8xf32>
    %75 = arith.select %73, %74, %71 : vector<8x8xi1>, vector<8x8xf32>
    %cst_32 = arith.constant dense<0xFF800000> : vector<8xf32>
    %76 = vector.multi_reduction <maximumf>, %75, %cst_32 [1] : vector<8x8xf32> to vector<8xf32>
    %77 = vector.shape_cast %76 : vector<8xf32> to vector<8x1xf32>
    %78 = vector.broadcast %77 : vector<8x1xf32> to vector<8x8xf32>
    %79 = arith.subf %75, %78 : vector<8x8xf32>
    %80 = math.exp %79 : vector<8x8xf32>
    %cst_33 = arith.constant dense<0.000000e+00> : vector<8xf32>
    %81 = vector.multi_reduction <add>, %80, %cst_33 [1] : vector<8x8xf32> to vector<8xf32>
    %82 = vector.shape_cast %81 : vector<8xf32> to vector<8x1xf32>
    %83 = vector.broadcast %82 : vector<8x1xf32> to vector<8x8xf32>
    %84 = arith.divf %80, %83 : vector<8x8xf32>
    %cst_34 = arith.constant dense<0.000000e+00> : vector<8x8xf32>
    %85 = tpu.matmul %84, %68, %cst_34 {dimension_numbers = #tpu.dot_dimension_numbers<[1], [0], [0], [1], [0, 0, 1, 1], [], []>} : vector<8x8xf32>, vector<8x8xf32>, vector<8x8xf32> -> vector<8x8xf32>
    %86 = tpu.concatenate %25, %45, %65, %85 in 1 : vector<8x8xf32>, vector<8x8xf32>, vector<8x8xf32>, vector<8x8xf32> -> vector<8x32xf32>
    %c0_35 = arith.constant 0 : index
    %c0_36 = arith.constant 0 : index
    %c0_37 = arith.constant 0 : index
    %87 = vector.load %arg4[%c0_35, %c0_36, %c0_37] : memref<1x8x32xf32, #tpu.memory_space<vmem>>, vector<1x8x32xf32>
    %88 = vector.shape_cast %87 : vector<1x8x32xf32> to vector<8x32xf32>
    %89 = vector.shape_cast %86 : vector<8x32xf32> to vector<1x8x32xf32>
    tpu.vector_store %arg4[%c0_35, %c0_36, %c0_37], %89 {strides = array<i32>} : memref<1x8x32xf32, #tpu.memory_space<vmem>>, vector<1x8x32xf32>,
    return
  }
  func.func @transform_0(%arg0: i32) -> (i32, i32, i32) {
    %c0_i32 = arith.constant 0 : i32
    %c0_i32_0 = arith.constant 0 : i32
    %c0_i32_1 = arith.constant 0 : i32
    return %arg0, %c0_i32, %c0_i32_0 : i32, i32, i32
  }
  func.func @transform_1(%arg0: i32) -> (i32, i32, i32) {
    %c0_i32 = arith.constant 0 : i32
    %c0_i32_0 = arith.constant 0 : i32
    %c0_i32_1 = arith.constant 0 : i32
    return %arg0, %c0_i32, %c0_i32_0 : i32, i32, i32
  }
  func.func @transform_2(%arg0: i32) -> (i32, i32, i32) {
    %c0_i32 = arith.constant 0 : i32
    %c0_i32_0 = arith.constant 0 : i32
    %c0_i32_1 = arith.constant 0 : i32
    return %arg0, %c0_i32, %c0_i32_0 : i32, i32, i32
  }
  func.func @transform_3(%arg0: i32) -> (i32, i32, i32) {
    %c0_i32 = arith.constant 0 : i32
    %c0_i32_0 = arith.constant 0 : i32
    %c0_i32_1 = arith.constant 0 : i32
    return %arg0, %c0_i32, %c0_i32_0 : i32, i32, i32
  }
}

module attributes {stable_mosaic.version = 11 : i64} {
  func.func @_out_res_kernel(%arg0: i32, %arg1: memref<8x32xf32, #tpu.memory_space<vmem>>, %arg2: memref<8x32xf32, #tpu.memory_space<vmem>>, %arg3: memref<32x32xf32, #tpu.memory_space<vmem>>, %arg4: memref<1x32xf32, #tpu.memory_space<vmem>>, %arg5: memref<8x32xf32, #tpu.memory_space<vmem>>) attributes {dimension_semantics = [#tpu.dimension_semantics<parallel>], iteration_bounds = array<i64: 2>, scalar_prefetch = 0 : i64, scratch_operands = 0 : i64, tpu.core_type = #tpu.core_type<tc>, window_params = [{transform_indices = @transform_0, window_bounds = array<i64: 8, 32>}, {transform_indices = @transform_1, window_bounds = array<i64: 8, 32>}, {pipeline_mode = #tpu.pipeline_mode<synchronous>, transform_indices = @transform_2, window_bounds = array<i64: 32, 32>}, {pipeline_mode = #tpu.pipeline_mode<synchronous>, transform_indices = @transform_3, window_bounds = array<i64: 1, 32>}, {transform_indices = @transform_4, window_bounds = array<i64: 8, 32>}]} {
    %c0 = arith.constant 0 : index
    %c0_0 = arith.constant 0 : index
    %0 = vector.load %arg1[%c0, %c0_0] : memref<8x32xf32, #tpu.memory_space<vmem>>, vector<8x32xf32>
    %c0_1 = arith.constant 0 : index
    %c0_2 = arith.constant 0 : index
    %1 = vector.load %arg3[%c0_1, %c0_2] : memref<32x32xf32, #tpu.memory_space<vmem>>, vector<32x32xf32>
    %cst = arith.constant dense<0.000000e+00> : vector<8x32xf32>
    %2 = tpu.matmul %0, %1, %cst {dimension_numbers = #tpu.dot_dimension_numbers<[1], [0], [0], [1], [0, 0, 1, 1], [], []>} : vector<8x32xf32>, vector<32x32xf32>, vector<8x32xf32> -> vector<8x32xf32>
    %c0_3 = arith.constant 0 : index
    %c0_4 = arith.constant 0 : index
    %3 = vector.load %arg4[%c0_3, %c0_4] : memref<1x32xf32, #tpu.memory_space<vmem>>, vector<1x32xf32>
    %4 = vector.broadcast %3 : vector<1x32xf32> to vector<8x32xf32>
    %5 = arith.addf %2, %4 : vector<8x32xf32>
    %c0_5 = arith.constant 0 : index
    %c0_6 = arith.constant 0 : index
    %6 = vector.load %arg2[%c0_5, %c0_6] : memref<8x32xf32, #tpu.memory_space<vmem>>, vector<8x32xf32>
    %7 = arith.addf %6, %5 : vector<8x32xf32>
    %c0_7 = arith.constant 0 : index
    %c0_8 = arith.constant 0 : index
    %8 = vector.load %arg5[%c0_7, %c0_8] : memref<8x32xf32, #tpu.memory_space<vmem>>, vector<8x32xf32>
    tpu.vector_store %arg5[%c0_7, %c0_8], %7 {strides = array<i32>} : memref<8x32xf32, #tpu.memory_space<vmem>>, vector<8x32xf32>,
    return
  }
  func.func @transform_0(%arg0: i32) -> (i32, i32) {
    %c0_i32 = arith.constant 0 : i32
    %c0_i32_0 = arith.constant 0 : i32
    return %arg0, %c0_i32 : i32, i32
  }
  func.func @transform_1(%arg0: i32) -> (i32, i32) {
    %c0_i32 = arith.constant 0 : i32
    %c0_i32_0 = arith.constant 0 : i32
    return %arg0, %c0_i32 : i32, i32
  }
  func.func @transform_2(%arg0: i32) -> (i32, i32) {
    %c0_i32 = arith.constant 0 : i32
    %c0_i32_0 = arith.constant 0 : i32
    %c0_i32_1 = arith.constant 0 : i32
    return %c0_i32, %c0_i32_0 : i32, i32
  }
  func.func @transform_3(%arg0: i32) -> (i32, i32) {
    %c0_i32 = arith.constant 0 : i32
    %c0_i32_0 = arith.constant 0 : i32
    %c0_i32_1 = arith.constant 0 : i32
    return %c0_i32, %c0_i32_0 : i32, i32
  }
  func.func @transform_4(%arg0: i32) -> (i32, i32) {
    %c0_i32 = arith.constant 0 : i32
    %c0_i32_0 = arith.constant 0 : i32
    return %arg0, %c0_i32 : i32, i32
  }
}

module attributes {stable_mosaic.version = 11 : i64} {
  func.func @_ln_qkv_kernel(%arg0: i32, %arg1: memref<8x32xf32, #tpu.memory_space<vmem>>, %arg2: memref<1x32xf32, #tpu.memory_space<vmem>>, %arg3: memref<1x32xf32, #tpu.memory_space<vmem>>, %arg4: memref<32x32xf32, #tpu.memory_space<vmem>>, %arg5: memref<1x32xf32, #tpu.memory_space<vmem>>, %arg6: memref<32x64xf32, #tpu.memory_space<vmem>>, %arg7: memref<1x64xf32, #tpu.memory_space<vmem>>, %arg8: memref<8x32xf32, #tpu.memory_space<vmem>>, %arg9: memref<8x64xf32, #tpu.memory_space<vmem>>) attributes {dimension_semantics = [#tpu.dimension_semantics<parallel>], iteration_bounds = array<i64: 2>, scalar_prefetch = 0 : i64, scratch_operands = 0 : i64, tpu.core_type = #tpu.core_type<tc>, window_params = [{transform_indices = @transform_0, window_bounds = array<i64: 8, 32>}, {pipeline_mode = #tpu.pipeline_mode<synchronous>, transform_indices = @transform_1, window_bounds = array<i64: 1, 32>}, {pipeline_mode = #tpu.pipeline_mode<synchronous>, transform_indices = @transform_2, window_bounds = array<i64: 1, 32>}, {pipeline_mode = #tpu.pipeline_mode<synchronous>, transform_indices = @transform_3, window_bounds = array<i64: 32, 32>}, {pipeline_mode = #tpu.pipeline_mode<synchronous>, transform_indices = @transform_4, window_bounds = array<i64: 1, 32>}, {pipeline_mode = #tpu.pipeline_mode<synchronous>, transform_indices = @transform_5, window_bounds = array<i64: 32, 64>}, {pipeline_mode = #tpu.pipeline_mode<synchronous>, transform_indices = @transform_6, window_bounds = array<i64: 1, 64>}, {transform_indices = @transform_7, window_bounds = array<i64: 8, 32>}, {transform_indices = @transform_8, window_bounds = array<i64: 8, 64>}]} {
    %c0 = arith.constant 0 : index
    %c0_0 = arith.constant 0 : index
    %0 = vector.load %arg1[%c0, %c0_0] : memref<8x32xf32, #tpu.memory_space<vmem>>, vector<8x32xf32>
    %c0_1 = arith.constant 0 : index
    %c0_2 = arith.constant 0 : index
    %1 = vector.load %arg2[%c0_1, %c0_2] : memref<1x32xf32, #tpu.memory_space<vmem>>, vector<1x32xf32>
    %c0_3 = arith.constant 0 : index
    %c0_4 = arith.constant 0 : index
    %2 = vector.load %arg3[%c0_3, %c0_4] : memref<1x32xf32, #tpu.memory_space<vmem>>, vector<1x32xf32>
    %cst = arith.constant dense<0.000000e+00> : vector<8xf32>
    %3 = vector.multi_reduction <add>, %0, %cst [1] : vector<8x32xf32> to vector<8xf32>
    %4 = vector.shape_cast %3 : vector<8xf32> to vector<8x1xf32>
    %cst_5 = arith.constant 3.200000e+01 : f32
    %5 = vector.broadcast %cst_5 : f32 to vector<8x1xf32>
    %6 = arith.divf %4, %5 : vector<8x1xf32>
    %7 = vector.broadcast %6 : vector<8x1xf32> to vector<8x32xf32>
    %8 = arith.subf %0, %7 : vector<8x32xf32>
    %9 = arith.mulf %8, %8 : vector<8x32xf32>
    %cst_6 = arith.constant dense<0.000000e+00> : vector<8xf32>
    %10 = vector.multi_reduction <add>, %9, %cst_6 [1] : vector<8x32xf32> to vector<8xf32>
    %11 = vector.shape_cast %10 : vector<8xf32> to vector<8x1xf32>
    %cst_7 = arith.constant 0.0322580636 : f32
    %12 = vector.broadcast %cst_7 : f32 to vector<8x1xf32>
    %13 = arith.mulf %11, %12 : vector<8x1xf32>
    %14 = math.sqrt %13 : vector<8x1xf32>
    %15 = vector.broadcast %1 : vector<1x32xf32> to vector<8x32xf32>
    %16 = arith.mulf %15, %8 : vector<8x32xf32>
    %cst_8 = arith.constant 9.99999997E-7 : f32
    %17 = vector.broadcast %cst_8 : f32 to vector<8x1xf32>
    %18 = arith.addf %14, %17 : vector<8x1xf32>
    %19 = vector.broadcast %18 : vector<8x1xf32> to vector<8x32xf32>
    %20 = arith.divf %16, %19 : vector<8x32xf32>
    %21 = vector.broadcast %2 : vector<1x32xf32> to vector<8x32xf32>
    %22 = arith.addf %20, %21 : vector<8x32xf32>
    %c0_9 = arith.constant 0 : index
    %c0_10 = arith.constant 0 : index
    %23 = vector.load %arg4[%c0_9, %c0_10] : memref<32x32xf32, #tpu.memory_space<vmem>>, vector<32x32xf32>
    %cst_11 = arith.constant dense<0.000000e+00> : vector<8x32xf32>
    %24 = tpu.matmul %22, %23, %cst_11 {dimension_numbers = #tpu.dot_dimension_numbers<[1], [0], [0], [1], [0, 0, 1, 1], [], []>} : vector<8x32xf32>, vector<32x32xf32>, vector<8x32xf32> -> vector<8x32xf32>
    %c0_12 = arith.constant 0 : index
    %c0_13 = arith.constant 0 : index
    %25 = vector.load %arg5[%c0_12, %c0_13] : memref<1x32xf32, #tpu.memory_space<vmem>>, vector<1x32xf32>
    %26 = vector.broadcast %25 : vector<1x32xf32> to vector<8x32xf32>
    %27 = arith.addf %24, %26 : vector<8x32xf32>
    %c0_14 = arith.constant 0 : index
    %c0_15 = arith.constant 0 : index
    %28 = vector.load %arg6[%c0_14, %c0_15] : memref<32x64xf32, #tpu.memory_space<vmem>>, vector<32x64xf32>
    %cst_16 = arith.constant dense<0.000000e+00> : vector<8x64xf32>
    %29 = tpu.matmul %22, %28, %cst_16 {dimension_numbers = #tpu.dot_dimension_numbers<[1], [0], [0], [1], [0, 0, 1, 1], [], []>} : vector<8x32xf32>, vector<32x64xf32>, vector<8x64xf32> -> vector<8x64xf32>
    %c0_17 = arith.constant 0 : index
    %c0_18 = arith.constant 0 : index
    %30 = vector.load %arg7[%c0_17, %c0_18] : memref<1x64xf32, #tpu.memory_space<vmem>>, vector<1x64xf32>
    %31 = vector.broadcast %30 : vector<1x64xf32> to vector<8x64xf32>
    %32 = arith.addf %29, %31 : vector<8x64xf32>
    %c0_19 = arith.constant 0 : index
    %c0_20 = arith.constant 0 : index
    %33 = vector.load %arg8[%c0_19, %c0_20] : memref<8x32xf32, #tpu.memory_space<vmem>>, vector<8x32xf32>
    tpu.vector_store %arg8[%c0_19, %c0_20], %27 {strides = array<i32>} : memref<8x32xf32, #tpu.memory_space<vmem>>, vector<8x32xf32>,
    %c0_21 = arith.constant 0 : index
    %c0_22 = arith.constant 0 : index
    %34 = vector.load %arg9[%c0_21, %c0_22] : memref<8x64xf32, #tpu.memory_space<vmem>>, vector<8x64xf32>
    tpu.vector_store %arg9[%c0_21, %c0_22], %32 {strides = array<i32>} : memref<8x64xf32, #tpu.memory_space<vmem>>, vector<8x64xf32>,
    return
  }
  func.func @transform_0(%arg0: i32) -> (i32, i32) {
    %c0_i32 = arith.constant 0 : i32
    %c0_i32_0 = arith.constant 0 : i32
    return %arg0, %c0_i32 : i32, i32
  }
  func.func @transform_1(%arg0: i32) -> (i32, i32) {
    %c0_i32 = arith.constant 0 : i32
    %c0_i32_0 = arith.constant 0 : i32
    %c0_i32_1 = arith.constant 0 : i32
    return %c0_i32, %c0_i32_0 : i32, i32
  }
  func.func @transform_2(%arg0: i32) -> (i32, i32) {
    %c0_i32 = arith.constant 0 : i32
    %c0_i32_0 = arith.constant 0 : i32
    %c0_i32_1 = arith.constant 0 : i32
    return %c0_i32, %c0_i32_0 : i32, i32
  }
  func.func @transform_3(%arg0: i32) -> (i32, i32) {
    %c0_i32 = arith.constant 0 : i32
    %c0_i32_0 = arith.constant 0 : i32
    %c0_i32_1 = arith.constant 0 : i32
    return %c0_i32, %c0_i32_0 : i32, i32
  }
  func.func @transform_4(%arg0: i32) -> (i32, i32) {
    %c0_i32 = arith.constant 0 : i32
    %c0_i32_0 = arith.constant 0 : i32
    %c0_i32_1 = arith.constant 0 : i32
    return %c0_i32, %c0_i32_0 : i32, i32
  }
  func.func @transform_5(%arg0: i32) -> (i32, i32) {
    %c0_i32 = arith.constant 0 : i32
    %c0_i32_0 = arith.constant 0 : i32
    %c0_i32_1 = arith.constant 0 : i32
    return %c0_i32, %c0_i32_0 : i32, i32
  }
  func.func @transform_6(%arg0: i32) -> (i32, i32) {
    %c0_i32 = arith.constant 0 : i32
    %c0_i32_0 = arith.constant 0 : i32
    %c0_i32_1 = arith.constant 0 : i32
    return %c0_i32, %c0_i32_0 : i32, i32
  }
  func.func @transform_7(%arg0: i32) -> (i32, i32) {
    %c0_i32 = arith.constant 0 : i32
    %c0_i32_0 = arith.constant 0 : i32
    return %arg0, %c0_i32 : i32, i32
  }
  func.func @transform_8(%arg0: i32) -> (i32, i32) {
    %c0_i32 = arith.constant 0 : i32
    %c0_i32_0 = arith.constant 0 : i32
    return %arg0, %c0_i32 : i32, i32
  }
}

module attributes {stable_mosaic.version = 11 : i64} {
  func.func @_attention_kernel(%arg0: i32, %arg1: memref<1x8x32xf32, #tpu.memory_space<vmem>>, %arg2: memref<1x8x64xf32, #tpu.memory_space<vmem>>, %arg3: memref<1x1x8xf32, #tpu.memory_space<vmem>>, %arg4: memref<1x8x32xf32, #tpu.memory_space<vmem>>) attributes {dimension_semantics = [#tpu.dimension_semantics<parallel>], iteration_bounds = array<i64: 2>, scalar_prefetch = 0 : i64, scratch_operands = 0 : i64, tpu.core_type = #tpu.core_type<tc>, window_params = [{transform_indices = @transform_0, window_bounds = array<i64: 1, 8, 32>}, {transform_indices = @transform_1, window_bounds = array<i64: 1, 8, 64>}, {transform_indices = @transform_2, window_bounds = array<i64: 1, 1, 8>}, {transform_indices = @transform_3, window_bounds = array<i64: 1, 8, 32>}]} {
    %c0 = arith.constant 0 : index
    %c0_0 = arith.constant 0 : index
    %c0_1 = arith.constant 0 : index
    %0 = vector.load %arg1[%c0, %c0_0, %c0_1] : memref<1x8x32xf32, #tpu.memory_space<vmem>>, vector<1x8x32xf32>
    %1 = vector.shape_cast %0 : vector<1x8x32xf32> to vector<8x32xf32>
    %c0_2 = arith.constant 0 : index
    %c0_3 = arith.constant 0 : index
    %c0_4 = arith.constant 0 : index
    %2 = vector.load %arg2[%c0_2, %c0_3, %c0_4] : memref<1x8x64xf32, #tpu.memory_space<vmem>>, vector<1x8x64xf32>
    %3 = vector.shape_cast %2 : vector<1x8x64xf32> to vector<8x64xf32>
    %c0_5 = arith.constant 0 : index
    %c0_6 = arith.constant 0 : index
    %c0_7 = arith.constant 0 : index
    %4 = vector.load %arg3[%c0_5, %c0_6, %c0_7] : memref<1x1x8xf32, #tpu.memory_space<vmem>>, vector<1x1x8xf32>
    %5 = vector.shape_cast %4 : vector<1x1x8xf32> to vector<1x8xf32>
    %6 = vector.extract_strided_slice %1 {offsets = [0, 0], sizes = [8, 8], strides = [1, 1]} : vector<8x32xf32> to vector<8x8xf32>
    %7 = vector.extract_strided_slice %3 {offsets = [0, 0], sizes = [8, 8], strides = [1, 1]} : vector<8x64xf32> to vector<8x8xf32>
    %8 = vector.extract_strided_slice %3 {offsets = [0, 32], sizes = [8, 8], strides = [1, 1]} : vector<8x64xf32> to vector<8x8xf32>
    %cst = arith.constant dense<0.000000e+00> : vector<8x8xf32>
    %9 = tpu.matmul %6, %7, %cst {dimension_numbers = #tpu.dot_dimension_numbers<[1], [1], [0], [0], [0, 0, 1, 0], [], []>} : vector<8x8xf32>, vector<8x8xf32>, vector<8x8xf32> -> vector<8x8xf32>
    %cst_8 = arith.constant 0.353553385 : f32
    %10 = vector.broadcast %cst_8 : f32 to vector<8x8xf32>
    %11 = arith.mulf %9, %10 : vector<8x8xf32>
    %cst_9 = arith.constant 0.000000e+00 : f32
    %12 = vector.broadcast %cst_9 : f32 to vector<1x8xf32>
    %13 = arith.cmpf oeq, %5, %12 : vector<1x8xf32>
    %cst_10 = arith.constant -1.000000e+09 : f32
    %14 = vector.shape_cast %13 : vector<1x8xi1> to vector<1x8xi1>
    %15 = vector.broadcast %14 : vector<1x8xi1> to vector<8x8xi1>
    %16 = vector.broadcast %cst_10 : f32 to vector<8x8xf32>
    %17 = arith.select %15, %16, %11 : vector<8x8xi1>, vector<8x8xf32>
    %cst_11 = arith.constant dense<0xFF800000> : vector<8xf32>
    %18 = vector.multi_reduction <maximumf>, %17, %cst_11 [1] : vector<8x8xf32> to vector<8xf32>
    %19 = vector.shape_cast %18 : vector<8xf32> to vector<8x1xf32>
    %20 = vector.broadcast %19 : vector<8x1xf32> to vector<8x8xf32>
    %21 = arith.subf %17, %20 : vector<8x8xf32>
    %22 = math.exp %21 : vector<8x8xf32>
    %cst_12 = arith.constant dense<0.000000e+00> : vector<8xf32>
    %23 = vector.multi_reduction <add>, %22, %cst_12 [1] : vector<8x8xf32> to vector<8xf32>
    %24 = vector.shape_cast %23 : vector<8xf32> to vector<8x1xf32>
    %25 = vector.broadcast %24 : vector<8x1xf32> to vector<8x8xf32>
    %26 = arith.divf %22, %25 : vector<8x8xf32>
    %cst_13 = arith.constant dense<0.000000e+00> : vector<8x8xf32>
    %27 = tpu.matmul %26, %8, %cst_13 {dimension_numbers = #tpu.dot_dimension_numbers<[1], [0], [0], [1], [0, 0, 1, 1], [], []>} : vector<8x8xf32>, vector<8x8xf32>, vector<8x8xf32> -> vector<8x8xf32>
    %28 = vector.extract_strided_slice %1 {offsets = [0, 8], sizes = [8, 8], strides = [1, 1]} : vector<8x32xf32> to vector<8x8xf32>
    %29 = vector.extract_strided_slice %3 {offsets = [0, 8], sizes = [8, 8], strides = [1, 1]} : vector<8x64xf32> to vector<8x8xf32>
    %30 = vector.extract_strided_slice %3 {offsets = [0, 40], sizes = [8, 8], strides = [1, 1]} : vector<8x64xf32> to vector<8x8xf32>
    %cst_14 = arith.constant dense<0.000000e+00> : vector<8x8xf32>
    %31 = tpu.matmul %28, %29, %cst_14 {dimension_numbers = #tpu.dot_dimension_numbers<[1], [1], [0], [0], [0, 0, 1, 0], [], []>} : vector<8x8xf32>, vector<8x8xf32>, vector<8x8xf32> -> vector<8x8xf32>
    %cst_15 = arith.constant 0.353553385 : f32
    %32 = vector.broadcast %cst_15 : f32 to vector<8x8xf32>
    %33 = arith.mulf %31, %32 : vector<8x8xf32>
    %cst_16 = arith.constant 0.000000e+00 : f32
    %34 = vector.broadcast %cst_16 : f32 to vector<1x8xf32>
    %35 = arith.cmpf oeq, %5, %34 : vector<1x8xf32>
    %cst_17 = arith.constant -1.000000e+09 : f32
    %36 = vector.shape_cast %35 : vector<1x8xi1> to vector<1x8xi1>
    %37 = vector.broadcast %36 : vector<1x8xi1> to vector<8x8xi1>
    %38 = vector.broadcast %cst_17 : f32 to vector<8x8xf32>
    %39 = arith.select %37, %38, %33 : vector<8x8xi1>, vector<8x8xf32>
    %cst_18 = arith.constant dense<0xFF800000> : vector<8xf32>
    %40 = vector.multi_reduction <maximumf>, %39, %cst_18 [1] : vector<8x8xf32> to vector<8xf32>
    %41 = vector.shape_cast %40 : vector<8xf32> to vector<8x1xf32>
    %42 = vector.broadcast %41 : vector<8x1xf32> to vector<8x8xf32>
    %43 = arith.subf %39, %42 : vector<8x8xf32>
    %44 = math.exp %43 : vector<8x8xf32>
    %cst_19 = arith.constant dense<0.000000e+00> : vector<8xf32>
    %45 = vector.multi_reduction <add>, %44, %cst_19 [1] : vector<8x8xf32> to vector<8xf32>
    %46 = vector.shape_cast %45 : vector<8xf32> to vector<8x1xf32>
    %47 = vector.broadcast %46 : vector<8x1xf32> to vector<8x8xf32>
    %48 = arith.divf %44, %47 : vector<8x8xf32>
    %cst_20 = arith.constant dense<0.000000e+00> : vector<8x8xf32>
    %49 = tpu.matmul %48, %30, %cst_20 {dimension_numbers = #tpu.dot_dimension_numbers<[1], [0], [0], [1], [0, 0, 1, 1], [], []>} : vector<8x8xf32>, vector<8x8xf32>, vector<8x8xf32> -> vector<8x8xf32>
    %50 = vector.extract_strided_slice %1 {offsets = [0, 16], sizes = [8, 8], strides = [1, 1]} : vector<8x32xf32> to vector<8x8xf32>
    %51 = vector.extract_strided_slice %3 {offsets = [0, 16], sizes = [8, 8], strides = [1, 1]} : vector<8x64xf32> to vector<8x8xf32>
    %52 = vector.extract_strided_slice %3 {offsets = [0, 48], sizes = [8, 8], strides = [1, 1]} : vector<8x64xf32> to vector<8x8xf32>
    %cst_21 = arith.constant dense<0.000000e+00> : vector<8x8xf32>
    %53 = tpu.matmul %50, %51, %cst_21 {dimension_numbers = #tpu.dot_dimension_numbers<[1], [1], [0], [0], [0, 0, 1, 0], [], []>} : vector<8x8xf32>, vector<8x8xf32>, vector<8x8xf32> -> vector<8x8xf32>
    %cst_22 = arith.constant 0.353553385 : f32
    %54 = vector.broadcast %cst_22 : f32 to vector<8x8xf32>
    %55 = arith.mulf %53, %54 : vector<8x8xf32>
    %cst_23 = arith.constant 0.000000e+00 : f32
    %56 = vector.broadcast %cst_23 : f32 to vector<1x8xf32>
    %57 = arith.cmpf oeq, %5, %56 : vector<1x8xf32>
    %cst_24 = arith.constant -1.000000e+09 : f32
    %58 = vector.shape_cast %57 : vector<1x8xi1> to vector<1x8xi1>
    %59 = vector.broadcast %58 : vector<1x8xi1> to vector<8x8xi1>
    %60 = vector.broadcast %cst_24 : f32 to vector<8x8xf32>
    %61 = arith.select %59, %60, %55 : vector<8x8xi1>, vector<8x8xf32>
    %cst_25 = arith.constant dense<0xFF800000> : vector<8xf32>
    %62 = vector.multi_reduction <maximumf>, %61, %cst_25 [1] : vector<8x8xf32> to vector<8xf32>
    %63 = vector.shape_cast %62 : vector<8xf32> to vector<8x1xf32>
    %64 = vector.broadcast %63 : vector<8x1xf32> to vector<8x8xf32>
    %65 = arith.subf %61, %64 : vector<8x8xf32>
    %66 = math.exp %65 : vector<8x8xf32>
    %cst_26 = arith.constant dense<0.000000e+00> : vector<8xf32>
    %67 = vector.multi_reduction <add>, %66, %cst_26 [1] : vector<8x8xf32> to vector<8xf32>
    %68 = vector.shape_cast %67 : vector<8xf32> to vector<8x1xf32>
    %69 = vector.broadcast %68 : vector<8x1xf32> to vector<8x8xf32>
    %70 = arith.divf %66, %69 : vector<8x8xf32>
    %cst_27 = arith.constant dense<0.000000e+00> : vector<8x8xf32>
    %71 = tpu.matmul %70, %52, %cst_27 {dimension_numbers = #tpu.dot_dimension_numbers<[1], [0], [0], [1], [0, 0, 1, 1], [], []>} : vector<8x8xf32>, vector<8x8xf32>, vector<8x8xf32> -> vector<8x8xf32>
    %72 = vector.extract_strided_slice %1 {offsets = [0, 24], sizes = [8, 8], strides = [1, 1]} : vector<8x32xf32> to vector<8x8xf32>
    %73 = vector.extract_strided_slice %3 {offsets = [0, 24], sizes = [8, 8], strides = [1, 1]} : vector<8x64xf32> to vector<8x8xf32>
    %74 = vector.extract_strided_slice %3 {offsets = [0, 56], sizes = [8, 8], strides = [1, 1]} : vector<8x64xf32> to vector<8x8xf32>
    %cst_28 = arith.constant dense<0.000000e+00> : vector<8x8xf32>
    %75 = tpu.matmul %72, %73, %cst_28 {dimension_numbers = #tpu.dot_dimension_numbers<[1], [1], [0], [0], [0, 0, 1, 0], [], []>} : vector<8x8xf32>, vector<8x8xf32>, vector<8x8xf32> -> vector<8x8xf32>
    %cst_29 = arith.constant 0.353553385 : f32
    %76 = vector.broadcast %cst_29 : f32 to vector<8x8xf32>
    %77 = arith.mulf %75, %76 : vector<8x8xf32>
    %cst_30 = arith.constant 0.000000e+00 : f32
    %78 = vector.broadcast %cst_30 : f32 to vector<1x8xf32>
    %79 = arith.cmpf oeq, %5, %78 : vector<1x8xf32>
    %cst_31 = arith.constant -1.000000e+09 : f32
    %80 = vector.shape_cast %79 : vector<1x8xi1> to vector<1x8xi1>
    %81 = vector.broadcast %80 : vector<1x8xi1> to vector<8x8xi1>
    %82 = vector.broadcast %cst_31 : f32 to vector<8x8xf32>
    %83 = arith.select %81, %82, %77 : vector<8x8xi1>, vector<8x8xf32>
    %cst_32 = arith.constant dense<0xFF800000> : vector<8xf32>
    %84 = vector.multi_reduction <maximumf>, %83, %cst_32 [1] : vector<8x8xf32> to vector<8xf32>
    %85 = vector.shape_cast %84 : vector<8xf32> to vector<8x1xf32>
    %86 = vector.broadcast %85 : vector<8x1xf32> to vector<8x8xf32>
    %87 = arith.subf %83, %86 : vector<8x8xf32>
    %88 = math.exp %87 : vector<8x8xf32>
    %cst_33 = arith.constant dense<0.000000e+00> : vector<8xf32>
    %89 = vector.multi_reduction <add>, %88, %cst_33 [1] : vector<8x8xf32> to vector<8xf32>
    %90 = vector.shape_cast %89 : vector<8xf32> to vector<8x1xf32>
    %91 = vector.broadcast %90 : vector<8x1xf32> to vector<8x8xf32>
    %92 = arith.divf %88, %91 : vector<8x8xf32>
    %cst_34 = arith.constant dense<0.000000e+00> : vector<8x8xf32>
    %93 = tpu.matmul %92, %74, %cst_34 {dimension_numbers = #tpu.dot_dimension_numbers<[1], [0], [0], [1], [0, 0, 1, 1], [], []>} : vector<8x8xf32>, vector<8x8xf32>, vector<8x8xf32> -> vector<8x8xf32>
    %94 = tpu.concatenate %27, %49, %71, %93 in 1 : vector<8x8xf32>, vector<8x8xf32>, vector<8x8xf32>, vector<8x8xf32> -> vector<8x32xf32>
    %c0_35 = arith.constant 0 : index
    %c0_36 = arith.constant 0 : index
    %c0_37 = arith.constant 0 : index
    %95 = vector.load %arg4[%c0_35, %c0_36, %c0_37] : memref<1x8x32xf32, #tpu.memory_space<vmem>>, vector<1x8x32xf32>
    %96 = vector.shape_cast %95 : vector<1x8x32xf32> to vector<8x32xf32>
    %97 = vector.shape_cast %94 : vector<8x32xf32> to vector<1x8x32xf32>
    tpu.vector_store %arg4[%c0_35, %c0_36, %c0_37], %97 {strides = array<i32>} : memref<1x8x32xf32, #tpu.memory_space<vmem>>, vector<1x8x32xf32>,
    return
  }
  func.func @transform_0(%arg0: i32) -> (i32, i32, i32) {
    %c0_i32 = arith.constant 0 : i32
    %c0_i32_0 = arith.constant 0 : i32
    %c0_i32_1 = arith.constant 0 : i32
    return %arg0, %c0_i32, %c0_i32_0 : i32, i32, i32
  }
  func.func @transform_1(%arg0: i32) -> (i32, i32, i32) {
    %c0_i32 = arith.constant 0 : i32
    %c0_i32_0 = arith.constant 0 : i32
    %c0_i32_1 = arith.constant 0 : i32
    return %arg0, %c0_i32, %c0_i32_0 : i32, i32, i32
  }
  func.func @transform_2(%arg0: i32) -> (i32, i32, i32) {
    %c0_i32 = arith.constant 0 : i32
    %c0_i32_0 = arith.constant 0 : i32
    %c0_i32_1 = arith.constant 0 : i32
    return %arg0, %c0_i32, %c0_i32_0 : i32, i32, i32
  }
  func.func @transform_3(%arg0: i32) -> (i32, i32, i32) {
    %c0_i32 = arith.constant 0 : i32
    %c0_i32_0 = arith.constant 0 : i32
    %c0_i32_1 = arith.constant 0 : i32
    return %arg0, %c0_i32, %c0_i32_0 : i32, i32, i32
  }
}

module attributes {stable_mosaic.version = 11 : i64} {
  func.func @_ln_qkv_kernel(%arg0: i32, %arg1: memref<8x32xf32, #tpu.memory_space<vmem>>, %arg2: memref<1x32xf32, #tpu.memory_space<vmem>>, %arg3: memref<1x32xf32, #tpu.memory_space<vmem>>, %arg4: memref<32x32xf32, #tpu.memory_space<vmem>>, %arg5: memref<1x32xf32, #tpu.memory_space<vmem>>, %arg6: memref<32x64xf32, #tpu.memory_space<vmem>>, %arg7: memref<1x64xf32, #tpu.memory_space<vmem>>, %arg8: memref<8x32xf32, #tpu.memory_space<vmem>>, %arg9: memref<8x64xf32, #tpu.memory_space<vmem>>) attributes {dimension_semantics = [#tpu.dimension_semantics<parallel>], iteration_bounds = array<i64: 2>, scalar_prefetch = 0 : i64, scratch_operands = 0 : i64, tpu.core_type = #tpu.core_type<tc>, window_params = [{transform_indices = @transform_0, window_bounds = array<i64: 8, 32>}, {pipeline_mode = #tpu.pipeline_mode<synchronous>, transform_indices = @transform_1, window_bounds = array<i64: 1, 32>}, {pipeline_mode = #tpu.pipeline_mode<synchronous>, transform_indices = @transform_2, window_bounds = array<i64: 1, 32>}, {pipeline_mode = #tpu.pipeline_mode<synchronous>, transform_indices = @transform_3, window_bounds = array<i64: 32, 32>}, {pipeline_mode = #tpu.pipeline_mode<synchronous>, transform_indices = @transform_4, window_bounds = array<i64: 1, 32>}, {pipeline_mode = #tpu.pipeline_mode<synchronous>, transform_indices = @transform_5, window_bounds = array<i64: 32, 64>}, {pipeline_mode = #tpu.pipeline_mode<synchronous>, transform_indices = @transform_6, window_bounds = array<i64: 1, 64>}, {transform_indices = @transform_7, window_bounds = array<i64: 8, 32>}, {transform_indices = @transform_8, window_bounds = array<i64: 8, 64>}]} {
    %c0 = arith.constant 0 : index
    %c0_0 = arith.constant 0 : index
    %0 = vector.load %arg1[%c0, %c0_0] : memref<8x32xf32, #tpu.memory_space<vmem>>, vector<8x32xf32>
    %c0_1 = arith.constant 0 : index
    %c0_2 = arith.constant 0 : index
    %1 = vector.load %arg2[%c0_1, %c0_2] : memref<1x32xf32, #tpu.memory_space<vmem>>, vector<1x32xf32>
    %c0_3 = arith.constant 0 : index
    %c0_4 = arith.constant 0 : index
    %2 = vector.load %arg3[%c0_3, %c0_4] : memref<1x32xf32, #tpu.memory_space<vmem>>, vector<1x32xf32>
    %cst = arith.constant dense<0.000000e+00> : vector<8xf32>
    %3 = vector.multi_reduction <add>, %0, %cst [1] : vector<8x32xf32> to vector<8xf32>
    %4 = vector.shape_cast %3 : vector<8xf32> to vector<8x1xf32>
    %cst_5 = arith.constant 3.200000e+01 : f32
    %5 = vector.broadcast %cst_5 : f32 to vector<8x1xf32>
    %6 = arith.divf %4, %5 : vector<8x1xf32>
    %7 = vector.broadcast %6 : vector<8x1xf32> to vector<8x32xf32>
    %8 = arith.subf %0, %7 : vector<8x32xf32>
    %9 = arith.mulf %8, %8 : vector<8x32xf32>
    %cst_6 = arith.constant dense<0.000000e+00> : vector<8xf32>
    %10 = vector.multi_reduction <add>, %9, %cst_6 [1] : vector<8x32xf32> to vector<8xf32>
    %11 = vector.shape_cast %10 : vector<8xf32> to vector<8x1xf32>
    %cst_7 = arith.constant 0.0322580636 : f32
    %12 = vector.broadcast %cst_7 : f32 to vector<8x1xf32>
    %13 = arith.mulf %11, %12 : vector<8x1xf32>
    %14 = math.sqrt %13 : vector<8x1xf32>
    %15 = vector.broadcast %1 : vector<1x32xf32> to vector<8x32xf32>
    %16 = arith.mulf %15, %8 : vector<8x32xf32>
    %cst_8 = arith.constant 9.99999997E-7 : f32
    %17 = vector.broadcast %cst_8 : f32 to vector<8x1xf32>
    %18 = arith.addf %14, %17 : vector<8x1xf32>
    %19 = vector.broadcast %18 : vector<8x1xf32> to vector<8x32xf32>
    %20 = arith.divf %16, %19 : vector<8x32xf32>
    %21 = vector.broadcast %2 : vector<1x32xf32> to vector<8x32xf32>
    %22 = arith.addf %20, %21 : vector<8x32xf32>
    %c0_9 = arith.constant 0 : index
    %c0_10 = arith.constant 0 : index
    %23 = vector.load %arg4[%c0_9, %c0_10] : memref<32x32xf32, #tpu.memory_space<vmem>>, vector<32x32xf32>
    %cst_11 = arith.constant dense<0.000000e+00> : vector<8x32xf32>
    %24 = tpu.matmul %22, %23, %cst_11 {dimension_numbers = #tpu.dot_dimension_numbers<[1], [0], [0], [1], [0, 0, 1, 1], [], []>} : vector<8x32xf32>, vector<32x32xf32>, vector<8x32xf32> -> vector<8x32xf32>
    %c0_12 = arith.constant 0 : index
    %c0_13 = arith.constant 0 : index
    %25 = vector.load %arg5[%c0_12, %c0_13] : memref<1x32xf32, #tpu.memory_space<vmem>>, vector<1x32xf32>
    %26 = vector.broadcast %25 : vector<1x32xf32> to vector<8x32xf32>
    %27 = arith.addf %24, %26 : vector<8x32xf32>
    %c0_14 = arith.constant 0 : index
    %c0_15 = arith.constant 0 : index
    %28 = vector.load %arg6[%c0_14, %c0_15] : memref<32x64xf32, #tpu.memory_space<vmem>>, vector<32x64xf32>
    %cst_16 = arith.constant dense<0.000000e+00> : vector<8x64xf32>
    %29 = tpu.matmul %22, %28, %cst_16 {dimension_numbers = #tpu.dot_dimension_numbers<[1], [0], [0], [1], [0, 0, 1, 1], [], []>} : vector<8x32xf32>, vector<32x64xf32>, vector<8x64xf32> -> vector<8x64xf32>
    %c0_17 = arith.constant 0 : index
    %c0_18 = arith.constant 0 : index
    %30 = vector.load %arg7[%c0_17, %c0_18] : memref<1x64xf32, #tpu.memory_space<vmem>>, vector<1x64xf32>
    %31 = vector.broadcast %30 : vector<1x64xf32> to vector<8x64xf32>
    %32 = arith.addf %29, %31 : vector<8x64xf32>
    %c0_19 = arith.constant 0 : index
    %c0_20 = arith.constant 0 : index
    %33 = vector.load %arg8[%c0_19, %c0_20] : memref<8x32xf32, #tpu.memory_space<vmem>>, vector<8x32xf32>
    tpu.vector_store %arg8[%c0_19, %c0_20], %27 {strides = array<i32>} : memref<8x32xf32, #tpu.memory_space<vmem>>, vector<8x32xf32>,
    %c0_21 = arith.constant 0 : index
    %c0_22 = arith.constant 0 : index
    %34 = vector.load %arg9[%c0_21, %c0_22] : memref<8x64xf32, #tpu.memory_space<vmem>>, vector<8x64xf32>
    tpu.vector_store %arg9[%c0_21, %c0_22], %32 {strides = array<i32>} : memref<8x64xf32, #tpu.memory_space<vmem>>, vector<8x64xf32>,
    return
  }
  func.func @transform_0(%arg0: i32) -> (i32, i32) {
    %c0_i32 = arith.constant 0 : i32
    %c0_i32_0 = arith.constant 0 : i32
    return %arg0, %c0_i32 : i32, i32
  }
  func.func @transform_1(%arg0: i32) -> (i32, i32) {
    %c0_i32 = arith.constant 0 : i32
    %c0_i32_0 = arith.constant 0 : i32
    %c0_i32_1 = arith.constant 0 : i32
    return %c0_i32, %c0_i32_0 : i32, i32
  }
  func.func @transform_2(%arg0: i32) -> (i32, i32) {
    %c0_i32 = arith.constant 0 : i32
    %c0_i32_0 = arith.constant 0 : i32
    %c0_i32_1 = arith.constant 0 : i32
    return %c0_i32, %c0_i32_0 : i32, i32
  }
  func.func @transform_3(%arg0: i32) -> (i32, i32) {
    %c0_i32 = arith.constant 0 : i32
    %c0_i32_0 = arith.constant 0 : i32
    %c0_i32_1 = arith.constant 0 : i32
    return %c0_i32, %c0_i32_0 : i32, i32
  }
  func.func @transform_4(%arg0: i32) -> (i32, i32) {
    %c0_i32 = arith.constant 0 : i32
    %c0_i32_0 = arith.constant 0 : i32
    %c0_i32_1 = arith.constant 0 : i32
    return %c0_i32, %c0_i32_0 : i32, i32
  }
  func.func @transform_5(%arg0: i32) -> (i32, i32) {
    %c0_i32 = arith.constant 0 : i32
    %c0_i32_0 = arith.constant 0 : i32
    %c0_i32_1 = arith.constant 0 : i32
    return %c0_i32, %c0_i32_0 : i32, i32
  }
  func.func @transform_6(%arg0: i32) -> (i32, i32) {
    %c0_i32 = arith.constant 0 : i32
    %c0_i32_0 = arith.constant 0 : i32
    %c0_i32_1 = arith.constant 0 : i32
    return %c0_i32, %c0_i32_0 : i32, i32
  }
  func.func @transform_7(%arg0: i32) -> (i32, i32) {
    %c0_i32 = arith.constant 0 : i32
    %c0_i32_0 = arith.constant 0 : i32
    return %arg0, %c0_i32 : i32, i32
  }
  func.func @transform_8(%arg0: i32) -> (i32, i32) {
    %c0_i32 = arith.constant 0 : i32
    %c0_i32_0 = arith.constant 0 : i32
    return %arg0, %c0_i32 : i32, i32
  }
}

module attributes {stable_mosaic.version = 11 : i64} {
  func.func @_ln_proj_kernel(%arg0: i32, %arg1: memref<8x32xf32, #tpu.memory_space<vmem>>, %arg2: memref<1x32xf32, #tpu.memory_space<vmem>>, %arg3: memref<1x32xf32, #tpu.memory_space<vmem>>, %arg4: memref<32x32xf32, #tpu.memory_space<vmem>>, %arg5: memref<1x32xf32, #tpu.memory_space<vmem>>, %arg6: memref<8x32xf32, #tpu.memory_space<vmem>>) attributes {dimension_semantics = [#tpu.dimension_semantics<parallel>], iteration_bounds = array<i64: 2>, scalar_prefetch = 0 : i64, scratch_operands = 0 : i64, tpu.core_type = #tpu.core_type<tc>, window_params = [{transform_indices = @transform_0, window_bounds = array<i64: 8, 32>}, {pipeline_mode = #tpu.pipeline_mode<synchronous>, transform_indices = @transform_1, window_bounds = array<i64: 1, 32>}, {pipeline_mode = #tpu.pipeline_mode<synchronous>, transform_indices = @transform_2, window_bounds = array<i64: 1, 32>}, {pipeline_mode = #tpu.pipeline_mode<synchronous>, transform_indices = @transform_3, window_bounds = array<i64: 32, 32>}, {pipeline_mode = #tpu.pipeline_mode<synchronous>, transform_indices = @transform_4, window_bounds = array<i64: 1, 32>}, {transform_indices = @transform_5, window_bounds = array<i64: 8, 32>}]} {
    %c0 = arith.constant 0 : index
    %c0_0 = arith.constant 0 : index
    %0 = vector.load %arg1[%c0, %c0_0] : memref<8x32xf32, #tpu.memory_space<vmem>>, vector<8x32xf32>
    %c0_1 = arith.constant 0 : index
    %c0_2 = arith.constant 0 : index
    %1 = vector.load %arg2[%c0_1, %c0_2] : memref<1x32xf32, #tpu.memory_space<vmem>>, vector<1x32xf32>
    %c0_3 = arith.constant 0 : index
    %c0_4 = arith.constant 0 : index
    %2 = vector.load %arg3[%c0_3, %c0_4] : memref<1x32xf32, #tpu.memory_space<vmem>>, vector<1x32xf32>
    %cst = arith.constant dense<0.000000e+00> : vector<8xf32>
    %3 = vector.multi_reduction <add>, %0, %cst [1] : vector<8x32xf32> to vector<8xf32>
    %4 = vector.shape_cast %3 : vector<8xf32> to vector<8x1xf32>
    %cst_5 = arith.constant 3.200000e+01 : f32
    %5 = vector.broadcast %cst_5 : f32 to vector<8x1xf32>
    %6 = arith.divf %4, %5 : vector<8x1xf32>
    %7 = vector.broadcast %6 : vector<8x1xf32> to vector<8x32xf32>
    %8 = arith.subf %0, %7 : vector<8x32xf32>
    %9 = arith.mulf %8, %8 : vector<8x32xf32>
    %cst_6 = arith.constant dense<0.000000e+00> : vector<8xf32>
    %10 = vector.multi_reduction <add>, %9, %cst_6 [1] : vector<8x32xf32> to vector<8xf32>
    %11 = vector.shape_cast %10 : vector<8xf32> to vector<8x1xf32>
    %cst_7 = arith.constant 0.0322580636 : f32
    %12 = vector.broadcast %cst_7 : f32 to vector<8x1xf32>
    %13 = arith.mulf %11, %12 : vector<8x1xf32>
    %14 = math.sqrt %13 : vector<8x1xf32>
    %15 = vector.broadcast %1 : vector<1x32xf32> to vector<8x32xf32>
    %16 = arith.mulf %15, %8 : vector<8x32xf32>
    %cst_8 = arith.constant 9.99999997E-7 : f32
    %17 = vector.broadcast %cst_8 : f32 to vector<8x1xf32>
    %18 = arith.addf %14, %17 : vector<8x1xf32>
    %19 = vector.broadcast %18 : vector<8x1xf32> to vector<8x32xf32>
    %20 = arith.divf %16, %19 : vector<8x32xf32>
    %21 = vector.broadcast %2 : vector<1x32xf32> to vector<8x32xf32>
    %22 = arith.addf %20, %21 : vector<8x32xf32>
    %c0_9 = arith.constant 0 : index
    %c0_10 = arith.constant 0 : index
    %23 = vector.load %arg4[%c0_9, %c0_10] : memref<32x32xf32, #tpu.memory_space<vmem>>, vector<32x32xf32>
    %cst_11 = arith.constant dense<0.000000e+00> : vector<8x32xf32>
    %24 = tpu.matmul %22, %23, %cst_11 {dimension_numbers = #tpu.dot_dimension_numbers<[1], [0], [0], [1], [0, 0, 1, 1], [], []>} : vector<8x32xf32>, vector<32x32xf32>, vector<8x32xf32> -> vector<8x32xf32>
    %c0_12 = arith.constant 0 : index
    %c0_13 = arith.constant 0 : index
    %25 = vector.load %arg5[%c0_12, %c0_13] : memref<1x32xf32, #tpu.memory_space<vmem>>, vector<1x32xf32>
    %26 = vector.broadcast %25 : vector<1x32xf32> to vector<8x32xf32>
    %27 = arith.addf %24, %26 : vector<8x32xf32>
    %c0_14 = arith.constant 0 : index
    %c0_15 = arith.constant 0 : index
    %28 = vector.load %arg6[%c0_14, %c0_15] : memref<8x32xf32, #tpu.memory_space<vmem>>, vector<8x32xf32>
    tpu.vector_store %arg6[%c0_14, %c0_15], %27 {strides = array<i32>} : memref<8x32xf32, #tpu.memory_space<vmem>>, vector<8x32xf32>,
    return
  }
  func.func @transform_0(%arg0: i32) -> (i32, i32) {
    %c0_i32 = arith.constant 0 : i32
    %c0_i32_0 = arith.constant 0 : i32
    return %arg0, %c0_i32 : i32, i32
  }
  func.func @transform_1(%arg0: i32) -> (i32, i32) {
    %c0_i32 = arith.constant 0 : i32
    %c0_i32_0 = arith.constant 0 : i32
    %c0_i32_1 = arith.constant 0 : i32
    return %c0_i32, %c0_i32_0 : i32, i32
  }
  func.func @transform_2(%arg0: i32) -> (i32, i32) {
    %c0_i32 = arith.constant 0 : i32
    %c0_i32_0 = arith.constant 0 : i32
    %c0_i32_1 = arith.constant 0 : i32
    return %c0_i32, %c0_i32_0 : i32, i32
  }
  func.func @transform_3(%arg0: i32) -> (i32, i32) {
    %c0_i32 = arith.constant 0 : i32
    %c0_i32_0 = arith.constant 0 : i32
    %c0_i32_1 = arith.constant 0 : i32
    return %c0_i32, %c0_i32_0 : i32, i32
  }
  func.func @transform_4(%arg0: i32) -> (i32, i32) {
    %c0_i32 = arith.constant 0 : i32
    %c0_i32_0 = arith.constant 0 : i32
    %c0_i32_1 = arith.constant 0 : i32
    return %c0_i32, %c0_i32_0 : i32, i32
  }
  func.func @transform_5(%arg0: i32) -> (i32, i32) {
    %c0_i32 = arith.constant 0 : i32
    %c0_i32_0 = arith.constant 0 : i32
    return %arg0, %c0_i32 : i32, i32
  }
}

module attributes {stable_mosaic.version = 11 : i64} {
  func.func @_ffn_kernel(%arg0: i32, %arg1: memref<8x32xf32, #tpu.memory_space<vmem>>, %arg2: memref<1x32xf32, #tpu.memory_space<vmem>>, %arg3: memref<1x32xf32, #tpu.memory_space<vmem>>, %arg4: memref<32x64xf32, #tpu.memory_space<vmem>>, %arg5: memref<1x64xf32, #tpu.memory_space<vmem>>, %arg6: memref<64x32xf32, #tpu.memory_space<vmem>>, %arg7: memref<1x32xf32, #tpu.memory_space<vmem>>, %arg8: memref<8x32xf32, #tpu.memory_space<vmem>>) attributes {dimension_semantics = [#tpu.dimension_semantics<parallel>], iteration_bounds = array<i64: 2>, scalar_prefetch = 0 : i64, scratch_operands = 0 : i64, tpu.core_type = #tpu.core_type<tc>, window_params = [{transform_indices = @transform_0, window_bounds = array<i64: 8, 32>}, {pipeline_mode = #tpu.pipeline_mode<synchronous>, transform_indices = @transform_1, window_bounds = array<i64: 1, 32>}, {pipeline_mode = #tpu.pipeline_mode<synchronous>, transform_indices = @transform_2, window_bounds = array<i64: 1, 32>}, {pipeline_mode = #tpu.pipeline_mode<synchronous>, transform_indices = @transform_3, window_bounds = array<i64: 32, 64>}, {pipeline_mode = #tpu.pipeline_mode<synchronous>, transform_indices = @transform_4, window_bounds = array<i64: 1, 64>}, {pipeline_mode = #tpu.pipeline_mode<synchronous>, transform_indices = @transform_5, window_bounds = array<i64: 64, 32>}, {pipeline_mode = #tpu.pipeline_mode<synchronous>, transform_indices = @transform_6, window_bounds = array<i64: 1, 32>}, {transform_indices = @transform_7, window_bounds = array<i64: 8, 32>}]} {
    %c0 = arith.constant 0 : index
    %c0_0 = arith.constant 0 : index
    %0 = vector.load %arg1[%c0, %c0_0] : memref<8x32xf32, #tpu.memory_space<vmem>>, vector<8x32xf32>
    %c0_1 = arith.constant 0 : index
    %c0_2 = arith.constant 0 : index
    %1 = vector.load %arg2[%c0_1, %c0_2] : memref<1x32xf32, #tpu.memory_space<vmem>>, vector<1x32xf32>
    %c0_3 = arith.constant 0 : index
    %c0_4 = arith.constant 0 : index
    %2 = vector.load %arg3[%c0_3, %c0_4] : memref<1x32xf32, #tpu.memory_space<vmem>>, vector<1x32xf32>
    %cst = arith.constant dense<0.000000e+00> : vector<8xf32>
    %3 = vector.multi_reduction <add>, %0, %cst [1] : vector<8x32xf32> to vector<8xf32>
    %4 = vector.shape_cast %3 : vector<8xf32> to vector<8x1xf32>
    %cst_5 = arith.constant 3.200000e+01 : f32
    %5 = vector.broadcast %cst_5 : f32 to vector<8x1xf32>
    %6 = arith.divf %4, %5 : vector<8x1xf32>
    %7 = vector.broadcast %6 : vector<8x1xf32> to vector<8x32xf32>
    %8 = arith.subf %0, %7 : vector<8x32xf32>
    %9 = arith.mulf %8, %8 : vector<8x32xf32>
    %cst_6 = arith.constant dense<0.000000e+00> : vector<8xf32>
    %10 = vector.multi_reduction <add>, %9, %cst_6 [1] : vector<8x32xf32> to vector<8xf32>
    %11 = vector.shape_cast %10 : vector<8xf32> to vector<8x1xf32>
    %cst_7 = arith.constant 0.0322580636 : f32
    %12 = vector.broadcast %cst_7 : f32 to vector<8x1xf32>
    %13 = arith.mulf %11, %12 : vector<8x1xf32>
    %14 = math.sqrt %13 : vector<8x1xf32>
    %15 = vector.broadcast %1 : vector<1x32xf32> to vector<8x32xf32>
    %16 = arith.mulf %15, %8 : vector<8x32xf32>
    %cst_8 = arith.constant 9.99999997E-7 : f32
    %17 = vector.broadcast %cst_8 : f32 to vector<8x1xf32>
    %18 = arith.addf %14, %17 : vector<8x1xf32>
    %19 = vector.broadcast %18 : vector<8x1xf32> to vector<8x32xf32>
    %20 = arith.divf %16, %19 : vector<8x32xf32>
    %21 = vector.broadcast %2 : vector<1x32xf32> to vector<8x32xf32>
    %22 = arith.addf %20, %21 : vector<8x32xf32>
    %c0_9 = arith.constant 0 : index
    %c0_10 = arith.constant 0 : index
    %23 = vector.load %arg4[%c0_9, %c0_10] : memref<32x64xf32, #tpu.memory_space<vmem>>, vector<32x64xf32>
    %cst_11 = arith.constant dense<0.000000e+00> : vector<8x64xf32>
    %24 = tpu.matmul %22, %23, %cst_11 {dimension_numbers = #tpu.dot_dimension_numbers<[1], [0], [0], [1], [0, 0, 1, 1], [], []>} : vector<8x32xf32>, vector<32x64xf32>, vector<8x64xf32> -> vector<8x64xf32>
    %c0_12 = arith.constant 0 : index
    %c0_13 = arith.constant 0 : index
    %25 = vector.load %arg5[%c0_12, %c0_13] : memref<1x64xf32, #tpu.memory_space<vmem>>, vector<1x64xf32>
    %26 = vector.broadcast %25 : vector<1x64xf32> to vector<8x64xf32>
    %27 = arith.addf %24, %26 : vector<8x64xf32>
    %cst_14 = arith.constant 0.000000e+00 : f32
    %28 = vector.broadcast %cst_14 : f32 to vector<8x64xf32>
    %29 = arith.maximumf %27, %28 : vector<8x64xf32>
    %c0_15 = arith.constant 0 : index
    %c0_16 = arith.constant 0 : index
    %30 = vector.load %arg6[%c0_15, %c0_16] : memref<64x32xf32, #tpu.memory_space<vmem>>, vector<64x32xf32>
    %cst_17 = arith.constant dense<0.000000e+00> : vector<8x32xf32>
    %31 = tpu.matmul %29, %30, %cst_17 {dimension_numbers = #tpu.dot_dimension_numbers<[1], [0], [0], [1], [0, 0, 1, 1], [], []>} : vector<8x64xf32>, vector<64x32xf32>, vector<8x32xf32> -> vector<8x32xf32>
    %c0_18 = arith.constant 0 : index
    %c0_19 = arith.constant 0 : index
    %32 = vector.load %arg7[%c0_18, %c0_19] : memref<1x32xf32, #tpu.memory_space<vmem>>, vector<1x32xf32>
    %33 = vector.broadcast %32 : vector<1x32xf32> to vector<8x32xf32>
    %34 = arith.addf %31, %33 : vector<8x32xf32>
    %35 = arith.addf %0, %34 : vector<8x32xf32>
    %c0_20 = arith.constant 0 : index
    %c0_21 = arith.constant 0 : index
    %36 = vector.load %arg8[%c0_20, %c0_21] : memref<8x32xf32, #tpu.memory_space<vmem>>, vector<8x32xf32>
    tpu.vector_store %arg8[%c0_20, %c0_21], %35 {strides = array<i32>} : memref<8x32xf32, #tpu.memory_space<vmem>>, vector<8x32xf32>,
    return
  }
  func.func @transform_0(%arg0: i32) -> (i32, i32) {
    %c0_i32 = arith.constant 0 : i32
    %c0_i32_0 = arith.constant 0 : i32
    return %arg0, %c0_i32 : i32, i32
  }
  func.func @transform_1(%arg0: i32) -> (i32, i32) {
    %c0_i32 = arith.constant 0 : i32
    %c0_i32_0 = arith.constant 0 : i32
    %c0_i32_1 = arith.constant 0 : i32
    return %c0_i32, %c0_i32_0 : i32, i32
  }
  func.func @transform_2(%arg0: i32) -> (i32, i32) {
    %c0_i32 = arith.constant 0 : i32
    %c0_i32_0 = arith.constant 0 : i32
    %c0_i32_1 = arith.constant 0 : i32
    return %c0_i32, %c0_i32_0 : i32, i32
  }
  func.func @transform_3(%arg0: i32) -> (i32, i32) {
    %c0_i32 = arith.constant 0 : i32
    %c0_i32_0 = arith.constant 0 : i32
    %c0_i32_1 = arith.constant 0 : i32
    return %c0_i32, %c0_i32_0 : i32, i32
  }
  func.func @transform_4(%arg0: i32) -> (i32, i32) {
    %c0_i32 = arith.constant 0 : i32
    %c0_i32_0 = arith.constant 0 : i32
    %c0_i32_1 = arith.constant 0 : i32
    return %c0_i32, %c0_i32_0 : i32, i32
  }
  func.func @transform_5(%arg0: i32) -> (i32, i32) {
    %c0_i32 = arith.constant 0 : i32
    %c0_i32_0 = arith.constant 0 : i32
    %c0_i32_1 = arith.constant 0 : i32
    return %c0_i32, %c0_i32_0 : i32, i32
  }
  func.func @transform_6(%arg0: i32) -> (i32, i32) {
    %c0_i32 = arith.constant 0 : i32
    %c0_i32_0 = arith.constant 0 : i32
    %c0_i32_1 = arith.constant 0 : i32
    return %c0_i32, %c0_i32_0 : i32, i32
  }
  func.func @transform_7(%arg0: i32) -> (i32, i32) {
    %c0_i32 = arith.constant 0 : i32
    %c0_i32_0 = arith.constant 0 : i32
    return %arg0, %c0_i32 : i32, i32
  }
}

module attributes {stable_mosaic.version = 11 : i64} {
  func.func @_layernorm_kernel(%arg0: i32, %arg1: memref<8x32xf32, #tpu.memory_space<vmem>>, %arg2: memref<1x32xf32, #tpu.memory_space<vmem>>, %arg3: memref<1x32xf32, #tpu.memory_space<vmem>>, %arg4: memref<8x32xf32, #tpu.memory_space<vmem>>) attributes {dimension_semantics = [#tpu.dimension_semantics<parallel>], iteration_bounds = array<i64: 2>, scalar_prefetch = 0 : i64, scratch_operands = 0 : i64, tpu.core_type = #tpu.core_type<tc>, window_params = [{transform_indices = @transform_0, window_bounds = array<i64: 8, 32>}, {pipeline_mode = #tpu.pipeline_mode<synchronous>, transform_indices = @transform_1, window_bounds = array<i64: 1, 32>}, {pipeline_mode = #tpu.pipeline_mode<synchronous>, transform_indices = @transform_2, window_bounds = array<i64: 1, 32>}, {transform_indices = @transform_3, window_bounds = array<i64: 8, 32>}]} {
    %c0 = arith.constant 0 : index
    %c0_0 = arith.constant 0 : index
    %0 = vector.load %arg1[%c0, %c0_0] : memref<8x32xf32, #tpu.memory_space<vmem>>, vector<8x32xf32>
    %c0_1 = arith.constant 0 : index
    %c0_2 = arith.constant 0 : index
    %1 = vector.load %arg2[%c0_1, %c0_2] : memref<1x32xf32, #tpu.memory_space<vmem>>, vector<1x32xf32>
    %c0_3 = arith.constant 0 : index
    %c0_4 = arith.constant 0 : index
    %2 = vector.load %arg3[%c0_3, %c0_4] : memref<1x32xf32, #tpu.memory_space<vmem>>, vector<1x32xf32>
    %cst = arith.constant dense<0.000000e+00> : vector<8xf32>
    %3 = vector.multi_reduction <add>, %0, %cst [1] : vector<8x32xf32> to vector<8xf32>
    %4 = vector.shape_cast %3 : vector<8xf32> to vector<8x1xf32>
    %cst_5 = arith.constant 3.200000e+01 : f32
    %5 = vector.broadcast %cst_5 : f32 to vector<8x1xf32>
    %6 = arith.divf %4, %5 : vector<8x1xf32>
    %7 = vector.broadcast %6 : vector<8x1xf32> to vector<8x32xf32>
    %8 = arith.subf %0, %7 : vector<8x32xf32>
    %9 = arith.mulf %8, %8 : vector<8x32xf32>
    %cst_6 = arith.constant dense<0.000000e+00> : vector<8xf32>
    %10 = vector.multi_reduction <add>, %9, %cst_6 [1] : vector<8x32xf32> to vector<8xf32>
    %11 = vector.shape_cast %10 : vector<8xf32> to vector<8x1xf32>
    %cst_7 = arith.constant 0.0322580636 : f32
    %12 = vector.broadcast %cst_7 : f32 to vector<8x1xf32>
    %13 = arith.mulf %11, %12 : vector<8x1xf32>
    %14 = math.sqrt %13 : vector<8x1xf32>
    %15 = vector.broadcast %1 : vector<1x32xf32> to vector<8x32xf32>
    %16 = arith.mulf %15, %8 : vector<8x32xf32>
    %cst_8 = arith.constant 9.99999997E-7 : f32
    %17 = vector.broadcast %cst_8 : f32 to vector<8x1xf32>
    %18 = arith.addf %14, %17 : vector<8x1xf32>
    %19 = vector.broadcast %18 : vector<8x1xf32> to vector<8x32xf32>
    %20 = arith.divf %16, %19 : vector<8x32xf32>
    %21 = vector.broadcast %2 : vector<1x32xf32> to vector<8x32xf32>
    %22 = arith.addf %20, %21 : vector<8x32xf32>
    %c0_9 = arith.constant 0 : index
    %c0_10 = arith.constant 0 : index
    %23 = vector.load %arg4[%c0_9, %c0_10] : memref<8x32xf32, #tpu.memory_space<vmem>>, vector<8x32xf32>
    tpu.vector_store %arg4[%c0_9, %c0_10], %22 {strides = array<i32>} : memref<8x32xf32, #tpu.memory_space<vmem>>, vector<8x32xf32>,
    return
  }
  func.func @transform_0(%arg0: i32) -> (i32, i32) {
    %c0_i32 = arith.constant 0 : i32
    %c0_i32_0 = arith.constant 0 : i32
    return %arg0, %c0_i32 : i32, i32
  }
  func.func @transform_1(%arg0: i32) -> (i32, i32) {
    %c0_i32 = arith.constant 0 : i32
    %c0_i32_0 = arith.constant 0 : i32
    %c0_i32_1 = arith.constant 0 : i32
    return %c0_i32, %c0_i32_0 : i32, i32
  }
  func.func @transform_2(%arg0: i32) -> (i32, i32) {
    %c0_i32 = arith.constant 0 : i32
    %c0_i32_0 = arith.constant 0 : i32
    %c0_i32_1 = arith.constant 0 : i32
    return %c0_i32, %c0_i32_0 : i32, i32
  }
  func.func @transform_3(%arg0: i32) -> (i32, i32) {
    %c0_i32 = arith.constant 0 : i32
    %c0_i32_0 = arith.constant 0 : i32
    return %arg0, %c0_i32 : i32, i32
  }
}

</mosaic_0001>

<llo_original>
// kernel: decoder_forward.19
$region0: #{decoder_forward.19}
  #allocation0 [shape = 'u32[]', space=smem, size = 0x4, offset = 0x4, fixed_abs, tag = 'smem constant byte address 0x4 - core index']
  #allocation1 [shape = 'u32[144,128]{1,0:T(1,128)}', space=vmem, size = 0x12000, scoped, tag = 'internal scratch']
  %s0 = inlined_call_operand.vmem [shape: f32[16,32], index: 0, kind: input, shape index: {}]
  %s1 = inlined_call_operand.vmem [shape: f32[16,32], index: 1, kind: input, shape index: {}]
  %s2 = inlined_call_operand.vmem [shape: f32[32,32], index: 2, kind: input, shape index: {}]
  %s3 = inlined_call_operand.vmem [shape: f32[1,32], index: 3, kind: input, shape index: {}]
  %s4 = inlined_call_operand.vmem [shape: f32[16,32], index: 4, kind: output, shape index: {}]
  %s5 = sld [smem:[#allocation0]]
  $region49: #{decoder_forward.19} parent=0
    _
  %s7 = ssub.s32 1, %s5
  %s8 = scalar_select 0, %s7, %s5
  loop: start=0, step=1, limit=4
  $region2: #{decoder_forward.19} parent=0 // loop_pre_header
    _
  $region3: #{decoder_forward.19} parent=0 // loop_header
    %s10 = sphi 0, %s14
    %p11 = scmp.ge.s32.totalorder %s10, 4
    %s20 = sphi 0, %s22
    %s23 = sphi 0, %s20
    %s24 = sphi 0, %s23
    %s40 = sphi 0, %s24
    %s46 = sphi 0, %s48
    %s49 = sphi 0, %s46
    %s50 = sphi 0, %s49
    %s66 = sphi 0, %s50
    %s70 = sphi 0, %s70
    %s72 = sphi 0, %s70
    %s73 = sphi 0, %s72
    %s87 = sphi 0, %s73
    %s91 = sphi 0, %s91
    %s93 = sphi 0, %s91
    %s94 = sphi 0, %s93
    %s108 = sphi 0, %s94
    %s114 = sphi 0, %s116
    %s117 = sphi 0, %s114
    %s118 = sphi 0, %s117
    %s134 = sphi 0, %s118
  $region4: #{decoder_forward.19} parent=0 // loop_header_branch
    %13 = sbr.rel (%p11) target = $region8
  $region5: #{decoder_forward.19} parent=0 // loop_body
    %s15 = ssub.s32 %s10, 1
    %s16 = ssub.s32 %s10, 2
    %s17 = sadd.s32 %s10, 1
    %s18 = ssub.s32 %s10, %s17
    %p19 = scmp.eq.s32.totalorder %s18, 0
    %s21 = sadd.s32 %s20, 1
    %s22 = scalar_select %p19, %s20, %s21
    %p25 = pneg %p19
    %p26 = scmp.eq.s32.totalorder %s10, 1
    %p27 = por %p25, %p26
    %p28 = scmp.ne.s32.totalorder %s20, %s23
    %p29 = scmp.eq.s32.totalorder %s10, 0
    %p30 = por %p28, %p29
    %p31 = scmp.ne.s32.totalorder %s20, %s23
    %p32 = scmp.eq.s32.totalorder %s15, 1
    %p33 = por %p31, %p32
    %p34 = scmp.ne.s32.totalorder %s23, %s24
    %p35 = scmp.eq.s32.totalorder %s15, 0
    %p36 = por %p34, %p35
    %p37 = scmp.ne.s32.totalorder %s23, %s24
    %p38 = scmp.eq.s32.totalorder %s16, 1
    %p39 = por %p37, %p38
    %p41 = scmp.ne.s32.totalorder %s24, %s40
    %p42 = scmp.eq.s32.totalorder %s16, 0
    %p43 = por %p41, %p42
    %s44 = ssub.s32 %s10, %s17
    %p45 = scmp.eq.s32.totalorder %s44, 0
    %s47 = sadd.s32 %s46, 1
    %s48 = scalar_select %p45, %s46, %s47
    %p51 = pneg %p45
    %p52 = scmp.eq.s32.totalorder %s10, 1
    %p53 = por %p51, %p52
    %p54 = scmp.ne.s32.totalorder %s46, %s49
    %p55 = scmp.eq.s32.totalorder %s10, 0
    %p56 = por %p54, %p55
    %p57 = scmp.ne.s32.totalorder %s46, %s49
    %p58 = scmp.eq.s32.totalorder %s15, 1
    %p59 = por %p57, %p58
    %p60 = scmp.ne.s32.totalorder %s49, %s50
    %p61 = scmp.eq.s32.totalorder %s15, 0
    %p62 = por %p60, %p61
    %p63 = scmp.ne.s32.totalorder %s49, %s50
    %p64 = scmp.eq.s32.totalorder %s16, 1
    %p65 = por %p63, %p64
    %p67 = scmp.ne.s32.totalorder %s50, %s66
    %p68 = scmp.eq.s32.totalorder %s16, 0
    %p69 = por %p67, %p68
    %s71 = sadd.s32 %s70, 1
    %p74 = scmp.eq.s32.totalorder %s10, 1
    %p75 = scmp.ne.s32.totalorder %s70, %s72
    %p76 = scmp.eq.s32.totalorder %s10, 0
    %p77 = por %p75, %p76
    %p78 = scmp.ne.s32.totalorder %s70, %s72
    %p79 = scmp.eq.s32.totalorder %s15, 1
    %p80 = por %p78, %p79
    %p81 = scmp.ne.s32.totalorder %s72, %s73
    %p82 = scmp.eq.s32.totalorder %s15, 0
    %p83 = por %p81, %p82
    %p84 = scmp.ne.s32.totalorder %s72, %s73
    %p85 = scmp.eq.s32.totalorder %s16, 1
    %p86 = por %p84, %p85
    %p88 = scmp.ne.s32.totalorder %s73, %s87
    %p89 = scmp.eq.s32.totalorder %s16, 0
    %p90 = por %p88, %p89
    %s92 = sadd.s32 %s91, 1
    %p95 = scmp.eq.s32.totalorder %s10, 1
    %p96 = scmp.ne.s32.totalorder %s91, %s93
    %p97 = scmp.eq.s32.totalorder %s10, 0
    %p98 = por %p96, %p97
    %p99 = scmp.ne.s32.totalorder %s91, %s93
    %p100 = scmp.eq.s32.totalorder %s15, 1
    %p101 = por %p99, %p100
    %p102 = scmp.ne.s32.totalorder %s93, %s94
    %p103 = scmp.eq.s32.totalorder %s15, 0
    %p104 = por %p102, %p103
    %p105 = scmp.ne.s32.totalorder %s93, %s94
    %p106 = scmp.eq.s32.totalorder %s16, 1
    %p107 = por %p105, %p106
    %p109 = scmp.ne.s32.totalorder %s94, %s108
    %p110 = scmp.eq.s32.totalorder %s16, 0
    %p111 = por %p109, %p110
    %s112 = ssub.s32 %s10, %s17
    %p113 = scmp.eq.s32.totalorder %s112, 0
    %s115 = sadd.s32 %s114, 1
    %s116 = scalar_select %p113, %s114, %s115
    %p119 = pneg %p113
    %p120 = scmp.eq.s32.totalorder %s10, 1
    %p121 = por %p119, %p120
    %p122 = scmp.ne.s32.totalorder %s114, %s117
    %p123 = scmp.eq.s32.totalorder %s10, 0
    %p124 = por %p122, %p123
    %p125 = scmp.ne.s32.totalorder %s114, %s117
    %p126 = scmp.eq.s32.totalorder %s15, 1
    %p127 = por %p125, %p126
    %p128 = scmp.ne.s32.totalorder %s117, %s118
    %p129 = scmp.eq.s32.totalorder %s15, 0
    %p130 = por %p128, %p129
    %p131 = scmp.ne.s32.totalorder %s117, %s118
    %p132 = scmp.eq.s32.totalorder %s16, 1
    %p133 = por %p131, %p132
    %p135 = scmp.ne.s32.totalorder %s118, %s134
    %p136 = scmp.eq.s32.totalorder %s16, 0
    %p137 = por %p135, %p136
    %p138 = scmp.le.s32.totalorder 1, %s10
    %p139 = scmp.lt.s32.totalorder %s10, 3
    %p140 = pnand %p138, %p139
    %p141 = pneg %p140
    // Predicated region
    $region9: #{decoder_forward.19} parent=5 // pred_check
      _
    $region10: #{decoder_forward.19} parent=5 // pred_check_branch
      %143 = sbr.rel (%p140) target = $region12
    $region11: #{decoder_forward.19} parent=5 // pred_region
      %s144 = ssub.s32 %s10, 1
      // Predicated region
      $region13: #{decoder_forward.19} parent=11 // pred_check
        %p145 = pneg %p83
      $region14: #{decoder_forward.19} parent=11 // pred_check_branch
        %147 = sbr.rel (%p145) target = $region16
      $region15: #{decoder_forward.19} parent=11 // pred_region
        _
      $region16: #{decoder_forward.19} parent=11 // pred_fallthru
        _
      // Predicated region
      $region17: #{decoder_forward.19} parent=11 // pred_check
        %p148 = pneg %p104
      $region18: #{decoder_forward.19} parent=11 // pred_check_branch
        %150 = sbr.rel (%p148) target = $region20
      $region19: #{decoder_forward.19} parent=11 // pred_region
        _
      $region20: #{decoder_forward.19} parent=11 // pred_fallthru
        _
    $region12: #{decoder_forward.19} parent=5 // pred_fallthru
      _
    %p151 = scmp.lt.s32.totalorder %s10, 2
    // Predicated region
    $region21: #{decoder_forward.19} parent=5 // pred_check
      %p152 = pneg %p151
    $region22: #{decoder_forward.19} parent=5 // pred_check_branch
      %154 = sbr.rel (%p152) target = $region24
    $region23: #{decoder_forward.19} parent=5 // pred_region
      // Predicated region
      $region25: #{decoder_forward.19} parent=23 // pred_check
        %p155 = pneg %p30
      $region26: #{decoder_forward.19} parent=23 // pred_check_branch
        %157 = sbr.rel (%p155) target = $region28
      $region27: #{decoder_forward.19} parent=23 // pred_region
        %p158 = scmp.lt.s32.totalorder %s10, 1
        %s159 = scalar_select %p158, %s10, 1
        %s160 = smul.addr %s159, 8
        %s161 = scalar_lea.vmem %s0, %s160
      $region28: #{decoder_forward.19} parent=23 // pred_fallthru
        _
      // Predicated region
      $region29: #{decoder_forward.19} parent=23 // pred_check
        %p162 = pneg %p56
      $region30: #{decoder_forward.19} parent=23 // pred_check_branch
        %164 = sbr.rel (%p162) target = $region32
      $region31: #{decoder_forward.19} parent=23 // pred_region
        %p165 = scmp.lt.s32.totalorder %s10, 1
        %s166 = scalar_select %p165, %s10, 1
        %s167 = smul.addr %s166, 8
        %s168 = scalar_lea.vmem %s1, %s167
      $region32: #{decoder_forward.19} parent=23 // pred_fallthru
        _
    $region24: #{decoder_forward.19} parent=5 // pred_fallthru
      _
    %p169 = scmp.le.s32.totalorder 1, %s10
    %p170 = scmp.lt.s32.totalorder %s10, 3
    %p171 = pnand %p169, %p170
    %p172 = pneg %p171
    // Predicated region
    $region33: #{decoder_forward.19} parent=5 // pred_check
      _
    $region34: #{decoder_forward.19} parent=5 // pred_check_branch
      %174 = sbr.rel (%p171) target = $region36
    $region35: #{decoder_forward.19} parent=5 // pred_region
      %s175 = ssub.s32 %s10, 1
      %p176 = scmp.lt.s32.totalorder %s15, 1
      %s177 = scalar_select %p176, %s15, 1
      %s178 = smul.addr %s177, 8
      %s179 = scalar_lea.vmem %s0, %s178
      %p180 = pneg %p36
      %p181 = pneg %p33
      %p182 = scmp.lt.s32.totalorder %s15, 1
      %s183 = scalar_select %p182, %s15, 1
      %s184 = smul.addr %s183, 8
      %s185 = scalar_lea.vmem %s1, %s184
      %p186 = pneg %p62
      %p187 = pneg %p59
      %p188 = pneg %p83
      %p189 = pneg %p80
      %p190 = pneg %p104
      %p191 = pneg %p101
      %p192 = pneg %p130
      %p193 = pneg %p127
      %p194 = scmp.lt.s32.totalorder %s15, 1
      %s195 = scalar_select %p194, %s15, 1
      %s196 = smul.addr %s195, 8
      %s197 = scalar_lea.vmem %s4, %s196
      %p198 = scmp.lt.s32.totalorder %s15, 1
      %s199 = scalar_select %p198, %s15, 1
      %s200 = smul.addr %s199, 8
      %s201 = scalar_lea.vmem %s0, %s200
      %p202 = scmp.lt.s32.totalorder %s15, 1
      %s203 = scalar_select %p202, %s15, 1
      %s204 = smul.addr %s203, 8
      %s205 = scalar_lea.vmem %s1, %s204
      %p206 = scmp.lt.s32.totalorder %s15, 1
      %s207 = scalar_select %p206, %s15, 1
      %s208 = smul.addr %s207, 8
      %s209 = scalar_lea.vmem %s4, %s208
      %v210 = vld [vmem:[%s201] sm:$0xff]
      %v211 = vld [vmem:[%s2] sm:$0xff]
      %v212 = vld [vmem:[%s2 + $0x8] sm:$0xff]
      %v213 = vld [vmem:[%s2 + $0x10] sm:$0xff]
      %v214 = vld [vmem:[%s2 + $0x18] sm:$0xff]
      %v215 = vld [vmem:[%s3] sm:$0x1]
      %v217 = vlaneseq
      %v218 = vshrl.u32 %v217, 7
      %v219 = vsub.s32 0, %v218
      %v220 = vrot.slane %v215, %v219
      %vm222 = vcmask 261120
      %v224 = vsel %vm222, %v210, 0
      %226 = vmatprep.subr.mxu0 0.0
      %227 = vmatpush1.msra.mxu0 %v211
      %228 = vmatprep.subr.mxu0 0.0
      %229 = vmatpush1.msra.mxu0 %v212
      %230 = vmatprep.subr.mxu0 0.0
      %231 = vmatpush1.msra.mxu0 %v213
      %232 = vmatprep.subr.mxu0 0.0
      %233 = vmatpush1.msra.mxu0 %v214
      %234 = vmatprep.subr.mxu0 0.0
      %235 = vmatpush1.msra.mxu0 0.0
      %236 = vmatprep.subr.mxu0 0.0
      %237 = vmatpush1.msra.mxu0 0.0
      %238 = vmatprep.subr.mxu0 0.0
      %239 = vmatpush1.msra.mxu0 0.0
      %240 = vmatprep.subr.mxu0 0.0
      %241 = vmatpush1.msra.mxu0 0.0
      %242 = vmatprep.subr.mxu0 0.0
      %243 = vmatpush1.msra.mxu0 0.0
      %244 = vmatprep.subr.mxu0 0.0
      %245 = vmatpush1.msra.mxu0 0.0
      %246 = vmatprep.subr.mxu0 0.0
      %247 = vmatpush1.msra.mxu0 0.0
      %248 = vmatprep.subr.mxu0 0.0
      %249 = vmatpush1.msra.mxu0 0.0
      %250 = vmatprep.subr.mxu0 0.0
      %251 = vmatpush1.msra.mxu0 0.0
      %252 = vmatprep.subr.mxu0 0.0
      %253 = vmatpush1.msra.mxu0 0.0
      %254 = vmatprep.subr.mxu0 0.0
      %255 = vmatpush1.msra.mxu0 0.0
      %256 = vmatprep.subr.mxu0 0.0
      %257 = vmatpush1.msra.mxu0 0.0
      %258 = vmatprep.subr.mxu0 0.0
      %259 = vmatpush1.msra.mxu0 0.0
      %260 = vmatprep.subr.mxu0 0.0
      %261 = vmatpush1.msra.mxu0 0.0
      %262 = vmatprep.subr.mxu0 0.0
      %263 = vmatpush1.msra.mxu0 0.0
      %264 = vmatprep.subr.mxu0 0.0
      %265 = vmatpush1.msra.mxu0 0.0
      %266 = vmatprep.subr.mxu0 0.0
      %267 = vmatpush1.msra.mxu0 0.0
      %268 = vmatprep.subr.mxu0 0.0
      %269 = vmatpush1.msra.mxu0 0.0
      %270 = vmatprep.subr.mxu0 0.0
      %271 = vmatpush1.msra.mxu0 0.0
      %272 = vmatprep.subr.mxu0 0.0
      %273 = vmatpush1.msra.mxu0 0.0
      %274 = vmatprep.subr.mxu0 0.0
      %275 = vmatpush1.msra.mxu0 0.0
      %276 = vmatprep.subr.mxu0 0.0
      %277 = vmatpush1.msra.mxu0 0.0
      %278 = vmatprep.subr.mxu0 0.0
      %279 = vmatpush1.msra.mxu0 0.0
      %280 = vmatprep.subr.mxu0 0.0
      %281 = vmatpush1.msra.mxu0 0.0
      %282 = vmatprep.subr.mxu0 0.0
      %283 = vmatpush1.msra.mxu0 0.0
      %284 = vmatprep.subr.mxu0 0.0
      %285 = vmatpush1.msra.mxu0 0.0
      %286 = vmatprep.subr.mxu0 0.0
      %287 = vmatpush1.msra.mxu0 0.0
      %288 = vmatprep.subr.mxu0 0.0
      %289 = vmatpush1.msra.mxu0 0.0
      %290 = vmatprep.mubr.f32.mxu0 0.0
      %291 = vmatmul.mubr.f32.gmra.mrb[0].mxu0 %v224
      %v292 = vpop.f32.mrb[0].mxu0
      %v293 = vadd.f32 %v220, %v292
      %v294 = vpop.f32.mrb[0].mxu0
      %295 = vdwg.mxu0
      %v296 = vld [vmem:[%s205] sm:$0xff]
      %v297 = vadd.f32 %v296, %v293
      %298 = vst.msk [vmem:[%s209] sm:$0xff] %vm222, %v297
      %p299 = scmp.lt.s32.totalorder %s15, 1
      %s300 = scalar_select %p299, %s15, 1
      %s301 = smul.addr %s300, 8
      %s302 = scalar_lea.vmem %s4, %s301
      // Predicated region
      $region37: #{decoder_forward.19} parent=35 // pred_check
        %p303 = pneg %p127
      $region38: #{decoder_forward.19} parent=35 // pred_check_branch
        %305 = sbr.rel (%p303) target = $region40
      $region39: #{decoder_forward.19} parent=35 // pred_region
        _
      $region40: #{decoder_forward.19} parent=35 // pred_fallthru
        _
    $region36: #{decoder_forward.19} parent=5 // pred_fallthru
      _
    %p306 = scmp.le.s32.totalorder 2, %s10
    // Predicated region
    $region41: #{decoder_forward.19} parent=5 // pred_check
      %p307 = pneg %p306
    $region42: #{decoder_forward.19} parent=5 // pred_check_branch
      %309 = sbr.rel (%p307) target = $region44
    $region43: #{decoder_forward.19} parent=5 // pred_region
      %s310 = ssub.s32 %s10, 2
      // Predicated region
      $region45: #{decoder_forward.19} parent=43 // pred_check
        %p311 = pneg %p133
      $region46: #{decoder_forward.19} parent=43 // pred_check_branch
        %313 = sbr.rel (%p311) target = $region48
      $region47: #{decoder_forward.19} parent=43 // pred_region
        %p314 = scmp.lt.s32.totalorder %s16, 1
        %s315 = scalar_select %p314, %s16, 1
        %s316 = smul.addr %s315, 8
        %s317 = scalar_lea.vmem %s4, %s316
      $region48: #{decoder_forward.19} parent=43 // pred_fallthru
        _
    $region44: #{decoder_forward.19} parent=5 // pred_fallthru
      _
  $region6: #{decoder_forward.19} parent=0 // loop_footer
    %s14 = sadd.s32 1, %s10
  $region7: #{decoder_forward.19} parent=0 // loop_footer_branch
    %9 = sbr.rel target = $region3
  $region8: #{decoder_forward.19} parent=0 // loop_exit
    _

// kernel: decoder_forward.16
$region0: #{decoder_forward.16}
  #allocation0 [shape = 'u32[]', space=smem, size = 0x4, offset = 0x4, fixed_abs, tag = 'smem constant byte address 0x4 - core index']
  #allocation1 [shape = 'u32[144,128]{1,0:T(1,128)}', space=vmem, size = 0x12000, scoped, tag = 'internal scratch']
  %s0 = inlined_call_operand.hbm [shape: f32[16,32], index: 0, kind: input, shape index: {}]
  %s1 = inlined_call_operand.hbm [shape: f32[32,64], index: 1, kind: input, shape index: {}]
  %s2 = inlined_call_operand.vmem [shape: f32[1,64], index: 2, kind: input, shape index: {}]
  %s3 = inlined_call_operand.vmem [shape: f32[16,64], index: 3, kind: output, shape index: {}]
  %s4 = sld [smem:[#allocation0]]
  $region53: #{decoder_forward.16} parent=0
    _
  %s6 = ssub.s32 1, %s4
  %s7 = scalar_select 0, %s6, %s4
  $region1: #{decoder_forward.16} parent=0
    #allocation2 [shape = 'u8[8192]{0}', space=vmem, size = 0x2000, scoped, tag = 'input window, operand 0']
    #allocation3 [shape = 's32[2]{0}', space=sflag, size = 0x8, scoped, tag = 'scoped memory for decoder_forward.16']
    #allocation4 [shape = 'u8[16384]{0}', space=vmem, size = 0x4000, scoped, tag = 'input window, operand 1, single buffered']
    #allocation5 [shape = 's32[1]{0}', space=sflag, size = 0x4, scoped, tag = 'scoped memory for decoder_forward.16']
    %8 = vsyncpa [#allocation3], 0
    %s9 = scalar_lea.sflag [#allocation3], 1
    %10 = vsyncpa %s9, 0
    %11 = vsyncpa [#allocation5], 0
    loop: start=0, step=1, limit=4
    $region2: #{decoder_forward.16} parent=1 // loop_pre_header
      _
    $region3: #{decoder_forward.16} parent=1 // loop_header
      %s13 = sphi 0, %s17
      %p14 = scmp.ge.s32.totalorder %s13, 4
      %s23 = sphi 0, %s25
      %s26 = sphi 0, %s23
      %s27 = sphi 0, %s26
      %s43 = sphi 0, %s27
      %s47 = sphi 0, %s47
      %s49 = sphi 0, %s47
      %s50 = sphi 0, %s49
      %s64 = sphi 0, %s50
      %s68 = sphi 0, %s68
      %s70 = sphi 0, %s68
      %s71 = sphi 0, %s70
      %s85 = sphi 0, %s71
      %s91 = sphi 0, %s93
      %s94 = sphi 0, %s91
      %s95 = sphi 0, %s94
      %s111 = sphi 0, %s95
    $region4: #{decoder_forward.16} parent=1 // loop_header_branch
      %16 = sbr.rel (%p14) target = $region8
    $region5: #{decoder_forward.16} parent=1 // loop_body
      %s18 = ssub.s32 %s13, 1
      %s19 = ssub.s32 %s13, 2
      %s20 = sadd.s32 %s13, 1
      %s21 = ssub.s32 %s13, %s20
      %p22 = scmp.eq.s32.totalorder %s21, 0
      %s24 = sadd.s32 %s23, 1
      %s25 = scalar_select %p22, %s23, %s24
      %p28 = pneg %p22
      %p29 = scmp.eq.s32.totalorder %s13, 1
      %p30 = por %p28, %p29
      %p31 = scmp.ne.s32.totalorder %s23, %s26
      %p32 = scmp.eq.s32.totalorder %s13, 0
      %p33 = por %p31, %p32
      %p34 = scmp.ne.s32.totalorder %s23, %s26
      %p35 = scmp.eq.s32.totalorder %s18, 1
      %p36 = por %p34, %p35
      %p37 = scmp.ne.s32.totalorder %s26, %s27
      %p38 = scmp.eq.s32.totalorder %s18, 0
      %p39 = por %p37, %p38
      %p40 = scmp.ne.s32.totalorder %s26, %s27
      %p41 = scmp.eq.s32.totalorder %s19, 1
      %p42 = por %p40, %p41
      %p44 = scmp.ne.s32.totalorder %s27, %s43
      %p45 = scmp.eq.s32.totalorder %s19, 0
      %p46 = por %p44, %p45
      %s48 = sadd.s32 %s47, 1
      %p51 = scmp.eq.s32.totalorder %s13, 1
      %p52 = scmp.ne.s32.totalorder %s47, %s49
      %p53 = scmp.eq.s32.totalorder %s13, 0
      %p54 = por %p52, %p53
      %p55 = scmp.ne.s32.totalorder %s47, %s49
      %p56 = scmp.eq.s32.totalorder %s18, 1
      %p57 = por %p55, %p56
      %p58 = scmp.ne.s32.totalorder %s49, %s50
      %p59 = scmp.eq.s32.totalorder %s18, 0
      %p60 = por %p58, %p59
      %p61 = scmp.ne.s32.totalorder %s49, %s50
      %p62 = scmp.eq.s32.totalorder %s19, 1
      %p63 = por %p61, %p62
      %p65 = scmp.ne.s32.totalorder %s50, %s64
      %p66 = scmp.eq.s32.totalorder %s19, 0
      %p67 = por %p65, %p66
      %s69 = sadd.s32 %s68, 1
      %p72 = scmp.eq.s32.totalorder %s13, 1
      %p73 = scmp.ne.s32.totalorder %s68, %s70
      %p74 = scmp.eq.s32.totalorder %s13, 0
      %p75 = por %p73, %p74
      %p76 = scmp.ne.s32.totalorder %s68, %s70
      %p77 = scmp.eq.s32.totalorder %s18, 1
      %p78 = por %p76, %p77
      %p79 = scmp.ne.s32.totalorder %s70, %s71
      %p80 = scmp.eq.s32.totalorder %s18, 0
      %p81 = por %p79, %p80
      %p82 = scmp.ne.s32.totalorder %s70, %s71
      %p83 = scmp.eq.s32.totalorder %s19, 1
      %p84 = por %p82, %p83
      %p86 = scmp.ne.s32.totalorder %s71, %s85
      %p87 = scmp.eq.s32.totalorder %s19, 0
      %p88 = por %p86, %p87
      %s89 = ssub.s32 %s13, %s20
      %p90 = scmp.eq.s32.totalorder %s89, 0
      %s92 = sadd.s32 %s91, 1
      %s93 = scalar_select %p90, %s91, %s92
      %p96 = pneg %p90
      %p97 = scmp.eq.s32.totalorder %s13, 1
      %p98 = por %p96, %p97
      %p99 = scmp.ne.s32.totalorder %s91, %s94
      %p100 = scmp.eq.s32.totalorder %s13, 0
      %p101 = por %p99, %p100
      %p102 = scmp.ne.s32.totalorder %s91, %s94
      %p103 = scmp.eq.s32.totalorder %s18, 1
      %p104 = por %p102, %p103
      %p105 = scmp.ne.s32.totalorder %s94, %s95
      %p106 = scmp.eq.s32.totalorder %s18, 0
      %p107 = por %p105, %p106
      %p108 = scmp.ne.s32.totalorder %s94, %s95
      %p109 = scmp.eq.s32.totalorder %s19, 1
      %p110 = por %p108, %p109
      %p112 = scmp.ne.s32.totalorder %s95, %s111
      %p113 = scmp.eq.s32.totalorder %s19, 0
      %p114 = por %p112, %p113
      %p115 = scmp.le.s32.totalorder 1, %s13
      %p116 = scmp.lt.s32.totalorder %s13, 3
      %p117 = pnand %p115, %p116
      %p118 = pneg %p117
      // Predicated region
      $region9: #{decoder_forward.16} parent=5 // pred_check
        _
      $region10: #{decoder_forward.16} parent=5 // pred_check_branch
        %120 = sbr.rel (%p117) target = $region12
      $region11: #{decoder_forward.16} parent=5 // pred_region
        %s121 = ssub.s32 %s13, 1
        // Predicated region
        $region13: #{decoder_forward.16} parent=11 // pred_check
          %p122 = pneg %p60
        $region14: #{decoder_forward.16} parent=11 // pred_check_branch
          %124 = sbr.rel (%p122) target = $region16
        $region15: #{decoder_forward.16} parent=11 // pred_region
          %s126 = ssub.s32 512, 512
          %127 = vsyncadd [#allocation5], %s126
          %s128 = sshll.u32 [#allocation4], 4
          %s129 = int_to_ptr.vmem [resolvable:$true] %s128
          %134 = dma.hbm_to_vmem [thread:$0]  %s1, 512, %s129, [#allocation5], 128, 128, 8
        $region16: #{decoder_forward.16} parent=11 // pred_fallthru
          _
        // Predicated region
        $region17: #{decoder_forward.16} parent=11 // pred_check
          %p135 = pneg %p81
        $region18: #{decoder_forward.16} parent=11 // pred_check_branch
          %137 = sbr.rel (%p135) target = $region20
        $region19: #{decoder_forward.16} parent=11 // pred_region
          _
        $region20: #{decoder_forward.16} parent=11 // pred_fallthru
          _
      $region12: #{decoder_forward.16} parent=5 // pred_fallthru
        _
      %p138 = scmp.lt.s32.totalorder %s13, 2
      // Predicated region
      $region21: #{decoder_forward.16} parent=5 // pred_check
        %p139 = pneg %p138
      $region22: #{decoder_forward.16} parent=5 // pred_check_branch
        %141 = sbr.rel (%p139) target = $region24
      $region23: #{decoder_forward.16} parent=5 // pred_region
        // Predicated region
        $region25: #{decoder_forward.16} parent=23 // pred_check
          %p142 = pneg %p33
        $region26: #{decoder_forward.16} parent=23 // pred_check_branch
          %144 = sbr.rel (%p142) target = $region28
        $region27: #{decoder_forward.16} parent=23 // pred_region
          %s145 = sand.u32 %s23, 1
          %s146 = scalar_lea.sflag [#allocation3], %s145
          %s147 = sand.u32 %s23, 1
          %s148 = smul.addr %s147, 8
          %s149 = scalar_lea.vmem [#allocation2], %s148
          %s151 = ssub.s32 128, 128
          %152 = vsyncadd %s146, %s151
          %s153 = smul.addr %s13, 128
          %s154 = scalar_lea.hbm %s0, %s153
          %s156 = sshll.u32 %s149, 4
          %s157 = int_to_ptr.vmem [resolvable:$true] %s156
          %159 = dma.hbm_to_vmem [thread:$0]  %s154, 128, %s157, %s146
        $region28: #{decoder_forward.16} parent=23 // pred_fallthru
          _
      $region24: #{decoder_forward.16} parent=5 // pred_fallthru
        _
      %p160 = scmp.le.s32.totalorder 1, %s13
      %p161 = scmp.lt.s32.totalorder %s13, 3
      %p162 = pnand %p160, %p161
      %p163 = pneg %p162
      // Predicated region
      $region29: #{decoder_forward.16} parent=5 // pred_check
        _
      $region30: #{decoder_forward.16} parent=5 // pred_check_branch
        %165 = sbr.rel (%p162) target = $region32
      $region31: #{decoder_forward.16} parent=5 // pred_region
        %s166 = ssub.s32 %s13, 1
        %s167 = sand.u32 %s26, 1
        %s168 = scalar_lea.sflag [#allocation3], %s167
        %s169 = sand.u32 %s26, 1
        %s170 = smul.addr %s169, 8
        %s171 = scalar_lea.vmem [#allocation2], %s170
        // Predicated region
        $region33: #{decoder_forward.16} parent=31 // pred_check
          %p172 = pneg %p39
        $region34: #{decoder_forward.16} parent=31 // pred_check_branch
          %174 = sbr.rel (%p172) target = $region36
        $region35: #{decoder_forward.16} parent=31 // pred_region
          %175 = dma.done %s168, 128
        $region36: #{decoder_forward.16} parent=31 // pred_fallthru
          _
        // Predicated region
        $region37: #{decoder_forward.16} parent=31 // pred_check
          %p176 = pneg %p60
        $region38: #{decoder_forward.16} parent=31 // pred_check_branch
          %178 = sbr.rel (%p176) target = $region40
        $region39: #{decoder_forward.16} parent=31 // pred_region
          %179 = dma.done [#allocation5], 512
        $region40: #{decoder_forward.16} parent=31 // pred_fallthru
          _
        %s180 = sand.u32 %s26, 1
        %s181 = scalar_lea.sflag [#allocation3], %s180
        %s182 = sand.u32 %s26, 1
        %s183 = smul.addr %s182, 8
        %s184 = scalar_lea.vmem [#allocation2], %s183
        %p185 = pneg %p39
        %p186 = pneg %p36
        %p187 = pneg %p60
        %p188 = pneg %p57
        %p189 = pneg %p81
        %p190 = pneg %p78
        %p191 = pneg %p107
        %p192 = pneg %p104
        %p193 = scmp.lt.s32.totalorder %s18, 1
        %s194 = scalar_select %p193, %s18, 1
        %s195 = smul.addr %s194, 8
        %s196 = scalar_lea.vmem %s3, %s195
        %p197 = scmp.lt.s32.totalorder %s18, 1
        %s198 = scalar_select %p197, %s18, 1
        %s199 = smul.addr %s198, 8
        %s200 = scalar_lea.vmem %s3, %s199
        %v201 = vld [vmem:[%s171] sm:$0xff]
        %v202 = vld [vmem:[#allocation4] sm:$0xff]
        %v203 = vld [vmem:[#allocation4 + $0x8] sm:$0xff]
        %v204 = vld [vmem:[#allocation4 + $0x10] sm:$0xff]
        %v205 = vld [vmem:[#allocation4 + $0x18] sm:$0xff]
        %v206 = vld [vmem:[%s2] sm:$0x1]
        %v208 = vlaneseq
        %v209 = vshrl.u32 %v208, 7
        %v210 = vsub.s32 0, %v209
        %v211 = vrot.slane %v206, %v210
        %vm213 = vcmask 261120
        %v215 = vsel %vm213, %v201, 0
        %217 = vmatprep.subr.mxu0 0.0
        %218 = vmatpush1.msra.mxu0 %v202
        %219 = vmatprep.subr.mxu0 0.0
        %220 = vmatpush1.msra.mxu0 %v203
        %221 = vmatprep.subr.mxu0 0.0
        %222 = vmatpush1.msra.mxu0 %v204
        %223 = vmatprep.subr.mxu0 0.0
        %224 = vmatpush1.msra.mxu0 %v205
        %225 = vmatprep.subr.mxu0 0.0
        %226 = vmatpush1.msra.mxu0 0.0
        %227 = vmatprep.subr.mxu0 0.0
        %228 = vmatpush1.msra.mxu0 0.0
        %229 = vmatprep.subr.mxu0 0.0
        %230 = vmatpush1.msra.mxu0 0.0
        %231 = vmatprep.subr.mxu0 0.0
        %232 = vmatpush1.msra.mxu0 0.0
        %233 = vmatprep.subr.mxu0 0.0
        %234 = vmatpush1.msra.mxu0 0.0
        %235 = vmatprep.subr.mxu0 0.0
        %236 = vmatpush1.msra.mxu0 0.0
        %237 = vmatprep.subr.mxu0 0.0
        %238 = vmatpush1.msra.mxu0 0.0
        %239 = vmatprep.subr.mxu0 0.0
        %240 = vmatpush1.msra.mxu0 0.0
        %241 = vmatprep.subr.mxu0 0.0
        %242 = vmatpush1.msra.mxu0 0.0
        %243 = vmatprep.subr.mxu0 0.0
        %244 = vmatpush1.msra.mxu0 0.0
        %245 = vmatprep.subr.mxu0 0.0
        %246 = vmatpush1.msra.mxu0 0.0
        %247 = vmatprep.subr.mxu0 0.0
        %248 = vmatpush1.msra.mxu0 0.0
        %249 = vmatprep.subr.mxu0 0.0
        %250 = vmatpush1.msra.mxu0 0.0
        %251 = vmatprep.subr.mxu0 0.0
        %252 = vmatpush1.msra.mxu0 0.0
        %253 = vmatprep.subr.mxu0 0.0
        %254 = vmatpush1.msra.mxu0 0.0
        %255 = vmatprep.subr.mxu0 0.0
        %256 = vmatpush1.msra.mxu0 0.0
        %257 = vmatprep.subr.mxu0 0.0
        %258 = vmatpush1.msra.mxu0 0.0
        %259 = vmatprep.subr.mxu0 0.0
        %260 = vmatpush1.msra.mxu0 0.0
        %261 = vmatprep.subr.mxu0 0.0
        %262 = vmatpush1.msra.mxu0 0.0
        %263 = vmatprep.subr.mxu0 0.0
        %264 = vmatpush1.msra.mxu0 0.0
        %265 = vmatprep.subr.mxu0 0.0
        %266 = vmatpush1.msra.mxu0 0.0
        %267 = vmatprep.subr.mxu0 0.0
        %268 = vmatpush1.msra.mxu0 0.0
        %269 = vmatprep.subr.mxu0 0.0
        %270 = vmatpush1.msra.mxu0 0.0
        %271 = vmatprep.subr.mxu0 0.0
        %272 = vmatpush1.msra.mxu0 0.0
        %273 = vmatprep.subr.mxu0 0.0
        %274 = vmatpush1.msra.mxu0 0.0
        %275 = vmatprep.subr.mxu0 0.0
        %276 = vmatpush1.msra.mxu0 0.0
        %277 = vmatprep.subr.mxu0 0.0
        %278 = vmatpush1.msra.mxu0 0.0
        %279 = vmatprep.subr.mxu0 0.0
        %280 = vmatpush1.msra.mxu0 0.0
        %281 = vmatprep.mubr.f32.mxu0 0.0
        %282 = vmatmul.mubr.f32.gmra.mrb[0].mxu0 %v215
        %v283 = vpop.f32.mrb[0].mxu0
        %v284 = vadd.f32 %v211, %v283
        %v285 = vpop.f32.mrb[0].mxu0
        %286 = vdwg.mxu0
        %vm287 = vcmask 523264
        %288 = vst.msk [vmem:[%s200] sm:$0xff] %vm287, %v284
        %p289 = scmp.lt.s32.totalorder %s18, 1
        %s290 = scalar_select %p289, %s18, 1
        %s291 = smul.addr %s290, 8
        %s292 = scalar_lea.vmem %s3, %s291
        // Predicated region
        $region41: #{decoder_forward.16} parent=31 // pred_check
          %p293 = pneg %p104
        $region42: #{decoder_forward.16} parent=31 // pred_check_branch
          %295 = sbr.rel (%p293) target = $region44
        $region43: #{decoder_forward.16} parent=31 // pred_region
          _
        $region44: #{decoder_forward.16} parent=31 // pred_fallthru
          _
      $region32: #{decoder_forward.16} parent=5 // pred_fallthru
        _
      %p296 = scmp.le.s32.totalorder 2, %s13
      // Predicated region
      $region45: #{decoder_forward.16} parent=5 // pred_check
        %p297 = pneg %p296
      $region46: #{decoder_forward.16} parent=5 // pred_check_branch
        %299 = sbr.rel (%p297) target = $region48
      $region47: #{decoder_forward.16} parent=5 // pred_region
        %s300 = ssub.s32 %s13, 2
        // Predicated region
        $region49: #{decoder_forward.16} parent=47 // pred_check
          %p301 = pneg %p110
        $region50: #{decoder_forward.16} parent=47 // pred_check_branch
          %303 = sbr.rel (%p301) target = $region52
        $region51: #{decoder_forward.16} parent=47 // pred_region
          %p304 = scmp.lt.s32.totalorder %s19, 1
          %s305 = scalar_select %p304, %s19, 1
          %s306 = smul.addr %s305, 8
          %s307 = scalar_lea.vmem %s3, %s306
        $region52: #{decoder_forward.16} parent=47 // pred_fallthru
          _
      $region48: #{decoder_forward.16} parent=5 // pred_fallthru
        _
    $region6: #{decoder_forward.16} parent=1 // loop_footer
      %s17 = sadd.s32 1, %s13
    $region7: #{decoder_forward.16} parent=1 // loop_footer_branch
      %12 = sbr.rel target = $region3
    $region8: #{decoder_forward.16} parent=1 // loop_exit
      _
    %308 = vsyncpa [#allocation3], 1
    %s309 = scalar_lea.sflag [#allocation3], 1
    %310 = vsyncpa %s309, 1
    %311 = vsyncpa [#allocation5], 1

// kernel: decoder_forward.17
$region0: #{decoder_forward.17}
  #allocation0 [shape = 'u32[]', space=smem, size = 0x4, offset = 0x4, fixed_abs, tag = 'smem constant byte address 0x4 - core index']
  #allocation1 [shape = 'u32[144,128]{1,0:T(1,128)}', space=vmem, size = 0x12000, scoped, tag = 'internal scratch']
  %s0 = inlined_call_operand.hbm [shape: f32[16,32], index: 0, kind: input, shape index: {}]
  %s1 = inlined_call_operand.vmem [shape: f32[1,32], index: 1, kind: input, shape index: {}]
  %s2 = inlined_call_operand.vmem [shape: f32[1,32], index: 2, kind: input, shape index: {}]
  %s3 = inlined_call_operand.vmem [shape: f32[32,32], index: 3, kind: input, shape index: {}]
  %s4 = inlined_call_operand.vmem [shape: f32[1,32], index: 4, kind: input, shape index: {}]
  %s5 = inlined_call_operand.vmem [shape: f32[32,64], index: 5, kind: input, shape index: {}]
  %s6 = inlined_call_operand.vmem [shape: f32[1,64], index: 6, kind: input, shape index: {}]
  %s7 = inlined_call_operand.vmem [shape: f32[16,32], index: 7, kind: output, shape index: {0}]
  %s8 = inlined_call_operand.vmem [shape: f32[16,64], index: 8, kind: output, shape index: {1}]
  %9 = xla_tuple %s7, %s8
  %s10 = sld [smem:[#allocation0]]
  $region73: #{decoder_forward.17} parent=0
    _
  %s12 = ssub.s32 1, %s10
  %s13 = scalar_select 0, %s12, %s10
  $region1: #{decoder_forward.17} parent=0
    #allocation2 [shape = 'u8[8192]{0}', space=vmem, size = 0x2000, scoped, tag = 'input window, operand 0']
    #allocation3 [shape = 's32[2]{0}', space=sflag, size = 0x8, scoped, tag = 'scoped memory for decoder_forward.17']
    %14 = vsyncpa [#allocation3], 0
    %s15 = scalar_lea.sflag [#allocation3], 1
    %16 = vsyncpa %s15, 0
    loop: start=0, step=1, limit=4
    $region2: #{decoder_forward.17} parent=1 // loop_pre_header
      _
    $region3: #{decoder_forward.17} parent=1 // loop_header
      %s18 = sphi 0, %s22
      %p19 = scmp.ge.s32.totalorder %s18, 4
      %s28 = sphi 0, %s30
      %s31 = sphi 0, %s28
      %s32 = sphi 0, %s31
      %s48 = sphi 0, %s32
      %s52 = sphi 0, %s52
      %s54 = sphi 0, %s52
      %s55 = sphi 0, %s54
      %s69 = sphi 0, %s55
      %s73 = sphi 0, %s73
      %s75 = sphi 0, %s73
      %s76 = sphi 0, %s75
      %s90 = sphi 0, %s76
      %s94 = sphi 0, %s94
      %s96 = sphi 0, %s94
      %s97 = sphi 0, %s96
      %s111 = sphi 0, %s97
      %s115 = sphi 0, %s115
      %s117 = sphi 0, %s115
      %s118 = sphi 0, %s117
      %s132 = sphi 0, %s118
      %s136 = sphi 0, %s136
      %s138 = sphi 0, %s136
      %s139 = sphi 0, %s138
      %s153 = sphi 0, %s139
      %s157 = sphi 0, %s157
      %s159 = sphi 0, %s157
      %s160 = sphi 0, %s159
      %s174 = sphi 0, %s160
      %s180 = sphi 0, %s182
      %s183 = sphi 0, %s180
      %s184 = sphi 0, %s183
      %s200 = sphi 0, %s184
      %s206 = sphi 0, %s208
      %s209 = sphi 0, %s206
      %s210 = sphi 0, %s209
      %s226 = sphi 0, %s210
    $region4: #{decoder_forward.17} parent=1 // loop_header_branch
      %21 = sbr.rel (%p19) target = $region8
    $region5: #{decoder_forward.17} parent=1 // loop_body
      %s23 = ssub.s32 %s18, 1
      %s24 = ssub.s32 %s18, 2
      %s25 = sadd.s32 %s18, 1
      %s26 = ssub.s32 %s18, %s25
      %p27 = scmp.eq.s32.totalorder %s26, 0
      %s29 = sadd.s32 %s28, 1
      %s30 = scalar_select %p27, %s28, %s29
      %p33 = pneg %p27
      %p34 = scmp.eq.s32.totalorder %s18, 1
      %p35 = por %p33, %p34
      %p36 = scmp.ne.s32.totalorder %s28, %s31
      %p37 = scmp.eq.s32.totalorder %s18, 0
      %p38 = por %p36, %p37
      %p39 = scmp.ne.s32.totalorder %s28, %s31
      %p40 = scmp.eq.s32.totalorder %s23, 1
      %p41 = por %p39, %p40
      %p42 = scmp.ne.s32.totalorder %s31, %s32
      %p43 = scmp.eq.s32.totalorder %s23, 0
      %p44 = por %p42, %p43
      %p45 = scmp.ne.s32.totalorder %s31, %s32
      %p46 = scmp.eq.s32.totalorder %s24, 1
      %p47 = por %p45, %p46
      %p49 = scmp.ne.s32.totalorder %s32, %s48
      %p50 = scmp.eq.s32.totalorder %s24, 0
      %p51 = por %p49, %p50
      %s53 = sadd.s32 %s52, 1
      %p56 = scmp.eq.s32.totalorder %s18, 1
      %p57 = scmp.ne.s32.totalorder %s52, %s54
      %p58 = scmp.eq.s32.totalorder %s18, 0
      %p59 = por %p57, %p58
      %p60 = scmp.ne.s32.totalorder %s52, %s54
      %p61 = scmp.eq.s32.totalorder %s23, 1
      %p62 = por %p60, %p61
      %p63 = scmp.ne.s32.totalorder %s54, %s55
      %p64 = scmp.eq.s32.totalorder %s23, 0
      %p65 = por %p63, %p64
      %p66 = scmp.ne.s32.totalorder %s54, %s55
      %p67 = scmp.eq.s32.totalorder %s24, 1
      %p68 = por %p66, %p67
      %p70 = scmp.ne.s32.totalorder %s55, %s69
      %p71 = scmp.eq.s32.totalorder %s24, 0
      %p72 = por %p70, %p71
      %s74 = sadd.s32 %s73, 1
      %p77 = scmp.eq.s32.totalorder %s18, 1
      %p78 = scmp.ne.s32.totalorder %s73, %s75
      %p79 = scmp.eq.s32.totalorder %s18, 0
      %p80 = por %p78, %p79
      %p81 = scmp.ne.s32.totalorder %s73, %s75
      %p82 = scmp.eq.s32.totalorder %s23, 1
      %p83 = por %p81, %p82
      %p84 = scmp.ne.s32.totalorder %s75, %s76
      %p85 = scmp.eq.s32.totalorder %s23, 0
      %p86 = por %p84, %p85
      %p87 = scmp.ne.s32.totalorder %s75, %s76
      %p88 = scmp.eq.s32.totalorder %s24, 1
      %p89 = por %p87, %p88
      %p91 = scmp.ne.s32.totalorder %s76, %s90
      %p92 = scmp.eq.s32.totalorder %s24, 0
      %p93 = por %p91, %p92
      %s95 = sadd.s32 %s94, 1
      %p98 = scmp.eq.s32.totalorder %s18, 1
      %p99 = scmp.ne.s32.totalorder %s94, %s96
      %p100 = scmp.eq.s32.totalorder %s18, 0
      %p101 = por %p99, %p100
      %p102 = scmp.ne.s32.totalorder %s94, %s96
      %p103 = scmp.eq.s32.totalorder %s23, 1
      %p104 = por %p102, %p103
      %p105 = scmp.ne.s32.totalorder %s96, %s97
      %p106 = scmp.eq.s32.totalorder %s23, 0
      %p107 = por %p105, %p106
      %p108 = scmp.ne.s32.totalorder %s96, %s97
      %p109 = scmp.eq.s32.totalorder %s24, 1
      %p110 = por %p108, %p109
      %p112 = scmp.ne.s32.totalorder %s97, %s111
      %p113 = scmp.eq.s32.totalorder %s24, 0
      %p114 = por %p112, %p113
      %s116 = sadd.s32 %s115, 1
      %p119 = scmp.eq.s32.totalorder %s18, 1
      %p120 = scmp.ne.s32.totalorder %s115, %s117
      %p121 = scmp.eq.s32.totalorder %s18, 0
      %p122 = por %p120, %p121
      %p123 = scmp.ne.s32.totalorder %s115, %s117
      %p124 = scmp.eq.s32.totalorder %s23, 1
      %p125 = por %p123, %p124
      %p126 = scmp.ne.s32.totalorder %s117, %s118
      %p127 = scmp.eq.s32.totalorder %s23, 0
      %p128 = por %p126, %p127
      %p129 = scmp.ne.s32.totalorder %s117, %s118
      %p130 = scmp.eq.s32.totalorder %s24, 1
      %p131 = por %p129, %p130
      %p133 = scmp.ne.s32.totalorder %s118, %s132
      %p134 = scmp.eq.s32.totalorder %s24, 0
      %p135 = por %p133, %p134
      %s137 = sadd.s32 %s136, 1
      %p140 = scmp.eq.s32.totalorder %s18, 1
      %p141 = scmp.ne.s32.totalorder %s136, %s138
      %p142 = scmp.eq.s32.totalorder %s18, 0
      %p143 = por %p141, %p142
      %p144 = scmp.ne.s32.totalorder %s136, %s138
      %p145 = scmp.eq.s32.totalorder %s23, 1
      %p146 = por %p144, %p145
      %p147 = scmp.ne.s32.totalorder %s138, %s139
      %p148 = scmp.eq.s32.totalorder %s23, 0
      %p149 = por %p147, %p148
      %p150 = scmp.ne.s32.totalorder %s138, %s139
      %p151 = scmp.eq.s32.totalorder %s24, 1
      %p152 = por %p150, %p151
      %p154 = scmp.ne.s32.totalorder %s139, %s153
      %p155 = scmp.eq.s32.totalorder %s24, 0
      %p156 = por %p154, %p155
      %s158 = sadd.s32 %s157, 1
      %p161 = scmp.eq.s32.totalorder %s18, 1
      %p162 = scmp.ne.s32.totalorder %s157, %s159
      %p163 = scmp.eq.s32.totalorder %s18, 0
      %p164 = por %p162, %p163
      %p165 = scmp.ne.s32.totalorder %s157, %s159
      %p166 = scmp.eq.s32.totalorder %s23, 1
      %p167 = por %p165, %p166
      %p168 = scmp.ne.s32.totalorder %s159, %s160
      %p169 = scmp.eq.s32.totalorder %s23, 0
      %p170 = por %p168, %p169
      %p171 = scmp.ne.s32.totalorder %s159, %s160
      %p172 = scmp.eq.s32.totalorder %s24, 1
      %p173 = por %p171, %p172
      %p175 = scmp.ne.s32.totalorder %s160, %s174
      %p176 = scmp.eq.s32.totalorder %s24, 0
      %p177 = por %p175, %p176
      %s178 = ssub.s32 %s18, %s25
      %p179 = scmp.eq.s32.totalorder %s178, 0
      %s181 = sadd.s32 %s180, 1
      %s182 = scalar_select %p179, %s180, %s181
      %p185 = pneg %p179
      %p186 = scmp.eq.s32.totalorder %s18, 1
      %p187 = por %p185, %p186
      %p188 = scmp.ne.s32.totalorder %s180, %s183
      %p189 = scmp.eq.s32.totalorder %s18, 0
      %p190 = por %p188, %p189
      %p191 = scmp.ne.s32.totalorder %s180, %s183
      %p192 = scmp.eq.s32.totalorder %s23, 1
      %p193 = por %p191, %p192
      %p194 = scmp.ne.s32.totalorder %s183, %s184
      %p195 = scmp.eq.s32.totalorder %s23, 0
      %p196 = por %p194, %p195
      %p197 = scmp.ne.s32.totalorder %s183, %s184
      %p198 = scmp.eq.s32.totalorder %s24, 1
      %p199 = por %p197, %p198
      %p201 = scmp.ne.s32.totalorder %s184, %s200
      %p202 = scmp.eq.s32.totalorder %s24, 0
      %p203 = por %p201, %p202
      %s204 = ssub.s32 %s18, %s25
      %p205 = scmp.eq.s32.totalorder %s204, 0
      %s207 = sadd.s32 %s206, 1
      %s208 = scalar_select %p205, %s206, %s207
      %p211 = pneg %p205
      %p212 = scmp.eq.s32.totalorder %s18, 1
      %p213 = por %p211, %p212
      %p214 = scmp.ne.s32.totalorder %s206, %s209
      %p215 = scmp.eq.s32.totalorder %s18, 0
      %p216 = por %p214, %p215
      %p217 = scmp.ne.s32.totalorder %s206, %s209
      %p218 = scmp.eq.s32.totalorder %s23, 1
      %p219 = por %p217, %p218
      %p220 = scmp.ne.s32.totalorder %s209, %s210
      %p221 = scmp.eq.s32.totalorder %s23, 0
      %p222 = por %p220, %p221
      %p223 = scmp.ne.s32.totalorder %s209, %s210
      %p224 = scmp.eq.s32.totalorder %s24, 1
      %p225 = por %p223, %p224
      %p227 = scmp.ne.s32.totalorder %s210, %s226
      %p228 = scmp.eq.s32.totalorder %s24, 0
      %p229 = por %p227, %p228
      %p230 = scmp.le.s32.totalorder 1, %s18
      %p231 = scmp.lt.s32.totalorder %s18, 3
      %p232 = pnand %p230, %p231
      %p233 = pneg %p232
      // Predicated region
      $region9: #{decoder_forward.17} parent=5 // pred_check
        _
      $region10: #{decoder_forward.17} parent=5 // pred_check_branch
        %235 = sbr.rel (%p232) target = $region12
      $region11: #{decoder_forward.17} parent=5 // pred_region
        %s236 = ssub.s32 %s18, 1
        // Predicated region
        $region13: #{decoder_forward.17} parent=11 // pred_check
          %p237 = pneg %p65
        $region14: #{decoder_forward.17} parent=11 // pred_check_branch
          %239 = sbr.rel (%p237) target = $region16
        $region15: #{decoder_forward.17} parent=11 // pred_region
          _
        $region16: #{decoder_forward.17} parent=11 // pred_fallthru
          _
        // Predicated region
        $region17: #{decoder_forward.17} parent=11 // pred_check
          %p240 = pneg %p86
        $region18: #{decoder_forward.17} parent=11 // pred_check_branch
          %242 = sbr.rel (%p240) target = $region20
        $region19: #{decoder_forward.17} parent=11 // pred_region
          _
        $region20: #{decoder_forward.17} parent=11 // pred_fallthru
          _
        // Predicated region
        $region21: #{decoder_forward.17} parent=11 // pred_check
          %p243 = pneg %p107
        $region22: #{decoder_forward.17} parent=11 // pred_check_branch
          %245 = sbr.rel (%p243) target = $region24
        $region23: #{decoder_forward.17} parent=11 // pred_region
          _
        $region24: #{decoder_forward.17} parent=11 // pred_fallthru
          _
        // Predicated region
        $region25: #{decoder_forward.17} parent=11 // pred_check
          %p246 = pneg %p128
        $region26: #{decoder_forward.17} parent=11 // pred_check_branch
          %248 = sbr.rel (%p246) target = $region28
        $region27: #{decoder_forward.17} parent=11 // pred_region
          _
        $region28: #{decoder_forward.17} parent=11 // pred_fallthru
          _
        // Predicated region
        $region29: #{decoder_forward.17} parent=11 // pred_check
          %p249 = pneg %p149
        $region30: #{decoder_forward.17} parent=11 // pred_check_branch
          %251 = sbr.rel (%p249) target = $region32
        $region31: #{decoder_forward.17} parent=11 // pred_region
          _
        $region32: #{decoder_forward.17} parent=11 // pred_fallthru
          _
        // Predicated region
        $region33: #{decoder_forward.17} parent=11 // pred_check
          %p252 = pneg %p170
        $region34: #{decoder_forward.17} parent=11 // pred_check_branch
          %254 = sbr.rel (%p252) target = $region36
        $region35: #{decoder_forward.17} parent=11 // pred_region
          _
        $region36: #{decoder_forward.17} parent=11 // pred_fallthru
          _
      $region12: #{decoder_forward.17} parent=5 // pred_fallthru
        _
      %p255 = scmp.lt.s32.totalorder %s18, 2
      // Predicated region
      $region37: #{decoder_forward.17} parent=5 // pred_check
        %p256 = pneg %p255
      $region38: #{decoder_forward.17} parent=5 // pred_check_branch
        %258 = sbr.rel (%p256) target = $region40
      $region39: #{decoder_forward.17} parent=5 // pred_region
        // Predicated region
        $region41: #{decoder_forward.17} parent=39 // pred_check
          %p259 = pneg %p38
        $region42: #{decoder_forward.17} parent=39 // pred_check_branch
          %261 = sbr.rel (%p259) target = $region44
        $region43: #{decoder_forward.17} parent=39 // pred_region
          %s262 = sand.u32 %s28, 1
          %s263 = scalar_lea.sflag [#allocation3], %s262
          %s264 = sand.u32 %s28, 1
          %s265 = smul.addr %s264, 8
          %s266 = scalar_lea.vmem [#allocation2], %s265
          %s268 = ssub.s32 128, 128
          %269 = vsyncadd %s263, %s268
          %s270 = smul.addr %s18, 128
          %s271 = scalar_lea.hbm %s0, %s270
          %s273 = sshll.u32 %s266, 4
          %s274 = int_to_ptr.vmem [resolvable:$true] %s273
          %276 = dma.hbm_to_vmem [thread:$0]  %s271, 128, %s274, %s263
        $region44: #{decoder_forward.17} parent=39 // pred_fallthru
          _
      $region40: #{decoder_forward.17} parent=5 // pred_fallthru
        _
      %p277 = scmp.le.s32.totalorder 1, %s18
      %p278 = scmp.lt.s32.totalorder %s18, 3
      %p279 = pnand %p277, %p278
      %p280 = pneg %p279
      // Predicated region
      $region45: #{decoder_forward.17} parent=5 // pred_check
        _
      $region46: #{decoder_forward.17} parent=5 // pred_check_branch
        %282 = sbr.rel (%p279) target = $region48
      $region47: #{decoder_forward.17} parent=5 // pred_region
        %s283 = ssub.s32 %s18, 1
        %s284 = sand.u32 %s31, 1
        %s285 = scalar_lea.sflag [#allocation3], %s284
        %s286 = sand.u32 %s31, 1
        %s287 = smul.addr %s286, 8
        %s288 = scalar_lea.vmem [#allocation2], %s287
        // Predicated region
        $region49: #{decoder_forward.17} parent=47 // pred_check
          %p289 = pneg %p44
        $region50: #{decoder_forward.17} parent=47 // pred_check_branch
          %291 = sbr.rel (%p289) target = $region52
        $region51: #{decoder_forward.17} parent=47 // pred_region
          %292 = dma.done %s285, 128
        $region52: #{decoder_forward.17} parent=47 // pred_fallthru
          _
        %s293 = sand.u32 %s31, 1
        %s294 = scalar_lea.sflag [#allocation3], %s293
        %s295 = sand.u32 %s31, 1
        %s296 = smul.addr %s295, 8
        %s297 = scalar_lea.vmem [#allocation2], %s296
        %p298 = pneg %p44
        %p299 = pneg %p41
        %p300 = pneg %p65
        %p301 = pneg %p62
        %p302 = pneg %p86
        %p303 = pneg %p83
        %p304 = pneg %p107
        %p305 = pneg %p104
        %p306 = pneg %p128
        %p307 = pneg %p125
        %p308 = pneg %p149
        %p309 = pneg %p146
        %p310 = pneg %p170
        %p311 = pneg %p167
        %p312 = pneg %p196
        %p313 = pneg %p193
        %p314 = scmp.lt.s32.totalorder %s23, 1
        %s315 = scalar_select %p314, %s23, 1
        %s316 = smul.addr %s315, 8
        %s317 = scalar_lea.vmem %s7, %s316
        %p318 = pneg %p222
        %p319 = pneg %p219
        %p320 = scmp.lt.s32.totalorder %s23, 1
        %s321 = scalar_select %p320, %s23, 1
        %s322 = smul.addr %s321, 8
        %s323 = scalar_lea.vmem %s8, %s322
        %p324 = scmp.lt.s32.totalorder %s23, 1
        %s325 = scalar_select %p324, %s23, 1
        %s326 = smul.addr %s325, 8
        %s327 = scalar_lea.vmem %s7, %s326
        %p328 = scmp.lt.s32.totalorder %s23, 1
        %s329 = scalar_select %p328, %s23, 1
        %s330 = smul.addr %s329, 8
        %s331 = scalar_lea.vmem %s8, %s330
        %v332 = vld [vmem:[%s288] sm:$0xff]
        %v333 = vld [vmem:[%s1] sm:$0x1]
        %v334 = vld [vmem:[%s2] sm:$0x1]
        %vm335 = vcmask 261120
        %v336 = vsel %vm335, %v332, 0.0
        %337 = vadd.xlane.f32.xlu0 %v336
        %v338 = vpop.xlane.xlu0 %337
        %v339 = vrcp.pop 32.0
        %v340 = vmul.f32 %v338, %v339
        %v341 = vsub.f32 %v332, %v340
        %v342 = vmul.f32 %v341, %v341
        %v343 = vsel %vm335, %v342, 0.0
        %344 = vadd.xlane.f32.xlu0 %v343
        %v345 = vpop.xlane.xlu0 %344
        %v346 = vmul.f32 %v345, 0.032258064
        %v347 = vrsqrt.pop %v346
        %v348 = vmul.f32 %v346, %v347
        %vm349 = vcmp.eq.f32.partialorder %v346, inf
        %v350 = vsel %vm349, %v346, %v348
        %vm351 = vcmp.eq.f32.partialorder %v346, 0.0
        %v352 = vand.u32 %v346, 2147483648
        %v353 = vsel %vm351, %v352, %v350
        %v355 = vlaneseq
        %v356 = vshrl.u32 %v355, 7
        %v357 = vsub.s32 0, %v356
        %v358 = vrot.slane %v333, %v357
        %v360 = vmul.f32 %v358, %v341
        %v361 = vadd.f32 %v353, 1e-06
        %v362 = vrcp.pop %v361
        %v363 = vmul.f32 %v360, %v362
        %v365 = vlaneseq
        %v366 = vshrl.u32 %v365, 7
        %v367 = vsub.s32 0, %v366
        %v368 = vrot.slane %v334, %v367
        %v370 = vadd.f32 %v363, %v368
        %v371 = vld [vmem:[%s3] sm:$0xff]
        %v372 = vld [vmem:[%s3 + $0x8] sm:$0xff]
        %v373 = vld [vmem:[%s3 + $0x10] sm:$0xff]
        %v374 = vld [vmem:[%s3 + $0x18] sm:$0xff]
        %v375 = vld [vmem:[%s4] sm:$0x1]
        %v377 = vlaneseq
        %v378 = vshrl.u32 %v377, 7
        %v379 = vsub.s32 0, %v378
        %v380 = vrot.slane %v375, %v379
        %v383 = vsel %vm335, %v370, 0
        %385 = vmatprep.subr.mxu0 0.0
        %386 = vmatpush1.msra.mxu0 %v371
        %387 = vmatprep.subr.mxu0 0.0
        %388 = vmatpush1.msra.mxu0 %v372
        %389 = vmatprep.subr.mxu0 0.0
        %390 = vmatpush1.msra.mxu0 %v373
        %391 = vmatprep.subr.mxu0 0.0
        %392 = vmatpush1.msra.mxu0 %v374
        %393 = vmatprep.subr.mxu0 0.0
        %394 = vmatpush1.msra.mxu0 0.0
        %395 = vmatprep.subr.mxu0 0.0
        %396 = vmatpush1.msra.mxu0 0.0
        %397 = vmatprep.subr.mxu0 0.0
        %398 = vmatpush1.msra.mxu0 0.0
        %399 = vmatprep.subr.mxu0 0.0
        %400 = vmatpush1.msra.mxu0 0.0
        %401 = vmatprep.subr.mxu0 0.0
        %402 = vmatpush1.msra.mxu0 0.0
        %403 = vmatprep.subr.mxu0 0.0
        %404 = vmatpush1.msra.mxu0 0.0
        %405 = vmatprep.subr.mxu0 0.0
        %406 = vmatpush1.msra.mxu0 0.0
        %407 = vmatprep.subr.mxu0 0.0
        %408 = vmatpush1.msra.mxu0 0.0
        %409 = vmatprep.subr.mxu0 0.0
        %410 = vmatpush1.msra.mxu0 0.0
        %411 = vmatprep.subr.mxu0 0.0
        %412 = vmatpush1.msra.mxu0 0.0
        %413 = vmatprep.subr.mxu0 0.0
        %414 = vmatpush1.msra.mxu0 0.0
        %415 = vmatprep.subr.mxu0 0.0
        %416 = vmatpush1.msra.mxu0 0.0
        %417 = vmatprep.subr.mxu0 0.0
        %418 = vmatpush1.msra.mxu0 0.0
        %419 = vmatprep.subr.mxu0 0.0
        %420 = vmatpush1.msra.mxu0 0.0
        %421 = vmatprep.subr.mxu0 0.0
        %422 = vmatpush1.msra.mxu0 0.0
        %423 = vmatprep.subr.mxu0 0.0
        %424 = vmatpush1.msra.mxu0 0.0
        %425 = vmatprep.subr.mxu0 0.0
        %426 = vmatpush1.msra.mxu0 0.0
        %427 = vmatprep.subr.mxu0 0.0
        %428 = vmatpush1.msra.mxu0 0.0
        %429 = vmatprep.subr.mxu0 0.0
        %430 = vmatpush1.msra.mxu0 0.0
        %431 = vmatprep.subr.mxu0 0.0
        %432 = vmatpush1.msra.mxu0 0.0
        %433 = vmatprep.subr.mxu0 0.0
        %434 = vmatpush1.msra.mxu0 0.0
        %435 = vmatprep.subr.mxu0 0.0
        %436 = vmatpush1.msra.mxu0 0.0
        %437 = vmatprep.subr.mxu0 0.0
        %438 = vmatpush1.msra.mxu0 0.0
        %439 = vmatprep.subr.mxu0 0.0
        %440 = vmatpush1.msra.mxu0 0.0
        %441 = vmatprep.subr.mxu0 0.0
        %442 = vmatpush1.msra.mxu0 0.0
        %443 = vmatprep.subr.mxu0 0.0
        %444 = vmatpush1.msra.mxu0 0.0
        %445 = vmatprep.subr.mxu0 0.0
        %446 = vmatpush1.msra.mxu0 0.0
        %447 = vmatprep.subr.mxu0 0.0
        %448 = vmatpush1.msra.mxu0 0.0
        %449 = vmatprep.mubr.f32.mxu0 0.0
        %450 = vmatmul.mubr.f32.gmra.mrb[0].mxu0 %v383
        %v451 = vpop.f32.mrb[0].mxu0
        %v452 = vadd.f32 %v380, %v451
        %v453 = vpop.f32.mrb[0].mxu0
        %454 = vdwg.mxu0
        %v455 = vld [vmem:[%s5] sm:$0xff]
        %v456 = vld [vmem:[%s5 + $0x8] sm:$0xff]
        %v457 = vld [vmem:[%s5 + $0x10] sm:$0xff]
        %v458 = vld [vmem:[%s5 + $0x18] sm:$0xff]
        %v459 = vld [vmem:[%s6] sm:$0x1]
        %v461 = vlaneseq
        %v462 = vshrl.u32 %v461, 7
        %v463 = vsub.s32 0, %v462
        %v464 = vrot.slane %v459, %v463
        %466 = vmatprep.subr.mxu0 0.0
        %467 = vmatpush1.msra.mxu0 %v455
        %468 = vmatprep.subr.mxu0 0.0
        %469 = vmatpush1.msra.mxu0 %v456
        %470 = vmatprep.subr.mxu0 0.0
        %471 = vmatpush1.msra.mxu0 %v457
        %472 = vmatprep.subr.mxu0 0.0
        %473 = vmatpush1.msra.mxu0 %v458
        %474 = vmatprep.subr.mxu0 0.0
        %475 = vmatpush1.msra.mxu0 0.0
        %476 = vmatprep.subr.mxu0 0.0
        %477 = vmatpush1.msra.mxu0 0.0
        %478 = vmatprep.subr.mxu0 0.0
        %479 = vmatpush1.msra.mxu0 0.0
        %480 = vmatprep.subr.mxu0 0.0
        %481 = vmatpush1.msra.mxu0 0.0
        %482 = vmatprep.subr.mxu0 0.0
        %483 = vmatpush1.msra.mxu0 0.0
        %484 = vmatprep.subr.mxu0 0.0
        %485 = vmatpush1.msra.mxu0 0.0
        %486 = vmatprep.subr.mxu0 0.0
        %487 = vmatpush1.msra.mxu0 0.0
        %488 = vmatprep.subr.mxu0 0.0
        %489 = vmatpush1.msra.mxu0 0.0
        %490 = vmatprep.subr.mxu0 0.0
        %491 = vmatpush1.msra.mxu0 0.0
        %492 = vmatprep.subr.mxu0 0.0
        %493 = vmatpush1.msra.mxu0 0.0
        %494 = vmatprep.subr.mxu0 0.0
        %495 = vmatpush1.msra.mxu0 0.0
        %496 = vmatprep.subr.mxu0 0.0
        %497 = vmatpush1.msra.mxu0 0.0
        %498 = vmatprep.subr.mxu0 0.0
        %499 = vmatpush1.msra.mxu0 0.0
        %500 = vmatprep.subr.mxu0 0.0
        %501 = vmatpush1.msra.mxu0 0.0
        %502 = vmatprep.subr.mxu0 0.0
        %503 = vmatpush1.msra.mxu0 0.0
        %504 = vmatprep.subr.mxu0 0.0
        %505 = vmatpush1.msra.mxu0 0.0
        %506 = vmatprep.subr.mxu0 0.0
        %507 = vmatpush1.msra.mxu0 0.0
        %508 = vmatprep.subr.mxu0 0.0
        %509 = vmatpush1.msra.mxu0 0.0
        %510 = vmatprep.subr.mxu0 0.0
        %511 = vmatpush1.msra.mxu0 0.0
        %512 = vmatprep.subr.mxu0 0.0
        %513 = vmatpush1.msra.mxu0 0.0
        %514 = vmatprep.subr.mxu0 0.0
        %515 = vmatpush1.msra.mxu0 0.0
        %516 = vmatprep.subr.mxu0 0.0
        %517 = vmatpush1.msra.mxu0 0.0
        %518 = vmatprep.subr.mxu0 0.0
        %519 = vmatpush1.msra.mxu0 0.0
        %520 = vmatprep.subr.mxu0 0.0
        %521 = vmatpush1.msra.mxu0 0.0
        %522 = vmatprep.subr.mxu0 0.0
        %523 = vmatpush1.msra.mxu0 0.0
        %524 = vmatprep.subr.mxu0 0.0
        %525 = vmatpush1.msra.mxu0 0.0
        %526 = vmatprep.subr.mxu0 0.0
        %527 = vmatpush1.msra.mxu0 0.0
        %528 = vmatprep.subr.mxu0 0.0
        %529 = vmatpush1.msra.mxu0 0.0
        %530 = vmatprep.mubr.f32.mxu0 0.0
        %531 = vmatmul.mubr.f32.gmra.mrb[0].mxu0 %v383
        %v532 = vpop.f32.mrb[0].mxu0
        %v533 = vadd.f32 %v464, %v532
        %v534 = vpop.f32.mrb[0].mxu0
        %535 = vdwg.mxu0
        %536 = vst.msk [vmem:[%s327] sm:$0xff] %vm335, %v452
        %vm537 = vcmask 523264
        %538 = vst.msk [vmem:[%s331] sm:$0xff] %vm537, %v533
        %p539 = scmp.lt.s32.totalorder %s23, 1
        %s540 = scalar_select %p539, %s23, 1
        %s541 = smul.addr %s540, 8
        %s542 = scalar_lea.vmem %s7, %s541
        %p543 = scmp.lt.s32.totalorder %s23, 1
        %s544 = scalar_select %p543, %s23, 1
        %s545 = smul.addr %s544, 8
        %s546 = scalar_lea.vmem %s8, %s545
        // Predicated region
        $region53: #{decoder_forward.17} parent=47 // pred_check
          %p547 = pneg %p193
        $region54: #{decoder_forward.17} parent=47 // pred_check_branch
          %549 = sbr.rel (%p547) target = $region56
        $region55: #{decoder_forward.17} parent=47 // pred_region
          _
        $region56: #{decoder_forward.17} parent=47 // pred_fallthru
          _
        // Predicated region
        $region57: #{decoder_forward.17} parent=47 // pred_check
          %p550 = pneg %p219
        $region58: #{decoder_forward.17} parent=47 // pred_check_branch
          %552 = sbr.rel (%p550) target = $region60
        $region59: #{decoder_forward.17} parent=47 // pred_region
          _
        $region60: #{decoder_forward.17} parent=47 // pred_fallthru
          _
      $region48: #{decoder_forward.17} parent=5 // pred_fallthru
        _
      %p553 = scmp.le.s32.totalorder 2, %s18
      // Predicated region
      $region61: #{decoder_forward.17} parent=5 // pred_check
        %p554 = pneg %p553
      $region62: #{decoder_forward.17} parent=5 // pred_check_branch
        %556 = sbr.rel (%p554) target = $region64
      $region63: #{decoder_forward.17} parent=5 // pred_region
        %s557 = ssub.s32 %s18, 2
        // Predicated region
        $region65: #{decoder_forward.17} parent=63 // pred_check
          %p558 = pneg %p199
        $region66: #{decoder_forward.17} parent=63 // pred_check_branch
          %560 = sbr.rel (%p558) target = $region68
        $region67: #{decoder_forward.17} parent=63 // pred_region
          %p561 = scmp.lt.s32.totalorder %s24, 1
          %s562 = scalar_select %p561, %s24, 1
          %s563 = smul.addr %s562, 8
          %s564 = scalar_lea.vmem %s7, %s563
        $region68: #{decoder_forward.17} parent=63 // pred_fallthru
          _
        // Predicated region
        $region69: #{decoder_forward.17} parent=63 // pred_check
          %p565 = pneg %p225
        $region70: #{decoder_forward.17} parent=63 // pred_check_branch
          %567 = sbr.rel (%p565) target = $region72
        $region71: #{decoder_forward.17} parent=63 // pred_region
          %p568 = scmp.lt.s32.totalorder %s24, 1
          %s569 = scalar_select %p568, %s24, 1
          %s570 = smul.addr %s569, 8
          %s571 = scalar_lea.vmem %s8, %s570
        $region72: #{decoder_forward.17} parent=63 // pred_fallthru
          _
      $region64: #{decoder_forward.17} parent=5 // pred_fallthru
        _
    $region6: #{decoder_forward.17} parent=1 // loop_footer
      %s22 = sadd.s32 1, %s18
    $region7: #{decoder_forward.17} parent=1 // loop_footer_branch
      %17 = sbr.rel target = $region3
    $region8: #{decoder_forward.17} parent=1 // loop_exit
      _
    %572 = vsyncpa [#allocation3], 1
    %s573 = scalar_lea.sflag [#allocation3], 1
    %574 = vsyncpa %s573, 1

// kernel: decoder_forward.18
$region0: #{decoder_forward.18}
  #allocation0 [shape = 'u32[]', space=smem, size = 0x4, offset = 0x4, fixed_abs, tag = 'smem constant byte address 0x4 - core index']
  #allocation1 [shape = 'u32[144,128]{1,0:T(1,128)}', space=vmem, size = 0x12000, scoped, tag = 'internal scratch']
  %s0 = inlined_call_operand.vmem [shape: f32[2,8,32], index: 0, kind: input, shape index: {}]
  %s1 = inlined_call_operand.vmem [shape: f32[2,8,64], index: 1, kind: input, shape index: {}]
  %s2 = inlined_call_operand.vmem [shape: f32[2,8,8], index: 2, kind: input, shape index: {}]
  %s3 = inlined_call_operand.vmem [shape: f32[2,8,32], index: 3, kind: output, shape index: {}]
  %s4 = sld [smem:[#allocation0]]
  $region45: #{decoder_forward.18} parent=0
    _
  %s6 = ssub.s32 1, %s4
  %s7 = scalar_select 0, %s6, %s4
  loop: start=0, step=1, limit=4
  $region2: #{decoder_forward.18} parent=0 // loop_pre_header
    _
  $region3: #{decoder_forward.18} parent=0 // loop_header
    %s9 = sphi 0, %s13
    %p10 = scmp.ge.s32.totalorder %s9, 4
    %s19 = sphi 0, %s21
    %s22 = sphi 0, %s19
    %s23 = sphi 0, %s22
    %s39 = sphi 0, %s23
    %s45 = sphi 0, %s47
    %s48 = sphi 0, %s45
    %s49 = sphi 0, %s48
    %s65 = sphi 0, %s49
    %s71 = sphi 0, %s73
    %s74 = sphi 0, %s71
    %s75 = sphi 0, %s74
    %s91 = sphi 0, %s75
    %s97 = sphi 0, %s99
    %s100 = sphi 0, %s97
    %s101 = sphi 0, %s100
    %s117 = sphi 0, %s101
  $region4: #{decoder_forward.18} parent=0 // loop_header_branch
    %12 = sbr.rel (%p10) target = $region8
  $region5: #{decoder_forward.18} parent=0 // loop_body
    %s14 = ssub.s32 %s9, 1
    %s15 = ssub.s32 %s9, 2
    %s16 = sadd.s32 %s9, 1
    %s17 = ssub.s32 %s9, %s16
    %p18 = scmp.eq.s32.totalorder %s17, 0
    %s20 = sadd.s32 %s19, 1
    %s21 = scalar_select %p18, %s19, %s20
    %p24 = pneg %p18
    %p25 = scmp.eq.s32.totalorder %s9, 1
    %p26 = por %p24, %p25
    %p27 = scmp.ne.s32.totalorder %s19, %s22
    %p28 = scmp.eq.s32.totalorder %s9, 0
    %p29 = por %p27, %p28
    %p30 = scmp.ne.s32.totalorder %s19, %s22
    %p31 = scmp.eq.s32.totalorder %s14, 1
    %p32 = por %p30, %p31
    %p33 = scmp.ne.s32.totalorder %s22, %s23
    %p34 = scmp.eq.s32.totalorder %s14, 0
    %p35 = por %p33, %p34
    %p36 = scmp.ne.s32.totalorder %s22, %s23
    %p37 = scmp.eq.s32.totalorder %s15, 1
    %p38 = por %p36, %p37
    %p40 = scmp.ne.s32.totalorder %s23, %s39
    %p41 = scmp.eq.s32.totalorder %s15, 0
    %p42 = por %p40, %p41
    %s43 = ssub.s32 %s9, %s16
    %p44 = scmp.eq.s32.totalorder %s43, 0
    %s46 = sadd.s32 %s45, 1
    %s47 = scalar_select %p44, %s45, %s46
    %p50 = pneg %p44
    %p51 = scmp.eq.s32.totalorder %s9, 1
    %p52 = por %p50, %p51
    %p53 = scmp.ne.s32.totalorder %s45, %s48
    %p54 = scmp.eq.s32.totalorder %s9, 0
    %p55 = por %p53, %p54
    %p56 = scmp.ne.s32.totalorder %s45, %s48
    %p57 = scmp.eq.s32.totalorder %s14, 1
    %p58 = por %p56, %p57
    %p59 = scmp.ne.s32.totalorder %s48, %s49
    %p60 = scmp.eq.s32.totalorder %s14, 0
    %p61 = por %p59, %p60
    %p62 = scmp.ne.s32.totalorder %s48, %s49
    %p63 = scmp.eq.s32.totalorder %s15, 1
    %p64 = por %p62, %p63
    %p66 = scmp.ne.s32.totalorder %s49, %s65
    %p67 = scmp.eq.s32.totalorder %s15, 0
    %p68 = por %p66, %p67
    %s69 = ssub.s32 %s9, %s16
    %p70 = scmp.eq.s32.totalorder %s69, 0
    %s72 = sadd.s32 %s71, 1
    %s73 = scalar_select %p70, %s71, %s72
    %p76 = pneg %p70
    %p77 = scmp.eq.s32.totalorder %s9, 1
    %p78 = por %p76, %p77
    %p79 = scmp.ne.s32.totalorder %s71, %s74
    %p80 = scmp.eq.s32.totalorder %s9, 0
    %p81 = por %p79, %p80
    %p82 = scmp.ne.s32.totalorder %s71, %s74
    %p83 = scmp.eq.s32.totalorder %s14, 1
    %p84 = por %p82, %p83
    %p85 = scmp.ne.s32.totalorder %s74, %s75
    %p86 = scmp.eq.s32.totalorder %s14, 0
    %p87 = por %p85, %p86
    %p88 = scmp.ne.s32.totalorder %s74, %s75
    %p89 = scmp.eq.s32.totalorder %s15, 1
    %p90 = por %p88, %p89
    %p92 = scmp.ne.s32.totalorder %s75, %s91
    %p93 = scmp.eq.s32.totalorder %s15, 0
    %p94 = por %p92, %p93
    %s95 = ssub.s32 %s9, %s16
    %p96 = scmp.eq.s32.totalorder %s95, 0
    %s98 = sadd.s32 %s97, 1
    %s99 = scalar_select %p96, %s97, %s98
    %p102 = pneg %p96
    %p103 = scmp.eq.s32.totalorder %s9, 1
    %p104 = por %p102, %p103
    %p105 = scmp.ne.s32.totalorder %s97, %s100
    %p106 = scmp.eq.s32.totalorder %s9, 0
    %p107 = por %p105, %p106
    %p108 = scmp.ne.s32.totalorder %s97, %s100
    %p109 = scmp.eq.s32.totalorder %s14, 1
    %p110 = por %p108, %p109
    %p111 = scmp.ne.s32.totalorder %s100, %s101
    %p112 = scmp.eq.s32.totalorder %s14, 0
    %p113 = por %p111, %p112
    %p114 = scmp.ne.s32.totalorder %s100, %s101
    %p115 = scmp.eq.s32.totalorder %s15, 1
    %p116 = por %p114, %p115
    %p118 = scmp.ne.s32.totalorder %s101, %s117
    %p119 = scmp.eq.s32.totalorder %s15, 0
    %p120 = por %p118, %p119
    %p121 = scmp.le.s32.totalorder 1, %s9
    %p122 = scmp.lt.s32.totalorder %s9, 3
    %p123 = pnand %p121, %p122
    %p124 = pneg %p123
    // Predicated region
    $region9: #{decoder_forward.18} parent=5 // pred_check
      _
    $region10: #{decoder_forward.18} parent=5 // pred_check_branch
      %126 = sbr.rel (%p123) target = $region12
    $region11: #{decoder_forward.18} parent=5 // pred_region
      %s127 = ssub.s32 %s9, 1
    $region12: #{decoder_forward.18} parent=5 // pred_fallthru
      _
    %p128 = scmp.lt.s32.totalorder %s9, 2
    // Predicated region
    $region13: #{decoder_forward.18} parent=5 // pred_check
      %p129 = pneg %p128
    $region14: #{decoder_forward.18} parent=5 // pred_check_branch
      %131 = sbr.rel (%p129) target = $region16
    $region15: #{decoder_forward.18} parent=5 // pred_region
      // Predicated region
      $region17: #{decoder_forward.18} parent=15 // pred_check
        %p132 = pneg %p29
      $region18: #{decoder_forward.18} parent=15 // pred_check_branch
        %134 = sbr.rel (%p132) target = $region20
      $region19: #{decoder_forward.18} parent=15 // pred_region
        %p135 = scmp.lt.s32.totalorder %s9, 1
        %s136 = scalar_select %p135, %s9, 1
        %s137 = smul.addr %s136, 8
        %s138 = scalar_lea.vmem %s0, %s137
      $region20: #{decoder_forward.18} parent=15 // pred_fallthru
        _
      // Predicated region
      $region21: #{decoder_forward.18} parent=15 // pred_check
        %p139 = pneg %p55
      $region22: #{decoder_forward.18} parent=15 // pred_check_branch
        %141 = sbr.rel (%p139) target = $region24
      $region23: #{decoder_forward.18} parent=15 // pred_region
        %p142 = scmp.lt.s32.totalorder %s9, 1
        %s143 = scalar_select %p142, %s9, 1
        %s144 = smul.addr %s143, 8
        %s145 = scalar_lea.vmem %s1, %s144
      $region24: #{decoder_forward.18} parent=15 // pred_fallthru
        _
      // Predicated region
      $region25: #{decoder_forward.18} parent=15 // pred_check
        %p146 = pneg %p81
      $region26: #{decoder_forward.18} parent=15 // pred_check_branch
        %148 = sbr.rel (%p146) target = $region28
      $region27: #{decoder_forward.18} parent=15 // pred_region
        %p149 = scmp.lt.s32.totalorder %s9, 1
        %s150 = scalar_select %p149, %s9, 1
        %s151 = smul.addr %s150, 8
        %s152 = scalar_lea.vmem %s2, %s151
      $region28: #{decoder_forward.18} parent=15 // pred_fallthru
        _
    $region16: #{decoder_forward.18} parent=5 // pred_fallthru
      _
    %p153 = scmp.le.s32.totalorder 1, %s9
    %p154 = scmp.lt.s32.totalorder %s9, 3
    %p155 = pnand %p153, %p154
    %p156 = pneg %p155
    // Predicated region
    $region29: #{decoder_forward.18} parent=5 // pred_check
      _
    $region30: #{decoder_forward.18} parent=5 // pred_check_branch
      %158 = sbr.rel (%p155) target = $region32
    $region31: #{decoder_forward.18} parent=5 // pred_region
      %s159 = ssub.s32 %s9, 1
      %p160 = scmp.lt.s32.totalorder %s14, 1
      %s161 = scalar_select %p160, %s14, 1
      %s162 = smul.addr %s161, 8
      %s163 = scalar_lea.vmem %s0, %s162
      %p164 = pneg %p35
      %p165 = pneg %p32
      %p166 = scmp.lt.s32.totalorder %s14, 1
      %s167 = scalar_select %p166, %s14, 1
      %s168 = smul.addr %s167, 8
      %s169 = scalar_lea.vmem %s1, %s168
      %p170 = pneg %p61
      %p171 = pneg %p58
      %p172 = scmp.lt.s32.totalorder %s14, 1
      %s173 = scalar_select %p172, %s14, 1
      %s174 = smul.addr %s173, 8
      %s175 = scalar_lea.vmem %s2, %s174
      %p176 = pneg %p87
      %p177 = pneg %p84
      %p178 = pneg %p113
      %p179 = pneg %p110
      %p180 = scmp.lt.s32.totalorder %s14, 1
      %s181 = scalar_select %p180, %s14, 1
      %s182 = smul.addr %s181, 8
      %s183 = scalar_lea.vmem %s3, %s182
      %p184 = scmp.lt.s32.totalorder %s14, 1
      %s185 = scalar_select %p184, %s14, 1
      %s186 = smul.addr %s185, 8
      %s187 = scalar_lea.vmem %s0, %s186
      %p188 = scmp.lt.s32.totalorder %s14, 1
      %s189 = scalar_select %p188, %s14, 1
      %s190 = smul.addr %s189, 8
      %s191 = scalar_lea.vmem %s1, %s190
      %p192 = scmp.lt.s32.totalorder %s14, 1
      %s193 = scalar_select %p192, %s14, 1
      %s194 = smul.addr %s193, 8
      %s195 = scalar_lea.vmem %s2, %s194
      %p196 = scmp.lt.s32.totalorder %s14, 1
      %s197 = scalar_select %p196, %s14, 1
      %s198 = smul.addr %s197, 8
      %s199 = scalar_lea.vmem %s3, %s198
      %v200 = vld [vmem:[%s187] sm:$0xff]
      %v201 = vld [vmem:[%s191] sm:$0xff]
      %v202 = vld [vmem:[%s195] sm:$0xff]
      %vm203 = vcmask 64512
      %v205 = vsel %vm203, %v200, 0
      %v208 = vsel %vm203, %v201, 0
      %210 = vmatprep.subr.mxu0 0.0
      %211 = vmatpush1.xpose.msra.mxu0 %v208
      %212 = vmatprep.subr.mxu0 0.0
      %213 = vmatpush1.xpose.msra.mxu0 0.0
      %214 = vmatprep.subr.mxu0 0.0
      %215 = vmatpush1.xpose.msra.mxu0 0.0
      %216 = vmatprep.subr.mxu0 0.0
      %217 = vmatpush1.xpose.msra.mxu0 0.0
      %218 = vmatprep.subr.mxu0 0.0
      %219 = vmatpush1.xpose.msra.mxu0 0.0
      %220 = vmatprep.subr.mxu0 0.0
      %221 = vmatpush1.xpose.msra.mxu0 0.0
      %222 = vmatprep.subr.mxu0 0.0
      %223 = vmatpush1.xpose.msra.mxu0 0.0
      %224 = vmatprep.subr.mxu0 0.0
      %225 = vmatpush1.xpose.msra.mxu0 0.0
      %226 = vmatprep.subr.mxu0 0.0
      %227 = vmatpush1.xpose.msra.mxu0 0.0
      %228 = vmatprep.subr.mxu0 0.0
      %229 = vmatpush1.xpose.msra.mxu0 0.0
      %230 = vmatprep.subr.mxu0 0.0
      %231 = vmatpush1.xpose.msra.mxu0 0.0
      %232 = vmatprep.subr.mxu0 0.0
      %233 = vmatpush1.xpose.msra.mxu0 0.0
      %234 = vmatprep.subr.mxu0 0.0
      %235 = vmatpush1.xpose.msra.mxu0 0.0
      %236 = vmatprep.subr.mxu0 0.0
      %237 = vmatpush1.xpose.msra.mxu0 0.0
      %238 = vmatprep.subr.mxu0 0.0
      %239 = vmatpush1.xpose.msra.mxu0 0.0
      %240 = vmatprep.subr.mxu0 0.0
      %241 = vmatpush1.xpose.msra.mxu0 0.0
      %242 = vmatprep.subr.mxu0 0.0
      %243 = vmatpush1.xpose.msra.mxu0 0.0
      %244 = vmatprep.subr.mxu0 0.0
      %245 = vmatpush1.xpose.msra.mxu0 0.0
      %246 = vmatprep.subr.mxu0 0.0
      %247 = vmatpush1.xpose.msra.mxu0 0.0
      %248 = vmatprep.subr.mxu0 0.0
      %249 = vmatpush1.xpose.msra.mxu0 0.0
      %250 = vmatprep.subr.mxu0 0.0
      %251 = vmatpush1.xpose.msra.mxu0 0.0
      %252 = vmatprep.subr.mxu0 0.0
      %253 = vmatpush1.xpose.msra.mxu0 0.0
      %254 = vmatprep.subr.mxu0 0.0
      %255 = vmatpush1.xpose.msra.mxu0 0.0
      %256 = vmatprep.subr.mxu0 0.0
      %257 = vmatpush1.xpose.msra.mxu0 0.0
      %258 = vmatprep.subr.mxu0 0.0
      %259 = vmatpush1.xpose.msra.mxu0 0.0
      %260 = vmatprep.subr.mxu0 0.0
      %261 = vmatpush1.xpose.msra.mxu0 0.0
      %262 = vmatprep.subr.mxu0 0.0
      %263 = vmatpush1.xpose.msra.mxu0 0.0
      %264 = vmatprep.subr.mxu0 0.0
      %265 = vmatpush1.xpose.msra.mxu0 0.0
      %266 = vmatprep.subr.mxu0 0.0
      %267 = vmatpush1.xpose.msra.mxu0 0.0
      %268 = vmatprep.subr.mxu0 0.0
      %269 = vmatpush1.xpose.msra.mxu0 0.0
      %270 = vmatprep.subr.mxu0 0.0
      %271 = vmatpush1.xpose.msra.mxu0 0.0
      %272 = vmatprep.subr.mxu0 0.0
      %273 = vmatpush1.xpose.msra.mxu0 0.0
      %274 = vmatprep.mubr.f32.mxu0 0.0
      %275 = vmatmul.mubr.f32.gmra.mrb[0].mxu0 %v205
      %v276 = vpop.f32.mrb[0].mxu0
      %v277 = vadd.f32 0.0, %v276
      %v278 = vpop.f32.mrb[0].mxu0
      %279 = vdwg.mxu0
      %v280 = vmul.f32 %v277, 0.35355338
      %vm281 = vcmp.eq.f32.partialorder %v202, 0.0
      %v282 = vsel %vm281, -1e+09, %v280
      %v283 = vsel %vm203, %v282, -inf
      %284 = vmax.xlane.f32.xlu0 %v283
      %v285 = vpop.xlane.xlu0 %284
      %v286 = vsub.f32 %v282, %v285
      %v287 = vmul.f32 %v286, 1.442695
      %v288 = vpow.pop %v287
      %v289 = vsel %vm203, %v288, 0.0
      %290 = vadd.xlane.f32.xlu0 %v289
      %v291 = vpop.xlane.xlu0 %290
      %v292 = vrcp.pop %v291
      %v293 = vmul.f32 %v288, %v292
      %294 = vrot.lane.b32.xlu0 %v201, 96
      %v295 = vpop.permute.xlu0 %294
      %v298 = vsel %vm203, %v293, 0
      %300 = vmatprep.subr.mxu0 0.0
      %301 = vmatpush1.msra.mxu0 %v295
      %302 = vmatprep.subr.mxu0 0.0
      %303 = vmatpush1.msra.mxu0 0.0
      %304 = vmatprep.subr.mxu0 0.0
      %305 = vmatpush1.msra.mxu0 0.0
      %306 = vmatprep.subr.mxu0 0.0
      %307 = vmatpush1.msra.mxu0 0.0
      %308 = vmatprep.subr.mxu0 0.0
      %309 = vmatpush1.msra.mxu0 0.0
      %310 = vmatprep.subr.mxu0 0.0
      %311 = vmatpush1.msra.mxu0 0.0
      %312 = vmatprep.subr.mxu0 0.0
      %313 = vmatpush1.msra.mxu0 0.0
      %314 = vmatprep.subr.mxu0 0.0
      %315 = vmatpush1.msra.mxu0 0.0
      %316 = vmatprep.subr.mxu0 0.0
      %317 = vmatpush1.msra.mxu0 0.0
      %318 = vmatprep.subr.mxu0 0.0
      %319 = vmatpush1.msra.mxu0 0.0
      %320 = vmatprep.subr.mxu0 0.0
      %321 = vmatpush1.msra.mxu0 0.0
      %322 = vmatprep.subr.mxu0 0.0
      %323 = vmatpush1.msra.mxu0 0.0
      %324 = vmatprep.subr.mxu0 0.0
      %325 = vmatpush1.msra.mxu0 0.0
      %326 = vmatprep.subr.mxu0 0.0
      %327 = vmatpush1.msra.mxu0 0.0
      %328 = vmatprep.subr.mxu0 0.0
      %329 = vmatpush1.msra.mxu0 0.0
      %330 = vmatprep.subr.mxu0 0.0
      %331 = vmatpush1.msra.mxu0 0.0
      %332 = vmatprep.subr.mxu0 0.0
      %333 = vmatpush1.msra.mxu0 0.0
      %334 = vmatprep.subr.mxu0 0.0
      %335 = vmatpush1.msra.mxu0 0.0
      %336 = vmatprep.subr.mxu0 0.0
      %337 = vmatpush1.msra.mxu0 0.0
      %338 = vmatprep.subr.mxu0 0.0
      %339 = vmatpush1.msra.mxu0 0.0
      %340 = vmatprep.subr.mxu0 0.0
      %341 = vmatpush1.msra.mxu0 0.0
      %342 = vmatprep.subr.mxu0 0.0
      %343 = vmatpush1.msra.mxu0 0.0
      %344 = vmatprep.subr.mxu0 0.0
      %345 = vmatpush1.msra.mxu0 0.0
      %346 = vmatprep.subr.mxu0 0.0
      %347 = vmatpush1.msra.mxu0 0.0
      %348 = vmatprep.subr.mxu0 0.0
      %349 = vmatpush1.msra.mxu0 0.0
      %350 = vmatprep.subr.mxu0 0.0
      %351 = vmatpush1.msra.mxu0 0.0
      %352 = vmatprep.subr.mxu0 0.0
      %353 = vmatpush1.msra.mxu0 0.0
      %354 = vmatprep.subr.mxu0 0.0
      %355 = vmatpush1.msra.mxu0 0.0
      %356 = vmatprep.subr.mxu0 0.0
      %357 = vmatpush1.msra.mxu0 0.0
      %358 = vmatprep.subr.mxu0 0.0
      %359 = vmatpush1.msra.mxu0 0.0
      %360 = vmatprep.subr.mxu0 0.0
      %361 = vmatpush1.msra.mxu0 0.0
      %362 = vmatprep.subr.mxu0 0.0
      %363 = vmatpush1.msra.mxu0 0.0
      %364 = vmatprep.mubr.f32.mxu0 0.0
      %365 = vmatmul.mubr.f32.gmra.mrb[0].mxu0 %v298
      %v366 = vpop.f32.mrb[0].mxu0
      %v367 = vadd.f32 0.0, %v366
      %v368 = vpop.f32.mrb[0].mxu0
      %369 = vdwg.mxu0
      %370 = vrot.lane.b32.xlu0 %v200, 120
      %v371 = vpop.permute.xlu0 %370
      %372 = vrot.lane.b32.xlu0 %v201, 120
      %v373 = vpop.permute.xlu0 %372
      %v374 = vsel %vm203, %v371, 0
      %v376 = vsel %vm203, %v373, 0
      %378 = vmatprep.subr.mxu0 0.0
      %379 = vmatpush1.xpose.msra.mxu0 %v376
      %380 = vmatprep.subr.mxu0 0.0
      %381 = vmatpush1.xpose.msra.mxu0 0.0
      %382 = vmatprep.subr.mxu0 0.0
      %383 = vmatpush1.xpose.msra.mxu0 0.0
      %384 = vmatprep.subr.mxu0 0.0
      %385 = vmatpush1.xpose.msra.mxu0 0.0
      %386 = vmatprep.subr.mxu0 0.0
      %387 = vmatpush1.xpose.msra.mxu0 0.0
      %388 = vmatprep.subr.mxu0 0.0
      %389 = vmatpush1.xpose.msra.mxu0 0.0
      %390 = vmatprep.subr.mxu0 0.0
      %391 = vmatpush1.xpose.msra.mxu0 0.0
      %392 = vmatprep.subr.mxu0 0.0
      %393 = vmatpush1.xpose.msra.mxu0 0.0
      %394 = vmatprep.subr.mxu0 0.0
      %395 = vmatpush1.xpose.msra.mxu0 0.0
      %396 = vmatprep.subr.mxu0 0.0
      %397 = vmatpush1.xpose.msra.mxu0 0.0
      %398 = vmatprep.subr.mxu0 0.0
      %399 = vmatpush1.xpose.msra.mxu0 0.0
      %400 = vmatprep.subr.mxu0 0.0
      %401 = vmatpush1.xpose.msra.mxu0 0.0
      %402 = vmatprep.subr.mxu0 0.0
      %403 = vmatpush1.xpose.msra.mxu0 0.0
      %404 = vmatprep.subr.mxu0 0.0
      %405 = vmatpush1.xpose.msra.mxu0 0.0
      %406 = vmatprep.subr.mxu0 0.0
      %407 = vmatpush1.xpose.msra.mxu0 0.0
      %408 = vmatprep.subr.mxu0 0.0
      %409 = vmatpush1.xpose.msra.mxu0 0.0
      %410 = vmatprep.subr.mxu0 0.0
      %411 = vmatpush1.xpose.msra.mxu0 0.0
      %412 = vmatprep.subr.mxu0 0.0
      %413 = vmatpush1.xpose.msra.mxu0 0.0
      %414 = vmatprep.subr.mxu0 0.0
      %415 = vmatpush1.xpose.msra.mxu0 0.0
      %416 = vmatprep.subr.mxu0 0.0
      %417 = vmatpush1.xpose.msra.mxu0 0.0
      %418 = vmatprep.subr.mxu0 0.0
      %419 = vmatpush1.xpose.msra.mxu0 0.0
      %420 = vmatprep.subr.mxu0 0.0
      %421 = vmatpush1.xpose.msra.mxu0 0.0
      %422 = vmatprep.subr.mxu0 0.0
      %423 = vmatpush1.xpose.msra.mxu0 0.0
      %424 = vmatprep.subr.mxu0 0.0
      %425 = vmatpush1.xpose.msra.mxu0 0.0
      %426 = vmatprep.subr.mxu0 0.0
      %427 = vmatpush1.xpose.msra.mxu0 0.0
      %428 = vmatprep.subr.mxu0 0.0
      %429 = vmatpush1.xpose.msra.mxu0 0.0
      %430 = vmatprep.subr.mxu0 0.0
      %431 = vmatpush1.xpose.msra.mxu0 0.0
      %432 = vmatprep.subr.mxu0 0.0
      %433 = vmatpush1.xpose.msra.mxu0 0.0
      %434 = vmatprep.subr.mxu0 0.0
      %435 = vmatpush1.xpose.msra.mxu0 0.0
      %436 = vmatprep.subr.mxu0 0.0
      %437 = vmatpush1.xpose.msra.mxu0 0.0
      %438 = vmatprep.subr.mxu0 0.0
      %439 = vmatpush1.xpose.msra.mxu0 0.0
      %440 = vmatprep.subr.mxu0 0.0
      %441 = vmatpush1.xpose.msra.mxu0 0.0
      %442 = vmatprep.mubr.f32.mxu0 0.0
      %443 = vmatmul.mubr.f32.gmra.mrb[0].mxu0 %v374
      %v444 = vpop.f32.mrb[0].mxu0
      %v445 = vadd.f32 0.0, %v444
      %v446 = vpop.f32.mrb[0].mxu0
      %447 = vdwg.mxu0
      %v448 = vmul.f32 %v445, 0.35355338
      %v449 = vsel %vm281, -1e+09, %v448
      %v450 = vsel %vm203, %v449, -inf
      %451 = vmax.xlane.f32.xlu0 %v450
      %v452 = vpop.xlane.xlu0 %451
      %v453 = vsub.f32 %v449, %v452
      %v454 = vmul.f32 %v453, 1.442695
      %v455 = vpow.pop %v454
      %v456 = vsel %vm203, %v455, 0.0
      %457 = vadd.xlane.f32.xlu0 %v456
      %v458 = vpop.xlane.xlu0 %457
      %v459 = vrcp.pop %v458
      %v460 = vmul.f32 %v455, %v459
      %461 = vrot.lane.b32.xlu0 %v201, 88
      %v462 = vpop.permute.xlu0 %461
      %v465 = vsel %vm203, %v460, 0
      %467 = vmatprep.subr.mxu0 0.0
      %468 = vmatpush1.msra.mxu0 %v462
      %469 = vmatprep.subr.mxu0 0.0
      %470 = vmatpush1.msra.mxu0 0.0
      %471 = vmatprep.subr.mxu0 0.0
      %472 = vmatpush1.msra.mxu0 0.0
      %473 = vmatprep.subr.mxu0 0.0
      %474 = vmatpush1.msra.mxu0 0.0
      %475 = vmatprep.subr.mxu0 0.0
      %476 = vmatpush1.msra.mxu0 0.0
      %477 = vmatprep.subr.mxu0 0.0
      %478 = vmatpush1.msra.mxu0 0.0
      %479 = vmatprep.subr.mxu0 0.0
      %480 = vmatpush1.msra.mxu0 0.0
      %481 = vmatprep.subr.mxu0 0.0
      %482 = vmatpush1.msra.mxu0 0.0
      %483 = vmatprep.subr.mxu0 0.0
      %484 = vmatpush1.msra.mxu0 0.0
      %485 = vmatprep.subr.mxu0 0.0
      %486 = vmatpush1.msra.mxu0 0.0
      %487 = vmatprep.subr.mxu0 0.0
      %488 = vmatpush1.msra.mxu0 0.0
      %489 = vmatprep.subr.mxu0 0.0
      %490 = vmatpush1.msra.mxu0 0.0
      %491 = vmatprep.subr.mxu0 0.0
      %492 = vmatpush1.msra.mxu0 0.0
      %493 = vmatprep.subr.mxu0 0.0
      %494 = vmatpush1.msra.mxu0 0.0
      %495 = vmatprep.subr.mxu0 0.0
      %496 = vmatpush1.msra.mxu0 0.0
      %497 = vmatprep.subr.mxu0 0.0
      %498 = vmatpush1.msra.mxu0 0.0
      %499 = vmatprep.subr.mxu0 0.0
      %500 = vmatpush1.msra.mxu0 0.0
      %501 = vmatprep.subr.mxu0 0.0
      %502 = vmatpush1.msra.mxu0 0.0
      %503 = vmatprep.subr.mxu0 0.0
      %504 = vmatpush1.msra.mxu0 0.0
      %505 = vmatprep.subr.mxu0 0.0
      %506 = vmatpush1.msra.mxu0 0.0
      %507 = vmatprep.subr.mxu0 0.0
      %508 = vmatpush1.msra.mxu0 0.0
      %509 = vmatprep.subr.mxu0 0.0
      %510 = vmatpush1.msra.mxu0 0.0
      %511 = vmatprep.subr.mxu0 0.0
      %512 = vmatpush1.msra.mxu0 0.0
      %513 = vmatprep.subr.mxu0 0.0
      %514 = vmatpush1.msra.mxu0 0.0
      %515 = vmatprep.subr.mxu0 0.0
      %516 = vmatpush1.msra.mxu0 0.0
      %517 = vmatprep.subr.mxu0 0.0
      %518 = vmatpush1.msra.mxu0 0.0
      %519 = vmatprep.subr.mxu0 0.0
      %520 = vmatpush1.msra.mxu0 0.0
      %521 = vmatprep.subr.mxu0 0.0
      %522 = vmatpush1.msra.mxu0 0.0
      %523 = vmatprep.subr.mxu0 0.0
      %524 = vmatpush1.msra.mxu0 0.0
      %525 = vmatprep.subr.mxu0 0.0
      %526 = vmatpush1.msra.mxu0 0.0
      %527 = vmatprep.subr.mxu0 0.0
      %528 = vmatpush1.msra.mxu0 0.0
      %529 = vmatprep.subr.mxu0 0.0
      %530 = vmatpush1.msra.mxu0 0.0
      %531 = vmatprep.mubr.f32.mxu0 0.0
      %532 = vmatmul.mubr.f32.gmra.mrb[0].mxu0 %v465
      %v533 = vpop.f32.mrb[0].mxu0
      %v534 = vadd.f32 0.0, %v533
      %v535 = vpop.f32.mrb[0].mxu0
      %536 = vdwg.mxu0
      %537 = vrot.lane.b32.xlu0 %v200, 112
      %v538 = vpop.permute.xlu0 %537
      %539 = vrot.lane.b32.xlu0 %v201, 112
      %v540 = vpop.permute.xlu0 %539
      %v541 = vsel %vm203, %v538, 0
      %v543 = vsel %vm203, %v540, 0
      %545 = vmatprep.subr.mxu0 0.0
      %546 = vmatpush1.xpose.msra.mxu0 %v543
      %547 = vmatprep.subr.mxu0 0.0
      %548 = vmatpush1.xpose.msra.mxu0 0.0
      %549 = vmatprep.subr.mxu0 0.0
      %550 = vmatpush1.xpose.msra.mxu0 0.0
      %551 = vmatprep.subr.mxu0 0.0
      %552 = vmatpush1.xpose.msra.mxu0 0.0
      %553 = vmatprep.subr.mxu0 0.0
      %554 = vmatpush1.xpose.msra.mxu0 0.0
      %555 = vmatprep.subr.mxu0 0.0
      %556 = vmatpush1.xpose.msra.mxu0 0.0
      %557 = vmatprep.subr.mxu0 0.0
      %558 = vmatpush1.xpose.msra.mxu0 0.0
      %559 = vmatprep.subr.mxu0 0.0
      %560 = vmatpush1.xpose.msra.mxu0 0.0
      %561 = vmatprep.subr.mxu0 0.0
      %562 = vmatpush1.xpose.msra.mxu0 0.0
      %563 = vmatprep.subr.mxu0 0.0
      %564 = vmatpush1.xpose.msra.mxu0 0.0
      %565 = vmatprep.subr.mxu0 0.0
      %566 = vmatpush1.xpose.msra.mxu0 0.0
      %567 = vmatprep.subr.mxu0 0.0
      %568 = vmatpush1.xpose.msra.mxu0 0.0
      %569 = vmatprep.subr.mxu0 0.0
      %570 = vmatpush1.xpose.msra.mxu0 0.0
      %571 = vmatprep.subr.mxu0 0.0
      %572 = vmatpush1.xpose.msra.mxu0 0.0
      %573 = vmatprep.subr.mxu0 0.0
      %574 = vmatpush1.xpose.msra.mxu0 0.0
      %575 = vmatprep.subr.mxu0 0.0
      %576 = vmatpush1.xpose.msra.mxu0 0.0
      %577 = vmatprep.subr.mxu0 0.0
      %578 = vmatpush1.xpose.msra.mxu0 0.0
      %579 = vmatprep.subr.mxu0 0.0
      %580 = vmatpush1.xpose.msra.mxu0 0.0
      %581 = vmatprep.subr.mxu0 0.0
      %582 = vmatpush1.xpose.msra.mxu0 0.0
      %583 = vmatprep.subr.mxu0 0.0
      %584 = vmatpush1.xpose.msra.mxu0 0.0
      %585 = vmatprep.subr.mxu0 0.0
      %586 = vmatpush1.xpose.msra.mxu0 0.0
      %587 = vmatprep.subr.mxu0 0.0
      %588 = vmatpush1.xpose.msra.mxu0 0.0
      %589 = vmatprep.subr.mxu0 0.0
      %590 = vmatpush1.xpose.msra.mxu0 0.0
      %591 = vmatprep.subr.mxu0 0.0
      %592 = vmatpush1.xpose.msra.mxu0 0.0
      %593 = vmatprep.subr.mxu0 0.0
      %594 = vmatpush1.xpose.msra.mxu0 0.0
      %595 = vmatprep.subr.mxu0 0.0
      %596 = vmatpush1.xpose.msra.mxu0 0.0
      %597 = vmatprep.subr.mxu0 0.0
      %598 = vmatpush1.xpose.msra.mxu0 0.0
      %599 = vmatprep.subr.mxu0 0.0
      %600 = vmatpush1.xpose.msra.mxu0 0.0
      %601 = vmatprep.subr.mxu0 0.0
      %602 = vmatpush1.xpose.msra.mxu0 0.0
      %603 = vmatprep.subr.mxu0 0.0
      %604 = vmatpush1.xpose.msra.mxu0 0.0
      %605 = vmatprep.subr.mxu0 0.0
      %606 = vmatpush1.xpose.msra.mxu0 0.0
      %607 = vmatprep.subr.mxu0 0.0
      %608 = vmatpush1.xpose.msra.mxu0 0.0
      %609 = vmatprep.mubr.f32.mxu0 0.0
      %610 = vmatmul.mubr.f32.gmra.mrb[0].mxu0 %v541
      %v611 = vpop.f32.mrb[0].mxu0
      %v612 = vadd.f32 0.0, %v611
      %v613 = vpop.f32.mrb[0].mxu0
      %614 = vdwg.mxu0
      %v615 = vmul.f32 %v612, 0.35355338
      %v616 = vsel %vm281, -1e+09, %v615
      %v617 = vsel %vm203, %v616, -inf
      %618 = vmax.xlane.f32.xlu0 %v617
      %v619 = vpop.xlane.xlu0 %618
      %v620 = vsub.f32 %v616, %v619
      %v621 = vmul.f32 %v620, 1.442695
      %v622 = vpow.pop %v621
      %v623 = vsel %vm203, %v622, 0.0
      %624 = vadd.xlane.f32.xlu0 %v623
      %v625 = vpop.xlane.xlu0 %624
      %v626 = vrcp.pop %v625
      %v627 = vmul.f32 %v622, %v626
      %628 = vrot.lane.b32.xlu0 %v201, 80
      %v629 = vpop.permute.xlu0 %628
      %v632 = vsel %vm203, %v627, 0
      %634 = vmatprep.subr.mxu0 0.0
      %635 = vmatpush1.msra.mxu0 %v629
      %636 = vmatprep.subr.mxu0 0.0
      %637 = vmatpush1.msra.mxu0 0.0
      %638 = vmatprep.subr.mxu0 0.0
      %639 = vmatpush1.msra.mxu0 0.0
      %640 = vmatprep.subr.mxu0 0.0
      %641 = vmatpush1.msra.mxu0 0.0
      %642 = vmatprep.subr.mxu0 0.0
      %643 = vmatpush1.msra.mxu0 0.0
      %644 = vmatprep.subr.mxu0 0.0
      %645 = vmatpush1.msra.mxu0 0.0
      %646 = vmatprep.subr.mxu0 0.0
      %647 = vmatpush1.msra.mxu0 0.0
      %648 = vmatprep.subr.mxu0 0.0
      %649 = vmatpush1.msra.mxu0 0.0
      %650 = vmatprep.subr.mxu0 0.0
      %651 = vmatpush1.msra.mxu0 0.0
      %652 = vmatprep.subr.mxu0 0.0
      %653 = vmatpush1.msra.mxu0 0.0
      %654 = vmatprep.subr.mxu0 0.0
      %655 = vmatpush1.msra.mxu0 0.0
      %656 = vmatprep.subr.mxu0 0.0
      %657 = vmatpush1.msra.mxu0 0.0
      %658 = vmatprep.subr.mxu0 0.0
      %659 = vmatpush1.msra.mxu0 0.0
      %660 = vmatprep.subr.mxu0 0.0
      %661 = vmatpush1.msra.mxu0 0.0
      %662 = vmatprep.subr.mxu0 0.0
      %663 = vmatpush1.msra.mxu0 0.0
      %664 = vmatprep.subr.mxu0 0.0
      %665 = vmatpush1.msra.mxu0 0.0
      %666 = vmatprep.subr.mxu0 0.0
      %667 = vmatpush1.msra.mxu0 0.0
      %668 = vmatprep.subr.mxu0 0.0
      %669 = vmatpush1.msra.mxu0 0.0
      %670 = vmatprep.subr.mxu0 0.0
      %671 = vmatpush1.msra.mxu0 0.0
      %672 = vmatprep.subr.mxu0 0.0
      %673 = vmatpush1.msra.mxu0 0.0
      %674 = vmatprep.subr.mxu0 0.0
      %675 = vmatpush1.msra.mxu0 0.0
      %676 = vmatprep.subr.mxu0 0.0
      %677 = vmatpush1.msra.mxu0 0.0
      %678 = vmatprep.subr.mxu0 0.0
      %679 = vmatpush1.msra.mxu0 0.0
      %680 = vmatprep.subr.mxu0 0.0
      %681 = vmatpush1.msra.mxu0 0.0
      %682 = vmatprep.subr.mxu0 0.0
      %683 = vmatpush1.msra.mxu0 0.0
      %684 = vmatprep.subr.mxu0 0.0
      %685 = vmatpush1.msra.mxu0 0.0
      %686 = vmatprep.subr.mxu0 0.0
      %687 = vmatpush1.msra.mxu0 0.0
      %688 = vmatprep.subr.mxu0 0.0
      %689 = vmatpush1.msra.mxu0 0.0
      %690 = vmatprep.subr.mxu0 0.0
      %691 = vmatpush1.msra.mxu0 0.0
      %692 = vmatprep.subr.mxu0 0.0
      %693 = vmatpush1.msra.mxu0 0.0
      %694 = vmatprep.subr.mxu0 0.0
      %695 = vmatpush1.msra.mxu0 0.0
      %696 = vmatprep.subr.mxu0 0.0
      %697 = vmatpush1.msra.mxu0 0.0
      %698 = vmatprep.mubr.f32.mxu0 0.0
      %699 = vmatmul.mubr.f32.gmra.mrb[0].mxu0 %v632
      %v700 = vpop.f32.mrb[0].mxu0
      %v701 = vadd.f32 0.0, %v700
      %v702 = vpop.f32.mrb[0].mxu0
      %703 = vdwg.mxu0
      %704 = vrot.lane.b32.xlu0 %v200, 104
      %v705 = vpop.permute.xlu0 %704
      %706 = vrot.lane.b32.xlu0 %v201, 104
      %v707 = vpop.permute.xlu0 %706
      %v708 = vsel %vm203, %v705, 0
      %v710 = vsel %vm203, %v707, 0
      %712 = vmatprep.subr.mxu0 0.0
      %713 = vmatpush1.xpose.msra.mxu0 %v710
      %714 = vmatprep.subr.mxu0 0.0
      %715 = vmatpush1.xpose.msra.mxu0 0.0
      %716 = vmatprep.subr.mxu0 0.0
      %717 = vmatpush1.xpose.msra.mxu0 0.0
      %718 = vmatprep.subr.mxu0 0.0
      %719 = vmatpush1.xpose.msra.mxu0 0.0
      %720 = vmatprep.subr.mxu0 0.0
      %721 = vmatpush1.xpose.msra.mxu0 0.0
      %722 = vmatprep.subr.mxu0 0.0
      %723 = vmatpush1.xpose.msra.mxu0 0.0
      %724 = vmatprep.subr.mxu0 0.0
      %725 = vmatpush1.xpose.msra.mxu0 0.0
      %726 = vmatprep.subr.mxu0 0.0
      %727 = vmatpush1.xpose.msra.mxu0 0.0
      %728 = vmatprep.subr.mxu0 0.0
      %729 = vmatpush1.xpose.msra.mxu0 0.0
      %730 = vmatprep.subr.mxu0 0.0
      %731 = vmatpush1.xpose.msra.mxu0 0.0
      %732 = vmatprep.subr.mxu0 0.0
      %733 = vmatpush1.xpose.msra.mxu0 0.0
      %734 = vmatprep.subr.mxu0 0.0
      %735 = vmatpush1.xpose.msra.mxu0 0.0
      %736 = vmatprep.subr.mxu0 0.0
      %737 = vmatpush1.xpose.msra.mxu0 0.0
      %738 = vmatprep.subr.mxu0 0.0
      %739 = vmatpush1.xpose.msra.mxu0 0.0
      %740 = vmatprep.subr.mxu0 0.0
      %741 = vmatpush1.xpose.msra.mxu0 0.0
      %742 = vmatprep.subr.mxu0 0.0
      %743 = vmatpush1.xpose.msra.mxu0 0.0
      %744 = vmatprep.subr.mxu0 0.0
      %745 = vmatpush1.xpose.msra.mxu0 0.0
      %746 = vmatprep.subr.mxu0 0.0
      %747 = vmatpush1.xpose.msra.mxu0 0.0
      %748 = vmatprep.subr.mxu0 0.0
      %749 = vmatpush1.xpose.msra.mxu0 0.0
      %750 = vmatprep.subr.mxu0 0.0
      %751 = vmatpush1.xpose.msra.mxu0 0.0
      %752 = vmatprep.subr.mxu0 0.0
      %753 = vmatpush1.xpose.msra.mxu0 0.0
      %754 = vmatprep.subr.mxu0 0.0
      %755 = vmatpush1.xpose.msra.mxu0 0.0
      %756 = vmatprep.subr.mxu0 0.0
      %757 = vmatpush1.xpose.msra.mxu0 0.0
      %758 = vmatprep.subr.mxu0 0.0
      %759 = vmatpush1.xpose.msra.mxu0 0.0
      %760 = vmatprep.subr.mxu0 0.0
      %761 = vmatpush1.xpose.msra.mxu0 0.0
      %762 = vmatprep.subr.mxu0 0.0
      %763 = vmatpush1.xpose.msra.mxu0 0.0
      %764 = vmatprep.subr.mxu0 0.0
      %765 = vmatpush1.xpose.msra.mxu0 0.0
      %766 = vmatprep.subr.mxu0 0.0
      %767 = vmatpush1.xpose.msra.mxu0 0.0
      %768 = vmatprep.subr.mxu0 0.0
      %769 = vmatpush1.xpose.msra.mxu0 0.0
      %770 = vmatprep.subr.mxu0 0.0
      %771 = vmatpush1.xpose.msra.mxu0 0.0
      %772 = vmatprep.subr.mxu0 0.0
      %773 = vmatpush1.xpose.msra.mxu0 0.0
      %774 = vmatprep.subr.mxu0 0.0
      %775 = vmatpush1.xpose.msra.mxu0 0.0
      %776 = vmatprep.mubr.f32.mxu0 0.0
      %777 = vmatmul.mubr.f32.gmra.mrb[0].mxu0 %v708
      %v778 = vpop.f32.mrb[0].mxu0
      %v779 = vadd.f32 0.0, %v778
      %v780 = vpop.f32.mrb[0].mxu0
      %781 = vdwg.mxu0
      %v782 = vmul.f32 %v779, 0.35355338
      %v783 = vsel %vm281, -1e+09, %v782
      %v784 = vsel %vm203, %v783, -inf
      %785 = vmax.xlane.f32.xlu0 %v784
      %v786 = vpop.xlane.xlu0 %785
      %v787 = vsub.f32 %v783, %v786
      %v788 = vmul.f32 %v787, 1.442695
      %v789 = vpow.pop %v788
      %v790 = vsel %vm203, %v789, 0.0
      %791 = vadd.xlane.f32.xlu0 %v790
      %v792 = vpop.xlane.xlu0 %791
      %v793 = vrcp.pop %v792
      %v794 = vmul.f32 %v789, %v793
      %795 = vrot.lane.b32.xlu0 %v201, 72
      %v796 = vpop.permute.xlu0 %795
      %v799 = vsel %vm203, %v794, 0
      %801 = vmatprep.subr.mxu0 0.0
      %802 = vmatpush1.msra.mxu0 %v796
      %803 = vmatprep.subr.mxu0 0.0
      %804 = vmatpush1.msra.mxu0 0.0
      %805 = vmatprep.subr.mxu0 0.0
      %806 = vmatpush1.msra.mxu0 0.0
      %807 = vmatprep.subr.mxu0 0.0
      %808 = vmatpush1.msra.mxu0 0.0
      %809 = vmatprep.subr.mxu0 0.0
      %810 = vmatpush1.msra.mxu0 0.0
      %811 = vmatprep.subr.mxu0 0.0
      %812 = vmatpush1.msra.mxu0 0.0
      %813 = vmatprep.subr.mxu0 0.0
      %814 = vmatpush1.msra.mxu0 0.0
      %815 = vmatprep.subr.mxu0 0.0
      %816 = vmatpush1.msra.mxu0 0.0
      %817 = vmatprep.subr.mxu0 0.0
      %818 = vmatpush1.msra.mxu0 0.0
      %819 = vmatprep.subr.mxu0 0.0
      %820 = vmatpush1.msra.mxu0 0.0
      %821 = vmatprep.subr.mxu0 0.0
      %822 = vmatpush1.msra.mxu0 0.0
      %823 = vmatprep.subr.mxu0 0.0
      %824 = vmatpush1.msra.mxu0 0.0
      %825 = vmatprep.subr.mxu0 0.0
      %826 = vmatpush1.msra.mxu0 0.0
      %827 = vmatprep.subr.mxu0 0.0
      %828 = vmatpush1.msra.mxu0 0.0
      %829 = vmatprep.subr.mxu0 0.0
      %830 = vmatpush1.msra.mxu0 0.0
      %831 = vmatprep.subr.mxu0 0.0
      %832 = vmatpush1.msra.mxu0 0.0
      %833 = vmatprep.subr.mxu0 0.0
      %834 = vmatpush1.msra.mxu0 0.0
      %835 = vmatprep.subr.mxu0 0.0
      %836 = vmatpush1.msra.mxu0 0.0
      %837 = vmatprep.subr.mxu0 0.0
      %838 = vmatpush1.msra.mxu0 0.0
      %839 = vmatprep.subr.mxu0 0.0
      %840 = vmatpush1.msra.mxu0 0.0
      %841 = vmatprep.subr.mxu0 0.0
      %842 = vmatpush1.msra.mxu0 0.0
      %843 = vmatprep.subr.mxu0 0.0
      %844 = vmatpush1.msra.mxu0 0.0
      %845 = vmatprep.subr.mxu0 0.0
      %846 = vmatpush1.msra.mxu0 0.0
      %847 = vmatprep.subr.mxu0 0.0
      %848 = vmatpush1.msra.mxu0 0.0
      %849 = vmatprep.subr.mxu0 0.0
      %850 = vmatpush1.msra.mxu0 0.0
      %851 = vmatprep.subr.mxu0 0.0
      %852 = vmatpush1.msra.mxu0 0.0
      %853 = vmatprep.subr.mxu0 0.0
      %854 = vmatpush1.msra.mxu0 0.0
      %855 = vmatprep.subr.mxu0 0.0
      %856 = vmatpush1.msra.mxu0 0.0
      %857 = vmatprep.subr.mxu0 0.0
      %858 = vmatpush1.msra.mxu0 0.0
      %859 = vmatprep.subr.mxu0 0.0
      %860 = vmatpush1.msra.mxu0 0.0
      %861 = vmatprep.subr.mxu0 0.0
      %862 = vmatpush1.msra.mxu0 0.0
      %863 = vmatprep.subr.mxu0 0.0
      %864 = vmatpush1.msra.mxu0 0.0
      %865 = vmatprep.mubr.f32.mxu0 0.0
      %866 = vmatmul.mubr.f32.gmra.mrb[0].mxu0 %v799
      %v867 = vpop.f32.mrb[0].mxu0
      %v868 = vadd.f32 0.0, %v867
      %v869 = vpop.f32.mrb[0].mxu0
      %870 = vdwg.mxu0
      %872 = vrot.lane.b32.xlu0 %v534, 8
      %v873 = vpop.permute.xlu0 %872
      %876 = vrot.lane.b32.xlu0 %v701, 16
      %v877 = vpop.permute.xlu0 %876
      %880 = vrot.lane.b32.xlu0 %v868, 24
      %v881 = vpop.permute.xlu0 %880
      %v883 = vsel %vm203, %v367, %v873
      %vm884 = vcmask 130048
      %v885 = vsel %vm884, %v883, %v877
      %vm886 = vcmask 195584
      %v887 = vsel %vm886, %v885, %v881
      %vm888 = vcmask 261120
      %889 = vst.msk [vmem:[%s199] sm:$0xff] %vm888, %v887
      %p890 = scmp.lt.s32.totalorder %s14, 1
      %s891 = scalar_select %p890, %s14, 1
      %s892 = smul.addr %s891, 8
      %s893 = scalar_lea.vmem %s3, %s892
      // Predicated region
      $region33: #{decoder_forward.18} parent=31 // pred_check
        %p894 = pneg %p110
      $region34: #{decoder_forward.18} parent=31 // pred_check_branch
        %896 = sbr.rel (%p894) target = $region36
      $region35: #{decoder_forward.18} parent=31 // pred_region
        _
      $region36: #{decoder_forward.18} parent=31 // pred_fallthru
        _
    $region32: #{decoder_forward.18} parent=5 // pred_fallthru
      _
    %p897 = scmp.le.s32.totalorder 2, %s9
    // Predicated region
    $region37: #{decoder_forward.18} parent=5 // pred_check
      %p898 = pneg %p897
    $region38: #{decoder_forward.18} parent=5 // pred_check_branch
      %900 = sbr.rel (%p898) target = $region40
    $region39: #{decoder_forward.18} parent=5 // pred_region
      %s901 = ssub.s32 %s9, 2
      // Predicated region
      $region41: #{decoder_forward.18} parent=39 // pred_check
        %p902 = pneg %p116
      $region42: #{decoder_forward.18} parent=39 // pred_check_branch
        %904 = sbr.rel (%p902) target = $region44
      $region43: #{decoder_forward.18} parent=39 // pred_region
        %p905 = scmp.lt.s32.totalorder %s15, 1
        %s906 = scalar_select %p905, %s15, 1
        %s907 = smul.addr %s906, 8
        %s908 = scalar_lea.vmem %s3, %s907
      $region44: #{decoder_forward.18} parent=39 // pred_fallthru
        _
    $region40: #{decoder_forward.18} parent=5 // pred_fallthru
      _
  $region6: #{decoder_forward.18} parent=0 // loop_footer
    %s13 = sadd.s32 1, %s9
  $region7: #{decoder_forward.18} parent=0 // loop_footer_branch
    %8 = sbr.rel target = $region3
  $region8: #{decoder_forward.18} parent=0 // loop_exit
    _

// kernel: decoder_forward.20
$region0: #{decoder_forward.20}
  #allocation0 [shape = 'u32[]', space=smem, size = 0x4, offset = 0x4, fixed_abs, tag = 'smem constant byte address 0x4 - core index']
  #allocation1 [shape = 'u32[144,128]{1,0:T(1,128)}', space=vmem, size = 0x12000, scoped, tag = 'internal scratch']
  %s0 = inlined_call_operand.vmem [shape: f32[16,32], index: 0, kind: input, shape index: {}]
  %s1 = inlined_call_operand.vmem [shape: f32[1,32], index: 1, kind: input, shape index: {}]
  %s2 = inlined_call_operand.vmem [shape: f32[1,32], index: 2, kind: input, shape index: {}]
  %s3 = inlined_call_operand.vmem [shape: f32[32,32], index: 3, kind: input, shape index: {}]
  %s4 = inlined_call_operand.vmem [shape: f32[1,32], index: 4, kind: input, shape index: {}]
  %s5 = inlined_call_operand.vmem [shape: f32[16,32], index: 5, kind: output, shape index: {}]
  %s6 = sld [smem:[#allocation0]]
  $region53: #{decoder_forward.20} parent=0
    _
  %s8 = ssub.s32 1, %s6
  %s9 = scalar_select 0, %s8, %s6
  loop: start=0, step=1, limit=4
  $region2: #{decoder_forward.20} parent=0 // loop_pre_header
    _
  $region3: #{decoder_forward.20} parent=0 // loop_header
    %s11 = sphi 0, %s15
    %p12 = scmp.ge.s32.totalorder %s11, 4
    %s21 = sphi 0, %s23
    %s24 = sphi 0, %s21
    %s25 = sphi 0, %s24
    %s41 = sphi 0, %s25
    %s45 = sphi 0, %s45
    %s47 = sphi 0, %s45
    %s48 = sphi 0, %s47
    %s62 = sphi 0, %s48
    %s66 = sphi 0, %s66
    %s68 = sphi 0, %s66
    %s69 = sphi 0, %s68
    %s83 = sphi 0, %s69
    %s87 = sphi 0, %s87
    %s89 = sphi 0, %s87
    %s90 = sphi 0, %s89
    %s104 = sphi 0, %s90
    %s108 = sphi 0, %s108
    %s110 = sphi 0, %s108
    %s111 = sphi 0, %s110
    %s125 = sphi 0, %s111
    %s131 = sphi 0, %s133
    %s134 = sphi 0, %s131
    %s135 = sphi 0, %s134
    %s151 = sphi 0, %s135
  $region4: #{decoder_forward.20} parent=0 // loop_header_branch
    %14 = sbr.rel (%p12) target = $region8
  $region5: #{decoder_forward.20} parent=0 // loop_body
    %s16 = ssub.s32 %s11, 1
    %s17 = ssub.s32 %s11, 2
    %s18 = sadd.s32 %s11, 1
    %s19 = ssub.s32 %s11, %s18
    %p20 = scmp.eq.s32.totalorder %s19, 0
    %s22 = sadd.s32 %s21, 1
    %s23 = scalar_select %p20, %s21, %s22
    %p26 = pneg %p20
    %p27 = scmp.eq.s32.totalorder %s11, 1
    %p28 = por %p26, %p27
    %p29 = scmp.ne.s32.totalorder %s21, %s24
    %p30 = scmp.eq.s32.totalorder %s11, 0
    %p31 = por %p29, %p30
    %p32 = scmp.ne.s32.totalorder %s21, %s24
    %p33 = scmp.eq.s32.totalorder %s16, 1
    %p34 = por %p32, %p33
    %p35 = scmp.ne.s32.totalorder %s24, %s25
    %p36 = scmp.eq.s32.totalorder %s16, 0
    %p37 = por %p35, %p36
    %p38 = scmp.ne.s32.totalorder %s24, %s25
    %p39 = scmp.eq.s32.totalorder %s17, 1
    %p40 = por %p38, %p39
    %p42 = scmp.ne.s32.totalorder %s25, %s41
    %p43 = scmp.eq.s32.totalorder %s17, 0
    %p44 = por %p42, %p43
    %s46 = sadd.s32 %s45, 1
    %p49 = scmp.eq.s32.totalorder %s11, 1
    %p50 = scmp.ne.s32.totalorder %s45, %s47
    %p51 = scmp.eq.s32.totalorder %s11, 0
    %p52 = por %p50, %p51
    %p53 = scmp.ne.s32.totalorder %s45, %s47
    %p54 = scmp.eq.s32.totalorder %s16, 1
    %p55 = por %p53, %p54
    %p56 = scmp.ne.s32.totalorder %s47, %s48
    %p57 = scmp.eq.s32.totalorder %s16, 0
    %p58 = por %p56, %p57
    %p59 = scmp.ne.s32.totalorder %s47, %s48
    %p60 = scmp.eq.s32.totalorder %s17, 1
    %p61 = por %p59, %p60
    %p63 = scmp.ne.s32.totalorder %s48, %s62
    %p64 = scmp.eq.s32.totalorder %s17, 0
    %p65 = por %p63, %p64
    %s67 = sadd.s32 %s66, 1
    %p70 = scmp.eq.s32.totalorder %s11, 1
    %p71 = scmp.ne.s32.totalorder %s66, %s68
    %p72 = scmp.eq.s32.totalorder %s11, 0
    %p73 = por %p71, %p72
    %p74 = scmp.ne.s32.totalorder %s66, %s68
    %p75 = scmp.eq.s32.totalorder %s16, 1
    %p76 = por %p74, %p75
    %p77 = scmp.ne.s32.totalorder %s68, %s69
    %p78 = scmp.eq.s32.totalorder %s16, 0
    %p79 = por %p77, %p78
    %p80 = scmp.ne.s32.totalorder %s68, %s69
    %p81 = scmp.eq.s32.totalorder %s17, 1
    %p82 = por %p80, %p81
    %p84 = scmp.ne.s32.totalorder %s69, %s83
    %p85 = scmp.eq.s32.totalorder %s17, 0
    %p86 = por %p84, %p85
    %s88 = sadd.s32 %s87, 1
    %p91 = scmp.eq.s32.totalorder %s11, 1
    %p92 = scmp.ne.s32.totalorder %s87, %s89
    %p93 = scmp.eq.s32.totalorder %s11, 0
    %p94 = por %p92, %p93
    %p95 = scmp.ne.s32.totalorder %s87, %s89
    %p96 = scmp.eq.s32.totalorder %s16, 1
    %p97 = por %p95, %p96
    %p98 = scmp.ne.s32.totalorder %s89, %s90
    %p99 = scmp.eq.s32.totalorder %s16, 0
    %p100 = por %p98, %p99
    %p101 = scmp.ne.s32.totalorder %s89, %s90
    %p102 = scmp.eq.s32.totalorder %s17, 1
    %p103 = por %p101, %p102
    %p105 = scmp.ne.s32.totalorder %s90, %s104
    %p106 = scmp.eq.s32.totalorder %s17, 0
    %p107 = por %p105, %p106
    %s109 = sadd.s32 %s108, 1
    %p112 = scmp.eq.s32.totalorder %s11, 1
    %p113 = scmp.ne.s32.totalorder %s108, %s110
    %p114 = scmp.eq.s32.totalorder %s11, 0
    %p115 = por %p113, %p114
    %p116 = scmp.ne.s32.totalorder %s108, %s110
    %p117 = scmp.eq.s32.totalorder %s16, 1
    %p118 = por %p116, %p117
    %p119 = scmp.ne.s32.totalorder %s110, %s111
    %p120 = scmp.eq.s32.totalorder %s16, 0
    %p121 = por %p119, %p120
    %p122 = scmp.ne.s32.totalorder %s110, %s111
    %p123 = scmp.eq.s32.totalorder %s17, 1
    %p124 = por %p122, %p123
    %p126 = scmp.ne.s32.totalorder %s111, %s125
    %p127 = scmp.eq.s32.totalorder %s17, 0
    %p128 = por %p126, %p127
    %s129 = ssub.s32 %s11, %s18
    %p130 = scmp.eq.s32.totalorder %s129, 0
    %s132 = sadd.s32 %s131, 1
    %s133 = scalar_select %p130, %s131, %s132
    %p136 = pneg %p130
    %p137 = scmp.eq.s32.totalorder %s11, 1
    %p138 = por %p136, %p137
    %p139 = scmp.ne.s32.totalorder %s131, %s134
    %p140 = scmp.eq.s32.totalorder %s11, 0
    %p141 = por %p139, %p140
    %p142 = scmp.ne.s32.totalorder %s131, %s134
    %p143 = scmp.eq.s32.totalorder %s16, 1
    %p144 = por %p142, %p143
    %p145 = scmp.ne.s32.totalorder %s134, %s135
    %p146 = scmp.eq.s32.totalorder %s16, 0
    %p147 = por %p145, %p146
    %p148 = scmp.ne.s32.totalorder %s134, %s135
    %p149 = scmp.eq.s32.totalorder %s17, 1
    %p150 = por %p148, %p149
    %p152 = scmp.ne.s32.totalorder %s135, %s151
    %p153 = scmp.eq.s32.totalorder %s17, 0
    %p154 = por %p152, %p153
    %p155 = scmp.le.s32.totalorder 1, %s11
    %p156 = scmp.lt.s32.totalorder %s11, 3
    %p157 = pnand %p155, %p156
    %p158 = pneg %p157
    // Predicated region
    $region9: #{decoder_forward.20} parent=5 // pred_check
      _
    $region10: #{decoder_forward.20} parent=5 // pred_check_branch
      %160 = sbr.rel (%p157) target = $region12
    $region11: #{decoder_forward.20} parent=5 // pred_region
      %s161 = ssub.s32 %s11, 1
      // Predicated region
      $region13: #{decoder_forward.20} parent=11 // pred_check
        %p162 = pneg %p58
      $region14: #{decoder_forward.20} parent=11 // pred_check_branch
        %164 = sbr.rel (%p162) target = $region16
      $region15: #{decoder_forward.20} parent=11 // pred_region
        _
      $region16: #{decoder_forward.20} parent=11 // pred_fallthru
        _
      // Predicated region
      $region17: #{decoder_forward.20} parent=11 // pred_check
        %p165 = pneg %p79
      $region18: #{decoder_forward.20} parent=11 // pred_check_branch
        %167 = sbr.rel (%p165) target = $region20
      $region19: #{decoder_forward.20} parent=11 // pred_region
        _
      $region20: #{decoder_forward.20} parent=11 // pred_fallthru
        _
      // Predicated region
      $region21: #{decoder_forward.20} parent=11 // pred_check
        %p168 = pneg %p100
      $region22: #{decoder_forward.20} parent=11 // pred_check_branch
        %170 = sbr.rel (%p168) target = $region24
      $region23: #{decoder_forward.20} parent=11 // pred_region
        _
      $region24: #{decoder_forward.20} parent=11 // pred_fallthru
        _
      // Predicated region
      $region25: #{decoder_forward.20} parent=11 // pred_check
        %p171 = pneg %p121
      $region26: #{decoder_forward.20} parent=11 // pred_check_branch
        %173 = sbr.rel (%p171) target = $region28
      $region27: #{decoder_forward.20} parent=11 // pred_region
        _
      $region28: #{decoder_forward.20} parent=11 // pred_fallthru
        _
    $region12: #{decoder_forward.20} parent=5 // pred_fallthru
      _
    %p174 = scmp.lt.s32.totalorder %s11, 2
    // Predicated region
    $region29: #{decoder_forward.20} parent=5 // pred_check
      %p175 = pneg %p174
    $region30: #{decoder_forward.20} parent=5 // pred_check_branch
      %177 = sbr.rel (%p175) target = $region32
    $region31: #{decoder_forward.20} parent=5 // pred_region
      // Predicated region
      $region33: #{decoder_forward.20} parent=31 // pred_check
        %p178 = pneg %p31
      $region34: #{decoder_forward.20} parent=31 // pred_check_branch
        %180 = sbr.rel (%p178) target = $region36
      $region35: #{decoder_forward.20} parent=31 // pred_region
        %p181 = scmp.lt.s32.totalorder %s11, 1
        %s182 = scalar_select %p181, %s11, 1
        %s183 = smul.addr %s182, 8
        %s184 = scalar_lea.vmem %s0, %s183
      $region36: #{decoder_forward.20} parent=31 // pred_fallthru
        _
    $region32: #{decoder_forward.20} parent=5 // pred_fallthru
      _
    %p185 = scmp.le.s32.totalorder 1, %s11
    %p186 = scmp.lt.s32.totalorder %s11, 3
    %p187 = pnand %p185, %p186
    %p188 = pneg %p187
    // Predicated region
    $region37: #{decoder_forward.20} parent=5 // pred_check
      _
    $region38: #{decoder_forward.20} parent=5 // pred_check_branch
      %190 = sbr.rel (%p187) target = $region40
    $region39: #{decoder_forward.20} parent=5 // pred_region
      %s191 = ssub.s32 %s11, 1
      %p192 = scmp.lt.s32.totalorder %s16, 1
      %s193 = scalar_select %p192, %s16, 1
      %s194 = smul.addr %s193, 8
      %s195 = scalar_lea.vmem %s0, %s194
      %p196 = pneg %p37
      %p197 = pneg %p34
      %p198 = pneg %p58
      %p199 = pneg %p55
      %p200 = pneg %p79
      %p201 = pneg %p76
      %p202 = pneg %p100
      %p203 = pneg %p97
      %p204 = pneg %p121
      %p205 = pneg %p118
      %p206 = pneg %p147
      %p207 = pneg %p144
      %p208 = scmp.lt.s32.totalorder %s16, 1
      %s209 = scalar_select %p208, %s16, 1
      %s210 = smul.addr %s209, 8
      %s211 = scalar_lea.vmem %s5, %s210
      %p212 = scmp.lt.s32.totalorder %s16, 1
      %s213 = scalar_select %p212, %s16, 1
      %s214 = smul.addr %s213, 8
      %s215 = scalar_lea.vmem %s0, %s214
      %p216 = scmp.lt.s32.totalorder %s16, 1
      %s217 = scalar_select %p216, %s16, 1
      %s218 = smul.addr %s217, 8
      %s219 = scalar_lea.vmem %s5, %s218
      %v220 = vld [vmem:[%s215] sm:$0xff]
      %v221 = vld [vmem:[%s1] sm:$0x1]
      %v222 = vld [vmem:[%s2] sm:$0x1]
      %vm223 = vcmask 261120
      %v224 = vsel %vm223, %v220, 0.0
      %225 = vadd.xlane.f32.xlu0 %v224
      %v226 = vpop.xlane.xlu0 %225
      %v227 = vrcp.pop 32.0
      %v228 = vmul.f32 %v226, %v227
      %v229 = vsub.f32 %v220, %v228
      %v230 = vmul.f32 %v229, %v229
      %v231 = vsel %vm223, %v230, 0.0
      %232 = vadd.xlane.f32.xlu0 %v231
      %v233 = vpop.xlane.xlu0 %232
      %v234 = vmul.f32 %v233, 0.032258064
      %v235 = vrsqrt.pop %v234
      %v236 = vmul.f32 %v234, %v235
      %vm237 = vcmp.eq.f32.partialorder %v234, inf
      %v238 = vsel %vm237, %v234, %v236
      %vm239 = vcmp.eq.f32.partialorder %v234, 0.0
      %v240 = vand.u32 %v234, 2147483648
      %v241 = vsel %vm239, %v240, %v238
      %v243 = vlaneseq
      %v244 = vshrl.u32 %v243, 7
      %v245 = vsub.s32 0, %v244
      %v246 = vrot.slane %v221, %v245
      %v248 = vmul.f32 %v246, %v229
      %v249 = vadd.f32 %v241, 1e-06
      %v250 = vrcp.pop %v249
      %v251 = vmul.f32 %v248, %v250
      %v253 = vlaneseq
      %v254 = vshrl.u32 %v253, 7
      %v255 = vsub.s32 0, %v254
      %v256 = vrot.slane %v222, %v255
      %v258 = vadd.f32 %v251, %v256
      %v259 = vld [vmem:[%s3] sm:$0xff]
      %v260 = vld [vmem:[%s3 + $0x8] sm:$0xff]
      %v261 = vld [vmem:[%s3 + $0x10] sm:$0xff]
      %v262 = vld [vmem:[%s3 + $0x18] sm:$0xff]
      %v263 = vld [vmem:[%s4] sm:$0x1]
      %v265 = vlaneseq
      %v266 = vshrl.u32 %v265, 7
      %v267 = vsub.s32 0, %v266
      %v268 = vrot.slane %v263, %v267
      %v271 = vsel %vm223, %v258, 0
      %273 = vmatprep.subr.mxu0 0.0
      %274 = vmatpush1.msra.mxu0 %v259
      %275 = vmatprep.subr.mxu0 0.0
      %276 = vmatpush1.msra.mxu0 %v260
      %277 = vmatprep.subr.mxu0 0.0
      %278 = vmatpush1.msra.mxu0 %v261
      %279 = vmatprep.subr.mxu0 0.0
      %280 = vmatpush1.msra.mxu0 %v262
      %281 = vmatprep.subr.mxu0 0.0
      %282 = vmatpush1.msra.mxu0 0.0
      %283 = vmatprep.subr.mxu0 0.0
      %284 = vmatpush1.msra.mxu0 0.0
      %285 = vmatprep.subr.mxu0 0.0
      %286 = vmatpush1.msra.mxu0 0.0
      %287 = vmatprep.subr.mxu0 0.0
      %288 = vmatpush1.msra.mxu0 0.0
      %289 = vmatprep.subr.mxu0 0.0
      %290 = vmatpush1.msra.mxu0 0.0
      %291 = vmatprep.subr.mxu0 0.0
      %292 = vmatpush1.msra.mxu0 0.0
      %293 = vmatprep.subr.mxu0 0.0
      %294 = vmatpush1.msra.mxu0 0.0
      %295 = vmatprep.subr.mxu0 0.0
      %296 = vmatpush1.msra.mxu0 0.0
      %297 = vmatprep.subr.mxu0 0.0
      %298 = vmatpush1.msra.mxu0 0.0
      %299 = vmatprep.subr.mxu0 0.0
      %300 = vmatpush1.msra.mxu0 0.0
      %301 = vmatprep.subr.mxu0 0.0
      %302 = vmatpush1.msra.mxu0 0.0
      %303 = vmatprep.subr.mxu0 0.0
      %304 = vmatpush1.msra.mxu0 0.0
      %305 = vmatprep.subr.mxu0 0.0
      %306 = vmatpush1.msra.mxu0 0.0
      %307 = vmatprep.subr.mxu0 0.0
      %308 = vmatpush1.msra.mxu0 0.0
      %309 = vmatprep.subr.mxu0 0.0
      %310 = vmatpush1.msra.mxu0 0.0
      %311 = vmatprep.subr.mxu0 0.0
      %312 = vmatpush1.msra.mxu0 0.0
      %313 = vmatprep.subr.mxu0 0.0
      %314 = vmatpush1.msra.mxu0 0.0
      %315 = vmatprep.subr.mxu0 0.0
      %316 = vmatpush1.msra.mxu0 0.0
      %317 = vmatprep.subr.mxu0 0.0
      %318 = vmatpush1.msra.mxu0 0.0
      %319 = vmatprep.subr.mxu0 0.0
      %320 = vmatpush1.msra.mxu0 0.0
      %321 = vmatprep.subr.mxu0 0.0
      %322 = vmatpush1.msra.mxu0 0.0
      %323 = vmatprep.subr.mxu0 0.0
      %324 = vmatpush1.msra.mxu0 0.0
      %325 = vmatprep.subr.mxu0 0.0
      %326 = vmatpush1.msra.mxu0 0.0
      %327 = vmatprep.subr.mxu0 0.0
      %328 = vmatpush1.msra.mxu0 0.0
      %329 = vmatprep.subr.mxu0 0.0
      %330 = vmatpush1.msra.mxu0 0.0
      %331 = vmatprep.subr.mxu0 0.0
      %332 = vmatpush1.msra.mxu0 0.0
      %333 = vmatprep.subr.mxu0 0.0
      %334 = vmatpush1.msra.mxu0 0.0
      %335 = vmatprep.subr.mxu0 0.0
      %336 = vmatpush1.msra.mxu0 0.0
      %337 = vmatprep.mubr.f32.mxu0 0.0
      %338 = vmatmul.mubr.f32.gmra.mrb[0].mxu0 %v271
      %v339 = vpop.f32.mrb[0].mxu0
      %v340 = vadd.f32 %v268, %v339
      %v341 = vpop.f32.mrb[0].mxu0
      %342 = vdwg.mxu0
      %343 = vst.msk [vmem:[%s219] sm:$0xff] %vm223, %v340
      %p344 = scmp.lt.s32.totalorder %s16, 1
      %s345 = scalar_select %p344, %s16, 1
      %s346 = smul.addr %s345, 8
      %s347 = scalar_lea.vmem %s5, %s346
      // Predicated region
      $region41: #{decoder_forward.20} parent=39 // pred_check
        %p348 = pneg %p144
      $region42: #{decoder_forward.20} parent=39 // pred_check_branch
        %350 = sbr.rel (%p348) target = $region44
      $region43: #{decoder_forward.20} parent=39 // pred_region
        _
      $region44: #{decoder_forward.20} parent=39 // pred_fallthru
        _
    $region40: #{decoder_forward.20} parent=5 // pred_fallthru
      _
    %p351 = scmp.le.s32.totalorder 2, %s11
    // Predicated region
    $region45: #{decoder_forward.20} parent=5 // pred_check
      %p352 = pneg %p351
    $region46: #{decoder_forward.20} parent=5 // pred_check_branch
      %354 = sbr.rel (%p352) target = $region48
    $region47: #{decoder_forward.20} parent=5 // pred_region
      %s355 = ssub.s32 %s11, 2
      // Predicated region
      $region49: #{decoder_forward.20} parent=47 // pred_check
        %p356 = pneg %p150
      $region50: #{decoder_forward.20} parent=47 // pred_check_branch
        %358 = sbr.rel (%p356) target = $region52
      $region51: #{decoder_forward.20} parent=47 // pred_region
        %p359 = scmp.lt.s32.totalorder %s17, 1
        %s360 = scalar_select %p359, %s17, 1
        %s361 = smul.addr %s360, 8
        %s362 = scalar_lea.vmem %s5, %s361
      $region52: #{decoder_forward.20} parent=47 // pred_fallthru
        _
    $region48: #{decoder_forward.20} parent=5 // pred_fallthru
      _
  $region6: #{decoder_forward.20} parent=0 // loop_footer
    %s15 = sadd.s32 1, %s11
  $region7: #{decoder_forward.20} parent=0 // loop_footer_branch
    %10 = sbr.rel target = $region3
  $region8: #{decoder_forward.20} parent=0 // loop_exit
    _

// kernel: decoder_forward.24
$region0: #{decoder_forward.24}
  #allocation0 [shape = 'u32[]', space=smem, size = 0x4, offset = 0x4, fixed_abs, tag = 'smem constant byte address 0x4 - core index']
  #allocation1 [shape = 'u32[144,128]{1,0:T(1,128)}', space=vmem, size = 0x12000, scoped, tag = 'internal scratch']
  %s0 = inlined_call_operand.vmem [shape: f32[16,32], index: 0, kind: input, shape index: {}]
  %s1 = inlined_call_operand.vmem [shape: f32[1,32], index: 1, kind: input, shape index: {}]
  %s2 = inlined_call_operand.vmem [shape: f32[1,32], index: 2, kind: input, shape index: {}]
  %s3 = inlined_call_operand.vmem [shape: f32[32,32], index: 3, kind: input, shape index: {}]
  %s4 = inlined_call_operand.vmem [shape: f32[1,32], index: 4, kind: input, shape index: {}]
  %s5 = inlined_call_operand.vmem [shape: f32[32,64], index: 5, kind: input, shape index: {}]
  %s6 = inlined_call_operand.vmem [shape: f32[1,64], index: 6, kind: input, shape index: {}]
  %s7 = inlined_call_operand.vmem [shape: f32[16,32], index: 7, kind: output, shape index: {0}]
  %s8 = inlined_call_operand.vmem [shape: f32[16,64], index: 8, kind: output, shape index: {1}]
  %9 = xla_tuple %s7, %s8
  %s10 = sld [smem:[#allocation0]]
  $region69: #{decoder_forward.24} parent=0
    _
  %s12 = ssub.s32 1, %s10
  %s13 = scalar_select 0, %s12, %s10
  loop: start=0, step=1, limit=4
  $region2: #{decoder_forward.24} parent=0 // loop_pre_header
    _
  $region3: #{decoder_forward.24} parent=0 // loop_header
    %s15 = sphi 0, %s19
    %p16 = scmp.ge.s32.totalorder %s15, 4
    %s25 = sphi 0, %s27
    %s28 = sphi 0, %s25
    %s29 = sphi 0, %s28
    %s45 = sphi 0, %s29
    %s49 = sphi 0, %s49
    %s51 = sphi 0, %s49
    %s52 = sphi 0, %s51
    %s66 = sphi 0, %s52
    %s70 = sphi 0, %s70
    %s72 = sphi 0, %s70
    %s73 = sphi 0, %s72
    %s87 = sphi 0, %s73
    %s91 = sphi 0, %s91
    %s93 = sphi 0, %s91
    %s94 = sphi 0, %s93
    %s108 = sphi 0, %s94
    %s112 = sphi 0, %s112
    %s114 = sphi 0, %s112
    %s115 = sphi 0, %s114
    %s129 = sphi 0, %s115
    %s133 = sphi 0, %s133
    %s135 = sphi 0, %s133
    %s136 = sphi 0, %s135
    %s150 = sphi 0, %s136
    %s154 = sphi 0, %s154
    %s156 = sphi 0, %s154
    %s157 = sphi 0, %s156
    %s171 = sphi 0, %s157
    %s177 = sphi 0, %s179
    %s180 = sphi 0, %s177
    %s181 = sphi 0, %s180
    %s197 = sphi 0, %s181
    %s203 = sphi 0, %s205
    %s206 = sphi 0, %s203
    %s207 = sphi 0, %s206
    %s223 = sphi 0, %s207
  $region4: #{decoder_forward.24} parent=0 // loop_header_branch
    %18 = sbr.rel (%p16) target = $region8
  $region5: #{decoder_forward.24} parent=0 // loop_body
    %s20 = ssub.s32 %s15, 1
    %s21 = ssub.s32 %s15, 2
    %s22 = sadd.s32 %s15, 1
    %s23 = ssub.s32 %s15, %s22
    %p24 = scmp.eq.s32.totalorder %s23, 0
    %s26 = sadd.s32 %s25, 1
    %s27 = scalar_select %p24, %s25, %s26
    %p30 = pneg %p24
    %p31 = scmp.eq.s32.totalorder %s15, 1
    %p32 = por %p30, %p31
    %p33 = scmp.ne.s32.totalorder %s25, %s28
    %p34 = scmp.eq.s32.totalorder %s15, 0
    %p35 = por %p33, %p34
    %p36 = scmp.ne.s32.totalorder %s25, %s28
    %p37 = scmp.eq.s32.totalorder %s20, 1
    %p38 = por %p36, %p37
    %p39 = scmp.ne.s32.totalorder %s28, %s29
    %p40 = scmp.eq.s32.totalorder %s20, 0
    %p41 = por %p39, %p40
    %p42 = scmp.ne.s32.totalorder %s28, %s29
    %p43 = scmp.eq.s32.totalorder %s21, 1
    %p44 = por %p42, %p43
    %p46 = scmp.ne.s32.totalorder %s29, %s45
    %p47 = scmp.eq.s32.totalorder %s21, 0
    %p48 = por %p46, %p47
    %s50 = sadd.s32 %s49, 1
    %p53 = scmp.eq.s32.totalorder %s15, 1
    %p54 = scmp.ne.s32.totalorder %s49, %s51
    %p55 = scmp.eq.s32.totalorder %s15, 0
    %p56 = por %p54, %p55
    %p57 = scmp.ne.s32.totalorder %s49, %s51
    %p58 = scmp.eq.s32.totalorder %s20, 1
    %p59 = por %p57, %p58
    %p60 = scmp.ne.s32.totalorder %s51, %s52
    %p61 = scmp.eq.s32.totalorder %s20, 0
    %p62 = por %p60, %p61
    %p63 = scmp.ne.s32.totalorder %s51, %s52
    %p64 = scmp.eq.s32.totalorder %s21, 1
    %p65 = por %p63, %p64
    %p67 = scmp.ne.s32.totalorder %s52, %s66
    %p68 = scmp.eq.s32.totalorder %s21, 0
    %p69 = por %p67, %p68
    %s71 = sadd.s32 %s70, 1
    %p74 = scmp.eq.s32.totalorder %s15, 1
    %p75 = scmp.ne.s32.totalorder %s70, %s72
    %p76 = scmp.eq.s32.totalorder %s15, 0
    %p77 = por %p75, %p76
    %p78 = scmp.ne.s32.totalorder %s70, %s72
    %p79 = scmp.eq.s32.totalorder %s20, 1
    %p80 = por %p78, %p79
    %p81 = scmp.ne.s32.totalorder %s72, %s73
    %p82 = scmp.eq.s32.totalorder %s20, 0
    %p83 = por %p81, %p82
    %p84 = scmp.ne.s32.totalorder %s72, %s73
    %p85 = scmp.eq.s32.totalorder %s21, 1
    %p86 = por %p84, %p85
    %p88 = scmp.ne.s32.totalorder %s73, %s87
    %p89 = scmp.eq.s32.totalorder %s21, 0
    %p90 = por %p88, %p89
    %s92 = sadd.s32 %s91, 1
    %p95 = scmp.eq.s32.totalorder %s15, 1
    %p96 = scmp.ne.s32.totalorder %s91, %s93
    %p97 = scmp.eq.s32.totalorder %s15, 0
    %p98 = por %p96, %p97
    %p99 = scmp.ne.s32.totalorder %s91, %s93
    %p100 = scmp.eq.s32.totalorder %s20, 1
    %p101 = por %p99, %p100
    %p102 = scmp.ne.s32.totalorder %s93, %s94
    %p103 = scmp.eq.s32.totalorder %s20, 0
    %p104 = por %p102, %p103
    %p105 = scmp.ne.s32.totalorder %s93, %s94
    %p106 = scmp.eq.s32.totalorder %s21, 1
    %p107 = por %p105, %p106
    %p109 = scmp.ne.s32.totalorder %s94, %s108
    %p110 = scmp.eq.s32.totalorder %s21, 0
    %p111 = por %p109, %p110
    %s113 = sadd.s32 %s112, 1
    %p116 = scmp.eq.s32.totalorder %s15, 1
    %p117 = scmp.ne.s32.totalorder %s112, %s114
    %p118 = scmp.eq.s32.totalorder %s15, 0
    %p119 = por %p117, %p118
    %p120 = scmp.ne.s32.totalorder %s112, %s114
    %p121 = scmp.eq.s32.totalorder %s20, 1
    %p122 = por %p120, %p121
    %p123 = scmp.ne.s32.totalorder %s114, %s115
    %p124 = scmp.eq.s32.totalorder %s20, 0
    %p125 = por %p123, %p124
    %p126 = scmp.ne.s32.totalorder %s114, %s115
    %p127 = scmp.eq.s32.totalorder %s21, 1
    %p128 = por %p126, %p127
    %p130 = scmp.ne.s32.totalorder %s115, %s129
    %p131 = scmp.eq.s32.totalorder %s21, 0
    %p132 = por %p130, %p131
    %s134 = sadd.s32 %s133, 1
    %p137 = scmp.eq.s32.totalorder %s15, 1
    %p138 = scmp.ne.s32.totalorder %s133, %s135
    %p139 = scmp.eq.s32.totalorder %s15, 0
    %p140 = por %p138, %p139
    %p141 = scmp.ne.s32.totalorder %s133, %s135
    %p142 = scmp.eq.s32.totalorder %s20, 1
    %p143 = por %p141, %p142
    %p144 = scmp.ne.s32.totalorder %s135, %s136
    %p145 = scmp.eq.s32.totalorder %s20, 0
    %p146 = por %p144, %p145
    %p147 = scmp.ne.s32.totalorder %s135, %s136
    %p148 = scmp.eq.s32.totalorder %s21, 1
    %p149 = por %p147, %p148
    %p151 = scmp.ne.s32.totalorder %s136, %s150
    %p152 = scmp.eq.s32.totalorder %s21, 0
    %p153 = por %p151, %p152
    %s155 = sadd.s32 %s154, 1
    %p158 = scmp.eq.s32.totalorder %s15, 1
    %p159 = scmp.ne.s32.totalorder %s154, %s156
    %p160 = scmp.eq.s32.totalorder %s15, 0
    %p161 = por %p159, %p160
    %p162 = scmp.ne.s32.totalorder %s154, %s156
    %p163 = scmp.eq.s32.totalorder %s20, 1
    %p164 = por %p162, %p163
    %p165 = scmp.ne.s32.totalorder %s156, %s157
    %p166 = scmp.eq.s32.totalorder %s20, 0
    %p167 = por %p165, %p166
    %p168 = scmp.ne.s32.totalorder %s156, %s157
    %p169 = scmp.eq.s32.totalorder %s21, 1
    %p170 = por %p168, %p169
    %p172 = scmp.ne.s32.totalorder %s157, %s171
    %p173 = scmp.eq.s32.totalorder %s21, 0
    %p174 = por %p172, %p173
    %s175 = ssub.s32 %s15, %s22
    %p176 = scmp.eq.s32.totalorder %s175, 0
    %s178 = sadd.s32 %s177, 1
    %s179 = scalar_select %p176, %s177, %s178
    %p182 = pneg %p176
    %p183 = scmp.eq.s32.totalorder %s15, 1
    %p184 = por %p182, %p183
    %p185 = scmp.ne.s32.totalorder %s177, %s180
    %p186 = scmp.eq.s32.totalorder %s15, 0
    %p187 = por %p185, %p186
    %p188 = scmp.ne.s32.totalorder %s177, %s180
    %p189 = scmp.eq.s32.totalorder %s20, 1
    %p190 = por %p188, %p189
    %p191 = scmp.ne.s32.totalorder %s180, %s181
    %p192 = scmp.eq.s32.totalorder %s20, 0
    %p193 = por %p191, %p192
    %p194 = scmp.ne.s32.totalorder %s180, %s181
    %p195 = scmp.eq.s32.totalorder %s21, 1
    %p196 = por %p194, %p195
    %p198 = scmp.ne.s32.totalorder %s181, %s197
    %p199 = scmp.eq.s32.totalorder %s21, 0
    %p200 = por %p198, %p199
    %s201 = ssub.s32 %s15, %s22
    %p202 = scmp.eq.s32.totalorder %s201, 0
    %s204 = sadd.s32 %s203, 1
    %s205 = scalar_select %p202, %s203, %s204
    %p208 = pneg %p202
    %p209 = scmp.eq.s32.totalorder %s15, 1
    %p210 = por %p208, %p209
    %p211 = scmp.ne.s32.totalorder %s203, %s206
    %p212 = scmp.eq.s32.totalorder %s15, 0
    %p213 = por %p211, %p212
    %p214 = scmp.ne.s32.totalorder %s203, %s206
    %p215 = scmp.eq.s32.totalorder %s20, 1
    %p216 = por %p214, %p215
    %p217 = scmp.ne.s32.totalorder %s206, %s207
    %p218 = scmp.eq.s32.totalorder %s20, 0
    %p219 = por %p217, %p218
    %p220 = scmp.ne.s32.totalorder %s206, %s207
    %p221 = scmp.eq.s32.totalorder %s21, 1
    %p222 = por %p220, %p221
    %p224 = scmp.ne.s32.totalorder %s207, %s223
    %p225 = scmp.eq.s32.totalorder %s21, 0
    %p226 = por %p224, %p225
    %p227 = scmp.le.s32.totalorder 1, %s15
    %p228 = scmp.lt.s32.totalorder %s15, 3
    %p229 = pnand %p227, %p228
    %p230 = pneg %p229
    // Predicated region
    $region9: #{decoder_forward.24} parent=5 // pred_check
      _
    $region10: #{decoder_forward.24} parent=5 // pred_check_branch
      %232 = sbr.rel (%p229) target = $region12
    $region11: #{decoder_forward.24} parent=5 // pred_region
      %s233 = ssub.s32 %s15, 1
      // Predicated region
      $region13: #{decoder_forward.24} parent=11 // pred_check
        %p234 = pneg %p62
      $region14: #{decoder_forward.24} parent=11 // pred_check_branch
        %236 = sbr.rel (%p234) target = $region16
      $region15: #{decoder_forward.24} parent=11 // pred_region
        _
      $region16: #{decoder_forward.24} parent=11 // pred_fallthru
        _
      // Predicated region
      $region17: #{decoder_forward.24} parent=11 // pred_check
        %p237 = pneg %p83
      $region18: #{decoder_forward.24} parent=11 // pred_check_branch
        %239 = sbr.rel (%p237) target = $region20
      $region19: #{decoder_forward.24} parent=11 // pred_region
        _
      $region20: #{decoder_forward.24} parent=11 // pred_fallthru
        _
      // Predicated region
      $region21: #{decoder_forward.24} parent=11 // pred_check
        %p240 = pneg %p104
      $region22: #{decoder_forward.24} parent=11 // pred_check_branch
        %242 = sbr.rel (%p240) target = $region24
      $region23: #{decoder_forward.24} parent=11 // pred_region
        _
      $region24: #{decoder_forward.24} parent=11 // pred_fallthru
        _
      // Predicated region
      $region25: #{decoder_forward.24} parent=11 // pred_check
        %p243 = pneg %p125
      $region26: #{decoder_forward.24} parent=11 // pred_check_branch
        %245 = sbr.rel (%p243) target = $region28
      $region27: #{decoder_forward.24} parent=11 // pred_region
        _
      $region28: #{decoder_forward.24} parent=11 // pred_fallthru
        _
      // Predicated region
      $region29: #{decoder_forward.24} parent=11 // pred_check
        %p246 = pneg %p146
      $region30: #{decoder_forward.24} parent=11 // pred_check_branch
        %248 = sbr.rel (%p246) target = $region32
      $region31: #{decoder_forward.24} parent=11 // pred_region
        _
      $region32: #{decoder_forward.24} parent=11 // pred_fallthru
        _
      // Predicated region
      $region33: #{decoder_forward.24} parent=11 // pred_check
        %p249 = pneg %p167
      $region34: #{decoder_forward.24} parent=11 // pred_check_branch
        %251 = sbr.rel (%p249) target = $region36
      $region35: #{decoder_forward.24} parent=11 // pred_region
        _
      $region36: #{decoder_forward.24} parent=11 // pred_fallthru
        _
    $region12: #{decoder_forward.24} parent=5 // pred_fallthru
      _
    %p252 = scmp.lt.s32.totalorder %s15, 2
    // Predicated region
    $region37: #{decoder_forward.24} parent=5 // pred_check
      %p253 = pneg %p252
    $region38: #{decoder_forward.24} parent=5 // pred_check_branch
      %255 = sbr.rel (%p253) target = $region40
    $region39: #{decoder_forward.24} parent=5 // pred_region
      // Predicated region
      $region41: #{decoder_forward.24} parent=39 // pred_check
        %p256 = pneg %p35
      $region42: #{decoder_forward.24} parent=39 // pred_check_branch
        %258 = sbr.rel (%p256) target = $region44
      $region43: #{decoder_forward.24} parent=39 // pred_region
        %p259 = scmp.lt.s32.totalorder %s15, 1
        %s260 = scalar_select %p259, %s15, 1
        %s261 = smul.addr %s260, 8
        %s262 = scalar_lea.vmem %s0, %s261
      $region44: #{decoder_forward.24} parent=39 // pred_fallthru
        _
    $region40: #{decoder_forward.24} parent=5 // pred_fallthru
      _
    %p263 = scmp.le.s32.totalorder 1, %s15
    %p264 = scmp.lt.s32.totalorder %s15, 3
    %p265 = pnand %p263, %p264
    %p266 = pneg %p265
    // Predicated region
    $region45: #{decoder_forward.24} parent=5 // pred_check
      _
    $region46: #{decoder_forward.24} parent=5 // pred_check_branch
      %268 = sbr.rel (%p265) target = $region48
    $region47: #{decoder_forward.24} parent=5 // pred_region
      %s269 = ssub.s32 %s15, 1
      %p270 = scmp.lt.s32.totalorder %s20, 1
      %s271 = scalar_select %p270, %s20, 1
      %s272 = smul.addr %s271, 8
      %s273 = scalar_lea.vmem %s0, %s272
      %p274 = pneg %p41
      %p275 = pneg %p38
      %p276 = pneg %p62
      %p277 = pneg %p59
      %p278 = pneg %p83
      %p279 = pneg %p80
      %p280 = pneg %p104
      %p281 = pneg %p101
      %p282 = pneg %p125
      %p283 = pneg %p122
      %p284 = pneg %p146
      %p285 = pneg %p143
      %p286 = pneg %p167
      %p287 = pneg %p164
      %p288 = pneg %p193
      %p289 = pneg %p190
      %p290 = scmp.lt.s32.totalorder %s20, 1
      %s291 = scalar_select %p290, %s20, 1
      %s292 = smul.addr %s291, 8
      %s293 = scalar_lea.vmem %s7, %s292
      %p294 = pneg %p219
      %p295 = pneg %p216
      %p296 = scmp.lt.s32.totalorder %s20, 1
      %s297 = scalar_select %p296, %s20, 1
      %s298 = smul.addr %s297, 8
      %s299 = scalar_lea.vmem %s8, %s298
      %p300 = scmp.lt.s32.totalorder %s20, 1
      %s301 = scalar_select %p300, %s20, 1
      %s302 = smul.addr %s301, 8
      %s303 = scalar_lea.vmem %s0, %s302
      %p304 = scmp.lt.s32.totalorder %s20, 1
      %s305 = scalar_select %p304, %s20, 1
      %s306 = smul.addr %s305, 8
      %s307 = scalar_lea.vmem %s7, %s306
      %p308 = scmp.lt.s32.totalorder %s20, 1
      %s309 = scalar_select %p308, %s20, 1
      %s310 = smul.addr %s309, 8
      %s311 = scalar_lea.vmem %s8, %s310
      %v312 = vld [vmem:[%s303] sm:$0xff]
      %v313 = vld [vmem:[%s1] sm:$0x1]
      %v314 = vld [vmem:[%s2] sm:$0x1]
      %vm315 = vcmask 261120
      %v316 = vsel %vm315, %v312, 0.0
      %317 = vadd.xlane.f32.xlu0 %v316
      %v318 = vpop.xlane.xlu0 %317
      %v319 = vrcp.pop 32.0
      %v320 = vmul.f32 %v318, %v319
      %v321 = vsub.f32 %v312, %v320
      %v322 = vmul.f32 %v321, %v321
      %v323 = vsel %vm315, %v322, 0.0
      %324 = vadd.xlane.f32.xlu0 %v323
      %v325 = vpop.xlane.xlu0 %324
      %v326 = vmul.f32 %v325, 0.032258064
      %v327 = vrsqrt.pop %v326
      %v328 = vmul.f32 %v326, %v327
      %vm329 = vcmp.eq.f32.partialorder %v326, inf
      %v330 = vsel %vm329, %v326, %v328
      %vm331 = vcmp.eq.f32.partialorder %v326, 0.0
      %v332 = vand.u32 %v326, 2147483648
      %v333 = vsel %vm331, %v332, %v330
      %v335 = vlaneseq
      %v336 = vshrl.u32 %v335, 7
      %v337 = vsub.s32 0, %v336
      %v338 = vrot.slane %v313, %v337
      %v340 = vmul.f32 %v338, %v321
      %v341 = vadd.f32 %v333, 1e-06
      %v342 = vrcp.pop %v341
      %v343 = vmul.f32 %v340, %v342
      %v345 = vlaneseq
      %v346 = vshrl.u32 %v345, 7
      %v347 = vsub.s32 0, %v346
      %v348 = vrot.slane %v314, %v347
      %v350 = vadd.f32 %v343, %v348
      %v351 = vld [vmem:[%s3] sm:$0xff]
      %v352 = vld [vmem:[%s3 + $0x8] sm:$0xff]
      %v353 = vld [vmem:[%s3 + $0x10] sm:$0xff]
      %v354 = vld [vmem:[%s3 + $0x18] sm:$0xff]
      %v355 = vld [vmem:[%s4] sm:$0x1]
      %v357 = vlaneseq
      %v358 = vshrl.u32 %v357, 7
      %v359 = vsub.s32 0, %v358
      %v360 = vrot.slane %v355, %v359
      %v363 = vsel %vm315, %v350, 0
      %365 = vmatprep.subr.mxu0 0.0
      %366 = vmatpush1.msra.mxu0 %v351
      %367 = vmatprep.subr.mxu0 0.0
      %368 = vmatpush1.msra.mxu0 %v352
      %369 = vmatprep.subr.mxu0 0.0
      %370 = vmatpush1.msra.mxu0 %v353
      %371 = vmatprep.subr.mxu0 0.0
      %372 = vmatpush1.msra.mxu0 %v354
      %373 = vmatprep.subr.mxu0 0.0
      %374 = vmatpush1.msra.mxu0 0.0
      %375 = vmatprep.subr.mxu0 0.0
      %376 = vmatpush1.msra.mxu0 0.0
      %377 = vmatprep.subr.mxu0 0.0
      %378 = vmatpush1.msra.mxu0 0.0
      %379 = vmatprep.subr.mxu0 0.0
      %380 = vmatpush1.msra.mxu0 0.0
      %381 = vmatprep.subr.mxu0 0.0
      %382 = vmatpush1.msra.mxu0 0.0
      %383 = vmatprep.subr.mxu0 0.0
      %384 = vmatpush1.msra.mxu0 0.0
      %385 = vmatprep.subr.mxu0 0.0
      %386 = vmatpush1.msra.mxu0 0.0
      %387 = vmatprep.subr.mxu0 0.0
      %388 = vmatpush1.msra.mxu0 0.0
      %389 = vmatprep.subr.mxu0 0.0
      %390 = vmatpush1.msra.mxu0 0.0
      %391 = vmatprep.subr.mxu0 0.0
      %392 = vmatpush1.msra.mxu0 0.0
      %393 = vmatprep.subr.mxu0 0.0
      %394 = vmatpush1.msra.mxu0 0.0
      %395 = vmatprep.subr.mxu0 0.0
      %396 = vmatpush1.msra.mxu0 0.0
      %397 = vmatprep.subr.mxu0 0.0
      %398 = vmatpush1.msra.mxu0 0.0
      %399 = vmatprep.subr.mxu0 0.0
      %400 = vmatpush1.msra.mxu0 0.0
      %401 = vmatprep.subr.mxu0 0.0
      %402 = vmatpush1.msra.mxu0 0.0
      %403 = vmatprep.subr.mxu0 0.0
      %404 = vmatpush1.msra.mxu0 0.0
      %405 = vmatprep.subr.mxu0 0.0
      %406 = vmatpush1.msra.mxu0 0.0
      %407 = vmatprep.subr.mxu0 0.0
      %408 = vmatpush1.msra.mxu0 0.0
      %409 = vmatprep.subr.mxu0 0.0
      %410 = vmatpush1.msra.mxu0 0.0
      %411 = vmatprep.subr.mxu0 0.0
      %412 = vmatpush1.msra.mxu0 0.0
      %413 = vmatprep.subr.mxu0 0.0
      %414 = vmatpush1.msra.mxu0 0.0
      %415 = vmatprep.subr.mxu0 0.0
      %416 = vmatpush1.msra.mxu0 0.0
      %417 = vmatprep.subr.mxu0 0.0
      %418 = vmatpush1.msra.mxu0 0.0
      %419 = vmatprep.subr.mxu0 0.0
      %420 = vmatpush1.msra.mxu0 0.0
      %421 = vmatprep.subr.mxu0 0.0
      %422 = vmatpush1.msra.mxu0 0.0
      %423 = vmatprep.subr.mxu0 0.0
      %424 = vmatpush1.msra.mxu0 0.0
      %425 = vmatprep.subr.mxu0 0.0
      %426 = vmatpush1.msra.mxu0 0.0
      %427 = vmatprep.subr.mxu0 0.0
      %428 = vmatpush1.msra.mxu0 0.0
      %429 = vmatprep.mubr.f32.mxu0 0.0
      %430 = vmatmul.mubr.f32.gmra.mrb[0].mxu0 %v363
      %v431 = vpop.f32.mrb[0].mxu0
      %v432 = vadd.f32 %v360, %v431
      %v433 = vpop.f32.mrb[0].mxu0
      %434 = vdwg.mxu0
      %v435 = vld [vmem:[%s5] sm:$0xff]
      %v436 = vld [vmem:[%s5 + $0x8] sm:$0xff]
      %v437 = vld [vmem:[%s5 + $0x10] sm:$0xff]
      %v438 = vld [vmem:[%s5 + $0x18] sm:$0xff]
      %v439 = vld [vmem:[%s6] sm:$0x1]
      %v441 = vlaneseq
      %v442 = vshrl.u32 %v441, 7
      %v443 = vsub.s32 0, %v442
      %v444 = vrot.slane %v439, %v443
      %446 = vmatprep.subr.mxu0 0.0
      %447 = vmatpush1.msra.mxu0 %v435
      %448 = vmatprep.subr.mxu0 0.0
      %449 = vmatpush1.msra.mxu0 %v436
      %450 = vmatprep.subr.mxu0 0.0
      %451 = vmatpush1.msra.mxu0 %v437
      %452 = vmatprep.subr.mxu0 0.0
      %453 = vmatpush1.msra.mxu0 %v438
      %454 = vmatprep.subr.mxu0 0.0
      %455 = vmatpush1.msra.mxu0 0.0
      %456 = vmatprep.subr.mxu0 0.0
      %457 = vmatpush1.msra.mxu0 0.0
      %458 = vmatprep.subr.mxu0 0.0
      %459 = vmatpush1.msra.mxu0 0.0
      %460 = vmatprep.subr.mxu0 0.0
      %461 = vmatpush1.msra.mxu0 0.0
      %462 = vmatprep.subr.mxu0 0.0
      %463 = vmatpush1.msra.mxu0 0.0
      %464 = vmatprep.subr.mxu0 0.0
      %465 = vmatpush1.msra.mxu0 0.0
      %466 = vmatprep.subr.mxu0 0.0
      %467 = vmatpush1.msra.mxu0 0.0
      %468 = vmatprep.subr.mxu0 0.0
      %469 = vmatpush1.msra.mxu0 0.0
      %470 = vmatprep.subr.mxu0 0.0
      %471 = vmatpush1.msra.mxu0 0.0
      %472 = vmatprep.subr.mxu0 0.0
      %473 = vmatpush1.msra.mxu0 0.0
      %474 = vmatprep.subr.mxu0 0.0
      %475 = vmatpush1.msra.mxu0 0.0
      %476 = vmatprep.subr.mxu0 0.0
      %477 = vmatpush1.msra.mxu0 0.0
      %478 = vmatprep.subr.mxu0 0.0
      %479 = vmatpush1.msra.mxu0 0.0
      %480 = vmatprep.subr.mxu0 0.0
      %481 = vmatpush1.msra.mxu0 0.0
      %482 = vmatprep.subr.mxu0 0.0
      %483 = vmatpush1.msra.mxu0 0.0
      %484 = vmatprep.subr.mxu0 0.0
      %485 = vmatpush1.msra.mxu0 0.0
      %486 = vmatprep.subr.mxu0 0.0
      %487 = vmatpush1.msra.mxu0 0.0
      %488 = vmatprep.subr.mxu0 0.0
      %489 = vmatpush1.msra.mxu0 0.0
      %490 = vmatprep.subr.mxu0 0.0
      %491 = vmatpush1.msra.mxu0 0.0
      %492 = vmatprep.subr.mxu0 0.0
      %493 = vmatpush1.msra.mxu0 0.0
      %494 = vmatprep.subr.mxu0 0.0
      %495 = vmatpush1.msra.mxu0 0.0
      %496 = vmatprep.subr.mxu0 0.0
      %497 = vmatpush1.msra.mxu0 0.0
      %498 = vmatprep.subr.mxu0 0.0
      %499 = vmatpush1.msra.mxu0 0.0
      %500 = vmatprep.subr.mxu0 0.0
      %501 = vmatpush1.msra.mxu0 0.0
      %502 = vmatprep.subr.mxu0 0.0
      %503 = vmatpush1.msra.mxu0 0.0
      %504 = vmatprep.subr.mxu0 0.0
      %505 = vmatpush1.msra.mxu0 0.0
      %506 = vmatprep.subr.mxu0 0.0
      %507 = vmatpush1.msra.mxu0 0.0
      %508 = vmatprep.subr.mxu0 0.0
      %509 = vmatpush1.msra.mxu0 0.0
      %510 = vmatprep.mubr.f32.mxu0 0.0
      %511 = vmatmul.mubr.f32.gmra.mrb[0].mxu0 %v363
      %v512 = vpop.f32.mrb[0].mxu0
      %v513 = vadd.f32 %v444, %v512
      %v514 = vpop.f32.mrb[0].mxu0
      %515 = vdwg.mxu0
      %516 = vst.msk [vmem:[%s307] sm:$0xff] %vm315, %v432
      %vm517 = vcmask 523264
      %518 = vst.msk [vmem:[%s311] sm:$0xff] %vm517, %v513
      %p519 = scmp.lt.s32.totalorder %s20, 1
      %s520 = scalar_select %p519, %s20, 1
      %s521 = smul.addr %s520, 8
      %s522 = scalar_lea.vmem %s7, %s521
      %p523 = scmp.lt.s32.totalorder %s20, 1
      %s524 = scalar_select %p523, %s20, 1
      %s525 = smul.addr %s524, 8
      %s526 = scalar_lea.vmem %s8, %s525
      // Predicated region
      $region49: #{decoder_forward.24} parent=47 // pred_check
        %p527 = pneg %p190
      $region50: #{decoder_forward.24} parent=47 // pred_check_branch
        %529 = sbr.rel (%p527) target = $region52
      $region51: #{decoder_forward.24} parent=47 // pred_region
        _
      $region52: #{decoder_forward.24} parent=47 // pred_fallthru
        _
      // Predicated region
      $region53: #{decoder_forward.24} parent=47 // pred_check
        %p530 = pneg %p216
      $region54: #{decoder_forward.24} parent=47 // pred_check_branch
        %532 = sbr.rel (%p530) target = $region56
      $region55: #{decoder_forward.24} parent=47 // pred_region
        _
      $region56: #{decoder_forward.24} parent=47 // pred_fallthru
        _
    $region48: #{decoder_forward.24} parent=5 // pred_fallthru
      _
    %p533 = scmp.le.s32.totalorder 2, %s15
    // Predicated region
    $region57: #{decoder_forward.24} parent=5 // pred_check
      %p534 = pneg %p533
    $region58: #{decoder_forward.24} parent=5 // pred_check_branch
      %536 = sbr.rel (%p534) target = $region60
    $region59: #{decoder_forward.24} parent=5 // pred_region
      %s537 = ssub.s32 %s15, 2
      // Predicated region
      $region61: #{decoder_forward.24} parent=59 // pred_check
        %p538 = pneg %p196
      $region62: #{decoder_forward.24} parent=59 // pred_check_branch
        %540 = sbr.rel (%p538) target = $region64
      $region63: #{decoder_forward.24} parent=59 // pred_region
        %p541 = scmp.lt.s32.totalorder %s21, 1
        %s542 = scalar_select %p541, %s21, 1
        %s543 = smul.addr %s542, 8
        %s544 = scalar_lea.vmem %s7, %s543
      $region64: #{decoder_forward.24} parent=59 // pred_fallthru
        _
      // Predicated region
      $region65: #{decoder_forward.24} parent=59 // pred_check
        %p545 = pneg %p222
      $region66: #{decoder_forward.24} parent=59 // pred_check_branch
        %547 = sbr.rel (%p545) target = $region68
      $region67: #{decoder_forward.24} parent=59 // pred_region
        %p548 = scmp.lt.s32.totalorder %s21, 1
        %s549 = scalar_select %p548, %s21, 1
        %s550 = smul.addr %s549, 8
        %s551 = scalar_lea.vmem %s8, %s550
      $region68: #{decoder_forward.24} parent=59 // pred_fallthru
        _
    $region60: #{decoder_forward.24} parent=5 // pred_fallthru
      _
  $region6: #{decoder_forward.24} parent=0 // loop_footer
    %s19 = sadd.s32 1, %s15
  $region7: #{decoder_forward.24} parent=0 // loop_footer_branch
    %14 = sbr.rel target = $region3
  $region8: #{decoder_forward.24} parent=0 // loop_exit
    _

// kernel: decoder_forward.21
$region0: #{decoder_forward.21}
  #allocation0 [shape = 'u32[]', space=smem, size = 0x4, offset = 0x4, fixed_abs, tag = 'smem constant byte address 0x4 - core index']
  #allocation1 [shape = 'u32[144,128]{1,0:T(1,128)}', space=vmem, size = 0x12000, scoped, tag = 'internal scratch']
  %s0 = inlined_call_operand.vmem [shape: f32[2,8,32], index: 0, kind: input, shape index: {}]
  %s1 = inlined_call_operand.vmem [shape: f32[2,8,64], index: 1, kind: input, shape index: {}]
  %s2 = inlined_call_operand.vmem [shape: f32[2,1,8], index: 2, kind: input, shape index: {}]
  %s3 = inlined_call_operand.vmem [shape: f32[2,8,32], index: 3, kind: output, shape index: {}]
  %s4 = sld [smem:[#allocation0]]
  $region45: #{decoder_forward.21} parent=0
    _
  %s6 = ssub.s32 1, %s4
  %s7 = scalar_select 0, %s6, %s4
  loop: start=0, step=1, limit=4
  $region2: #{decoder_forward.21} parent=0 // loop_pre_header
    _
  $region3: #{decoder_forward.21} parent=0 // loop_header
    %s9 = sphi 0, %s13
    %p10 = scmp.ge.s32.totalorder %s9, 4
    %s19 = sphi 0, %s21
    %s22 = sphi 0, %s19
    %s23 = sphi 0, %s22
    %s39 = sphi 0, %s23
    %s45 = sphi 0, %s47
    %s48 = sphi 0, %s45
    %s49 = sphi 0, %s48
    %s65 = sphi 0, %s49
    %s71 = sphi 0, %s73
    %s74 = sphi 0, %s71
    %s75 = sphi 0, %s74
    %s91 = sphi 0, %s75
    %s97 = sphi 0, %s99
    %s100 = sphi 0, %s97
    %s101 = sphi 0, %s100
    %s117 = sphi 0, %s101
  $region4: #{decoder_forward.21} parent=0 // loop_header_branch
    %12 = sbr.rel (%p10) target = $region8
  $region5: #{decoder_forward.21} parent=0 // loop_body
    %s14 = ssub.s32 %s9, 1
    %s15 = ssub.s32 %s9, 2
    %s16 = sadd.s32 %s9, 1
    %s17 = ssub.s32 %s9, %s16
    %p18 = scmp.eq.s32.totalorder %s17, 0
    %s20 = sadd.s32 %s19, 1
    %s21 = scalar_select %p18, %s19, %s20
    %p24 = pneg %p18
    %p25 = scmp.eq.s32.totalorder %s9, 1
    %p26 = por %p24, %p25
    %p27 = scmp.ne.s32.totalorder %s19, %s22
    %p28 = scmp.eq.s32.totalorder %s9, 0
    %p29 = por %p27, %p28
    %p30 = scmp.ne.s32.totalorder %s19, %s22
    %p31 = scmp.eq.s32.totalorder %s14, 1
    %p32 = por %p30, %p31
    %p33 = scmp.ne.s32.totalorder %s22, %s23
    %p34 = scmp.eq.s32.totalorder %s14, 0
    %p35 = por %p33, %p34
    %p36 = scmp.ne.s32.totalorder %s22, %s23
    %p37 = scmp.eq.s32.totalorder %s15, 1
    %p38 = por %p36, %p37
    %p40 = scmp.ne.s32.totalorder %s23, %s39
    %p41 = scmp.eq.s32.totalorder %s15, 0
    %p42 = por %p40, %p41
    %s43 = ssub.s32 %s9, %s16
    %p44 = scmp.eq.s32.totalorder %s43, 0
    %s46 = sadd.s32 %s45, 1
    %s47 = scalar_select %p44, %s45, %s46
    %p50 = pneg %p44
    %p51 = scmp.eq.s32.totalorder %s9, 1
    %p52 = por %p50, %p51
    %p53 = scmp.ne.s32.totalorder %s45, %s48
    %p54 = scmp.eq.s32.totalorder %s9, 0
    %p55 = por %p53, %p54
    %p56 = scmp.ne.s32.totalorder %s45, %s48
    %p57 = scmp.eq.s32.totalorder %s14, 1
    %p58 = por %p56, %p57
    %p59 = scmp.ne.s32.totalorder %s48, %s49
    %p60 = scmp.eq.s32.totalorder %s14, 0
    %p61 = por %p59, %p60
    %p62 = scmp.ne.s32.totalorder %s48, %s49
    %p63 = scmp.eq.s32.totalorder %s15, 1
    %p64 = por %p62, %p63
    %p66 = scmp.ne.s32.totalorder %s49, %s65
    %p67 = scmp.eq.s32.totalorder %s15, 0
    %p68 = por %p66, %p67
    %s69 = ssub.s32 %s9, %s16
    %p70 = scmp.eq.s32.totalorder %s69, 0
    %s72 = sadd.s32 %s71, 1
    %s73 = scalar_select %p70, %s71, %s72
    %p76 = pneg %p70
    %p77 = scmp.eq.s32.totalorder %s9, 1
    %p78 = por %p76, %p77
    %p79 = scmp.ne.s32.totalorder %s71, %s74
    %p80 = scmp.eq.s32.totalorder %s9, 0
    %p81 = por %p79, %p80
    %p82 = scmp.ne.s32.totalorder %s71, %s74
    %p83 = scmp.eq.s32.totalorder %s14, 1
    %p84 = por %p82, %p83
    %p85 = scmp.ne.s32.totalorder %s74, %s75
    %p86 = scmp.eq.s32.totalorder %s14, 0
    %p87 = por %p85, %p86
    %p88 = scmp.ne.s32.totalorder %s74, %s75
    %p89 = scmp.eq.s32.totalorder %s15, 1
    %p90 = por %p88, %p89
    %p92 = scmp.ne.s32.totalorder %s75, %s91
    %p93 = scmp.eq.s32.totalorder %s15, 0
    %p94 = por %p92, %p93
    %s95 = ssub.s32 %s9, %s16
    %p96 = scmp.eq.s32.totalorder %s95, 0
    %s98 = sadd.s32 %s97, 1
    %s99 = scalar_select %p96, %s97, %s98
    %p102 = pneg %p96
    %p103 = scmp.eq.s32.totalorder %s9, 1
    %p104 = por %p102, %p103
    %p105 = scmp.ne.s32.totalorder %s97, %s100
    %p106 = scmp.eq.s32.totalorder %s9, 0
    %p107 = por %p105, %p106
    %p108 = scmp.ne.s32.totalorder %s97, %s100
    %p109 = scmp.eq.s32.totalorder %s14, 1
    %p110 = por %p108, %p109
    %p111 = scmp.ne.s32.totalorder %s100, %s101
    %p112 = scmp.eq.s32.totalorder %s14, 0
    %p113 = por %p111, %p112
    %p114 = scmp.ne.s32.totalorder %s100, %s101
    %p115 = scmp.eq.s32.totalorder %s15, 1
    %p116 = por %p114, %p115
    %p118 = scmp.ne.s32.totalorder %s101, %s117
    %p119 = scmp.eq.s32.totalorder %s15, 0
    %p120 = por %p118, %p119
    %p121 = scmp.le.s32.totalorder 1, %s9
    %p122 = scmp.lt.s32.totalorder %s9, 3
    %p123 = pnand %p121, %p122
    %p124 = pneg %p123
    // Predicated region
    $region9: #{decoder_forward.21} parent=5 // pred_check
      _
    $region10: #{decoder_forward.21} parent=5 // pred_check_branch
      %126 = sbr.rel (%p123) target = $region12
    $region11: #{decoder_forward.21} parent=5 // pred_region
      %s127 = ssub.s32 %s9, 1
    $region12: #{decoder_forward.21} parent=5 // pred_fallthru
      _
    %p128 = scmp.lt.s32.totalorder %s9, 2
    // Predicated region
    $region13: #{decoder_forward.21} parent=5 // pred_check
      %p129 = pneg %p128
    $region14: #{decoder_forward.21} parent=5 // pred_check_branch
      %131 = sbr.rel (%p129) target = $region16
    $region15: #{decoder_forward.21} parent=5 // pred_region
      // Predicated region
      $region17: #{decoder_forward.21} parent=15 // pred_check
        %p132 = pneg %p29
      $region18: #{decoder_forward.21} parent=15 // pred_check_branch
        %134 = sbr.rel (%p132) target = $region20
      $region19: #{decoder_forward.21} parent=15 // pred_region
        %p135 = scmp.lt.s32.totalorder %s9, 1
        %s136 = scalar_select %p135, %s9, 1
        %s137 = smul.addr %s136, 8
        %s138 = scalar_lea.vmem %s0, %s137
      $region20: #{decoder_forward.21} parent=15 // pred_fallthru
        _
      // Predicated region
      $region21: #{decoder_forward.21} parent=15 // pred_check
        %p139 = pneg %p55
      $region22: #{decoder_forward.21} parent=15 // pred_check_branch
        %141 = sbr.rel (%p139) target = $region24
      $region23: #{decoder_forward.21} parent=15 // pred_region
        %p142 = scmp.lt.s32.totalorder %s9, 1
        %s143 = scalar_select %p142, %s9, 1
        %s144 = smul.addr %s143, 8
        %s145 = scalar_lea.vmem %s1, %s144
      $region24: #{decoder_forward.21} parent=15 // pred_fallthru
        _
      // Predicated region
      $region25: #{decoder_forward.21} parent=15 // pred_check
        %p146 = pneg %p81
      $region26: #{decoder_forward.21} parent=15 // pred_check_branch
        %148 = sbr.rel (%p146) target = $region28
      $region27: #{decoder_forward.21} parent=15 // pred_region
        %p149 = scmp.lt.s32.totalorder %s9, 1
        %s150 = scalar_select %p149, %s9, 1
        %s151 = scalar_lea.vmem %s2, %s150
      $region28: #{decoder_forward.21} parent=15 // pred_fallthru
        _
    $region16: #{decoder_forward.21} parent=5 // pred_fallthru
      _
    %p152 = scmp.le.s32.totalorder 1, %s9
    %p153 = scmp.lt.s32.totalorder %s9, 3
    %p154 = pnand %p152, %p153
    %p155 = pneg %p154
    // Predicated region
    $region29: #{decoder_forward.21} parent=5 // pred_check
      _
    $region30: #{decoder_forward.21} parent=5 // pred_check_branch
      %157 = sbr.rel (%p154) target = $region32
    $region31: #{decoder_forward.21} parent=5 // pred_region
      %s158 = ssub.s32 %s9, 1
      %p159 = scmp.lt.s32.totalorder %s14, 1
      %s160 = scalar_select %p159, %s14, 1
      %s161 = smul.addr %s160, 8
      %s162 = scalar_lea.vmem %s0, %s161
      %p163 = pneg %p35
      %p164 = pneg %p32
      %p165 = scmp.lt.s32.totalorder %s14, 1
      %s166 = scalar_select %p165, %s14, 1
      %s167 = smul.addr %s166, 8
      %s168 = scalar_lea.vmem %s1, %s167
      %p169 = pneg %p61
      %p170 = pneg %p58
      %p171 = scmp.lt.s32.totalorder %s14, 1
      %s172 = scalar_select %p171, %s14, 1
      %s173 = scalar_lea.vmem %s2, %s172
      %p174 = pneg %p87
      %p175 = pneg %p84
      %p176 = pneg %p113
      %p177 = pneg %p110
      %p178 = scmp.lt.s32.totalorder %s14, 1
      %s179 = scalar_select %p178, %s14, 1
      %s180 = smul.addr %s179, 8
      %s181 = scalar_lea.vmem %s3, %s180
      %p182 = scmp.lt.s32.totalorder %s14, 1
      %s183 = scalar_select %p182, %s14, 1
      %s184 = smul.addr %s183, 8
      %s185 = scalar_lea.vmem %s0, %s184
      %p186 = scmp.lt.s32.totalorder %s14, 1
      %s187 = scalar_select %p186, %s14, 1
      %s188 = smul.addr %s187, 8
      %s189 = scalar_lea.vmem %s1, %s188
      %p190 = scmp.lt.s32.totalorder %s14, 1
      %s191 = scalar_select %p190, %s14, 1
      %s192 = scalar_lea.vmem %s2, %s191
      %p193 = scmp.lt.s32.totalorder %s14, 1
      %s194 = scalar_select %p193, %s14, 1
      %s195 = smul.addr %s194, 8
      %s196 = scalar_lea.vmem %s3, %s195
      %v197 = vld [vmem:[%s185] sm:$0xff]
      %v198 = vld [vmem:[%s189] sm:$0xff]
      %v199 = vld [vmem:[%s192] sm:$0x1]
      %vm200 = vcmask 64512
      %v202 = vsel %vm200, %v197, 0
      %v205 = vsel %vm200, %v198, 0
      %207 = vmatprep.subr.mxu0 0.0
      %208 = vmatpush1.xpose.msra.mxu0 %v205
      %209 = vmatprep.subr.mxu0 0.0
      %210 = vmatpush1.xpose.msra.mxu0 0.0
      %211 = vmatprep.subr.mxu0 0.0
      %212 = vmatpush1.xpose.msra.mxu0 0.0
      %213 = vmatprep.subr.mxu0 0.0
      %214 = vmatpush1.xpose.msra.mxu0 0.0
      %215 = vmatprep.subr.mxu0 0.0
      %216 = vmatpush1.xpose.msra.mxu0 0.0
      %217 = vmatprep.subr.mxu0 0.0
      %218 = vmatpush1.xpose.msra.mxu0 0.0
      %219 = vmatprep.subr.mxu0 0.0
      %220 = vmatpush1.xpose.msra.mxu0 0.0
      %221 = vmatprep.subr.mxu0 0.0
      %222 = vmatpush1.xpose.msra.mxu0 0.0
      %223 = vmatprep.subr.mxu0 0.0
      %224 = vmatpush1.xpose.msra.mxu0 0.0
      %225 = vmatprep.subr.mxu0 0.0
      %226 = vmatpush1.xpose.msra.mxu0 0.0
      %227 = vmatprep.subr.mxu0 0.0
      %228 = vmatpush1.xpose.msra.mxu0 0.0
      %229 = vmatprep.subr.mxu0 0.0
      %230 = vmatpush1.xpose.msra.mxu0 0.0
      %231 = vmatprep.subr.mxu0 0.0
      %232 = vmatpush1.xpose.msra.mxu0 0.0
      %233 = vmatprep.subr.mxu0 0.0
      %234 = vmatpush1.xpose.msra.mxu0 0.0
      %235 = vmatprep.subr.mxu0 0.0
      %236 = vmatpush1.xpose.msra.mxu0 0.0
      %237 = vmatprep.subr.mxu0 0.0
      %238 = vmatpush1.xpose.msra.mxu0 0.0
      %239 = vmatprep.subr.mxu0 0.0
      %240 = vmatpush1.xpose.msra.mxu0 0.0
      %241 = vmatprep.subr.mxu0 0.0
      %242 = vmatpush1.xpose.msra.mxu0 0.0
      %243 = vmatprep.subr.mxu0 0.0
      %244 = vmatpush1.xpose.msra.mxu0 0.0
      %245 = vmatprep.subr.mxu0 0.0
      %246 = vmatpush1.xpose.msra.mxu0 0.0
      %247 = vmatprep.subr.mxu0 0.0
      %248 = vmatpush1.xpose.msra.mxu0 0.0
      %249 = vmatprep.subr.mxu0 0.0
      %250 = vmatpush1.xpose.msra.mxu0 0.0
      %251 = vmatprep.subr.mxu0 0.0
      %252 = vmatpush1.xpose.msra.mxu0 0.0
      %253 = vmatprep.subr.mxu0 0.0
      %254 = vmatpush1.xpose.msra.mxu0 0.0
      %255 = vmatprep.subr.mxu0 0.0
      %256 = vmatpush1.xpose.msra.mxu0 0.0
      %257 = vmatprep.subr.mxu0 0.0
      %258 = vmatpush1.xpose.msra.mxu0 0.0
      %259 = vmatprep.subr.mxu0 0.0
      %260 = vmatpush1.xpose.msra.mxu0 0.0
      %261 = vmatprep.subr.mxu0 0.0
      %262 = vmatpush1.xpose.msra.mxu0 0.0
      %263 = vmatprep.subr.mxu0 0.0
      %264 = vmatpush1.xpose.msra.mxu0 0.0
      %265 = vmatprep.subr.mxu0 0.0
      %266 = vmatpush1.xpose.msra.mxu0 0.0
      %267 = vmatprep.subr.mxu0 0.0
      %268 = vmatpush1.xpose.msra.mxu0 0.0
      %269 = vmatprep.subr.mxu0 0.0
      %270 = vmatpush1.xpose.msra.mxu0 0.0
      %271 = vmatprep.mubr.f32.mxu0 0.0
      %272 = vmatmul.mubr.f32.gmra.mrb[0].mxu0 %v202
      %v273 = vpop.f32.mrb[0].mxu0
      %v274 = vadd.f32 0.0, %v273
      %v275 = vpop.f32.mrb[0].mxu0
      %276 = vdwg.mxu0
      %v277 = vmul.f32 %v274, 0.35355338
      %vm278 = vcmp.eq.f32.partialorder %v199, 0.0
      %v279 = vsel %vm278, 1, 0
      %v280 = vlaneseq
      %v281 = vshrl.u32 %v280, 7
      %v282 = vsub.s32 0, %v281
      %v283 = vrot.slane %v279, %v282
      %vm284 = vcmp.eq.s32.totalorder %v283, 1
      %v285 = vsel %vm284, -1e+09, %v277
      %v286 = vsel %vm200, %v285, -inf
      %287 = vmax.xlane.f32.xlu0 %v286
      %v288 = vpop.xlane.xlu0 %287
      %v289 = vsub.f32 %v285, %v288
      %v290 = vmul.f32 %v289, 1.442695
      %v291 = vpow.pop %v290
      %v292 = vsel %vm200, %v291, 0.0
      %293 = vadd.xlane.f32.xlu0 %v292
      %v294 = vpop.xlane.xlu0 %293
      %v295 = vrcp.pop %v294
      %v296 = vmul.f32 %v291, %v295
      %297 = vrot.lane.b32.xlu0 %v198, 96
      %v298 = vpop.permute.xlu0 %297
      %v301 = vsel %vm200, %v296, 0
      %303 = vmatprep.subr.mxu0 0.0
      %304 = vmatpush1.msra.mxu0 %v298
      %305 = vmatprep.subr.mxu0 0.0
      %306 = vmatpush1.msra.mxu0 0.0
      %307 = vmatprep.subr.mxu0 0.0
      %308 = vmatpush1.msra.mxu0 0.0
      %309 = vmatprep.subr.mxu0 0.0
      %310 = vmatpush1.msra.mxu0 0.0
      %311 = vmatprep.subr.mxu0 0.0
      %312 = vmatpush1.msra.mxu0 0.0
      %313 = vmatprep.subr.mxu0 0.0
      %314 = vmatpush1.msra.mxu0 0.0
      %315 = vmatprep.subr.mxu0 0.0
      %316 = vmatpush1.msra.mxu0 0.0
      %317 = vmatprep.subr.mxu0 0.0
      %318 = vmatpush1.msra.mxu0 0.0
      %319 = vmatprep.subr.mxu0 0.0
      %320 = vmatpush1.msra.mxu0 0.0
      %321 = vmatprep.subr.mxu0 0.0
      %322 = vmatpush1.msra.mxu0 0.0
      %323 = vmatprep.subr.mxu0 0.0
      %324 = vmatpush1.msra.mxu0 0.0
      %325 = vmatprep.subr.mxu0 0.0
      %326 = vmatpush1.msra.mxu0 0.0
      %327 = vmatprep.subr.mxu0 0.0
      %328 = vmatpush1.msra.mxu0 0.0
      %329 = vmatprep.subr.mxu0 0.0
      %330 = vmatpush1.msra.mxu0 0.0
      %331 = vmatprep.subr.mxu0 0.0
      %332 = vmatpush1.msra.mxu0 0.0
      %333 = vmatprep.subr.mxu0 0.0
      %334 = vmatpush1.msra.mxu0 0.0
      %335 = vmatprep.subr.mxu0 0.0
      %336 = vmatpush1.msra.mxu0 0.0
      %337 = vmatprep.subr.mxu0 0.0
      %338 = vmatpush1.msra.mxu0 0.0
      %339 = vmatprep.subr.mxu0 0.0
      %340 = vmatpush1.msra.mxu0 0.0
      %341 = vmatprep.subr.mxu0 0.0
      %342 = vmatpush1.msra.mxu0 0.0
      %343 = vmatprep.subr.mxu0 0.0
      %344 = vmatpush1.msra.mxu0 0.0
      %345 = vmatprep.subr.mxu0 0.0
      %346 = vmatpush1.msra.mxu0 0.0
      %347 = vmatprep.subr.mxu0 0.0
      %348 = vmatpush1.msra.mxu0 0.0
      %349 = vmatprep.subr.mxu0 0.0
      %350 = vmatpush1.msra.mxu0 0.0
      %351 = vmatprep.subr.mxu0 0.0
      %352 = vmatpush1.msra.mxu0 0.0
      %353 = vmatprep.subr.mxu0 0.0
      %354 = vmatpush1.msra.mxu0 0.0
      %355 = vmatprep.subr.mxu0 0.0
      %356 = vmatpush1.msra.mxu0 0.0
      %357 = vmatprep.subr.mxu0 0.0
      %358 = vmatpush1.msra.mxu0 0.0
      %359 = vmatprep.subr.mxu0 0.0
      %360 = vmatpush1.msra.mxu0 0.0
      %361 = vmatprep.subr.mxu0 0.0
      %362 = vmatpush1.msra.mxu0 0.0
      %363 = vmatprep.subr.mxu0 0.0
      %364 = vmatpush1.msra.mxu0 0.0
      %365 = vmatprep.subr.mxu0 0.0
      %366 = vmatpush1.msra.mxu0 0.0
      %367 = vmatprep.mubr.f32.mxu0 0.0
      %368 = vmatmul.mubr.f32.gmra.mrb[0].mxu0 %v301
      %v369 = vpop.f32.mrb[0].mxu0
      %v370 = vadd.f32 0.0, %v369
      %v371 = vpop.f32.mrb[0].mxu0
      %372 = vdwg.mxu0
      %373 = vrot.lane.b32.xlu0 %v197, 120
      %v374 = vpop.permute.xlu0 %373
      %375 = vrot.lane.b32.xlu0 %v198, 120
      %v376 = vpop.permute.xlu0 %375
      %v377 = vsel %vm200, %v374, 0
      %v379 = vsel %vm200, %v376, 0
      %381 = vmatprep.subr.mxu0 0.0
      %382 = vmatpush1.xpose.msra.mxu0 %v379
      %383 = vmatprep.subr.mxu0 0.0
      %384 = vmatpush1.xpose.msra.mxu0 0.0
      %385 = vmatprep.subr.mxu0 0.0
      %386 = vmatpush1.xpose.msra.mxu0 0.0
      %387 = vmatprep.subr.mxu0 0.0
      %388 = vmatpush1.xpose.msra.mxu0 0.0
      %389 = vmatprep.subr.mxu0 0.0
      %390 = vmatpush1.xpose.msra.mxu0 0.0
      %391 = vmatprep.subr.mxu0 0.0
      %392 = vmatpush1.xpose.msra.mxu0 0.0
      %393 = vmatprep.subr.mxu0 0.0
      %394 = vmatpush1.xpose.msra.mxu0 0.0
      %395 = vmatprep.subr.mxu0 0.0
      %396 = vmatpush1.xpose.msra.mxu0 0.0
      %397 = vmatprep.subr.mxu0 0.0
      %398 = vmatpush1.xpose.msra.mxu0 0.0
      %399 = vmatprep.subr.mxu0 0.0
      %400 = vmatpush1.xpose.msra.mxu0 0.0
      %401 = vmatprep.subr.mxu0 0.0
      %402 = vmatpush1.xpose.msra.mxu0 0.0
      %403 = vmatprep.subr.mxu0 0.0
      %404 = vmatpush1.xpose.msra.mxu0 0.0
      %405 = vmatprep.subr.mxu0 0.0
      %406 = vmatpush1.xpose.msra.mxu0 0.0
      %407 = vmatprep.subr.mxu0 0.0
      %408 = vmatpush1.xpose.msra.mxu0 0.0
      %409 = vmatprep.subr.mxu0 0.0
      %410 = vmatpush1.xpose.msra.mxu0 0.0
      %411 = vmatprep.subr.mxu0 0.0
      %412 = vmatpush1.xpose.msra.mxu0 0.0
      %413 = vmatprep.subr.mxu0 0.0
      %414 = vmatpush1.xpose.msra.mxu0 0.0
      %415 = vmatprep.subr.mxu0 0.0
      %416 = vmatpush1.xpose.msra.mxu0 0.0
      %417 = vmatprep.subr.mxu0 0.0
      %418 = vmatpush1.xpose.msra.mxu0 0.0
      %419 = vmatprep.subr.mxu0 0.0
      %420 = vmatpush1.xpose.msra.mxu0 0.0
      %421 = vmatprep.subr.mxu0 0.0
      %422 = vmatpush1.xpose.msra.mxu0 0.0
      %423 = vmatprep.subr.mxu0 0.0
      %424 = vmatpush1.xpose.msra.mxu0 0.0
      %425 = vmatprep.subr.mxu0 0.0
      %426 = vmatpush1.xpose.msra.mxu0 0.0
      %427 = vmatprep.subr.mxu0 0.0
      %428 = vmatpush1.xpose.msra.mxu0 0.0
      %429 = vmatprep.subr.mxu0 0.0
      %430 = vmatpush1.xpose.msra.mxu0 0.0
      %431 = vmatprep.subr.mxu0 0.0
      %432 = vmatpush1.xpose.msra.mxu0 0.0
      %433 = vmatprep.subr.mxu0 0.0
      %434 = vmatpush1.xpose.msra.mxu0 0.0
      %435 = vmatprep.subr.mxu0 0.0
      %436 = vmatpush1.xpose.msra.mxu0 0.0
      %437 = vmatprep.subr.mxu0 0.0
      %438 = vmatpush1.xpose.msra.mxu0 0.0
      %439 = vmatprep.subr.mxu0 0.0
      %440 = vmatpush1.xpose.msra.mxu0 0.0
      %441 = vmatprep.subr.mxu0 0.0
      %442 = vmatpush1.xpose.msra.mxu0 0.0
      %443 = vmatprep.subr.mxu0 0.0
      %444 = vmatpush1.xpose.msra.mxu0 0.0
      %445 = vmatprep.mubr.f32.mxu0 0.0
      %446 = vmatmul.mubr.f32.gmra.mrb[0].mxu0 %v377
      %v447 = vpop.f32.mrb[0].mxu0
      %v448 = vadd.f32 0.0, %v447
      %v449 = vpop.f32.mrb[0].mxu0
      %450 = vdwg.mxu0
      %v451 = vmul.f32 %v448, 0.35355338
      %v452 = vsel %vm284, -1e+09, %v451
      %v453 = vsel %vm200, %v452, -inf
      %454 = vmax.xlane.f32.xlu0 %v453
      %v455 = vpop.xlane.xlu0 %454
      %v456 = vsub.f32 %v452, %v455
      %v457 = vmul.f32 %v456, 1.442695
      %v458 = vpow.pop %v457
      %v459 = vsel %vm200, %v458, 0.0
      %460 = vadd.xlane.f32.xlu0 %v459
      %v461 = vpop.xlane.xlu0 %460
      %v462 = vrcp.pop %v461
      %v463 = vmul.f32 %v458, %v462
      %464 = vrot.lane.b32.xlu0 %v198, 88
      %v465 = vpop.permute.xlu0 %464
      %v468 = vsel %vm200, %v463, 0
      %470 = vmatprep.subr.mxu0 0.0
      %471 = vmatpush1.msra.mxu0 %v465
      %472 = vmatprep.subr.mxu0 0.0
      %473 = vmatpush1.msra.mxu0 0.0
      %474 = vmatprep.subr.mxu0 0.0
      %475 = vmatpush1.msra.mxu0 0.0
      %476 = vmatprep.subr.mxu0 0.0
      %477 = vmatpush1.msra.mxu0 0.0
      %478 = vmatprep.subr.mxu0 0.0
      %479 = vmatpush1.msra.mxu0 0.0
      %480 = vmatprep.subr.mxu0 0.0
      %481 = vmatpush1.msra.mxu0 0.0
      %482 = vmatprep.subr.mxu0 0.0
      %483 = vmatpush1.msra.mxu0 0.0
      %484 = vmatprep.subr.mxu0 0.0
      %485 = vmatpush1.msra.mxu0 0.0
      %486 = vmatprep.subr.mxu0 0.0
      %487 = vmatpush1.msra.mxu0 0.0
      %488 = vmatprep.subr.mxu0 0.0
      %489 = vmatpush1.msra.mxu0 0.0
      %490 = vmatprep.subr.mxu0 0.0
      %491 = vmatpush1.msra.mxu0 0.0
      %492 = vmatprep.subr.mxu0 0.0
      %493 = vmatpush1.msra.mxu0 0.0
      %494 = vmatprep.subr.mxu0 0.0
      %495 = vmatpush1.msra.mxu0 0.0
      %496 = vmatprep.subr.mxu0 0.0
      %497 = vmatpush1.msra.mxu0 0.0
      %498 = vmatprep.subr.mxu0 0.0
      %499 = vmatpush1.msra.mxu0 0.0
      %500 = vmatprep.subr.mxu0 0.0
      %501 = vmatpush1.msra.mxu0 0.0
      %502 = vmatprep.subr.mxu0 0.0
      %503 = vmatpush1.msra.mxu0 0.0
      %504 = vmatprep.subr.mxu0 0.0
      %505 = vmatpush1.msra.mxu0 0.0
      %506 = vmatprep.subr.mxu0 0.0
      %507 = vmatpush1.msra.mxu0 0.0
      %508 = vmatprep.subr.mxu0 0.0
      %509 = vmatpush1.msra.mxu0 0.0
      %510 = vmatprep.subr.mxu0 0.0
      %511 = vmatpush1.msra.mxu0 0.0
      %512 = vmatprep.subr.mxu0 0.0
      %513 = vmatpush1.msra.mxu0 0.0
      %514 = vmatprep.subr.mxu0 0.0
      %515 = vmatpush1.msra.mxu0 0.0
      %516 = vmatprep.subr.mxu0 0.0
      %517 = vmatpush1.msra.mxu0 0.0
      %518 = vmatprep.subr.mxu0 0.0
      %519 = vmatpush1.msra.mxu0 0.0
      %520 = vmatprep.subr.mxu0 0.0
      %521 = vmatpush1.msra.mxu0 0.0
      %522 = vmatprep.subr.mxu0 0.0
      %523 = vmatpush1.msra.mxu0 0.0
      %524 = vmatprep.subr.mxu0 0.0
      %525 = vmatpush1.msra.mxu0 0.0
      %526 = vmatprep.subr.mxu0 0.0
      %527 = vmatpush1.msra.mxu0 0.0
      %528 = vmatprep.subr.mxu0 0.0
      %529 = vmatpush1.msra.mxu0 0.0
      %530 = vmatprep.subr.mxu0 0.0
      %531 = vmatpush1.msra.mxu0 0.0
      %532 = vmatprep.subr.mxu0 0.0
      %533 = vmatpush1.msra.mxu0 0.0
      %534 = vmatprep.mubr.f32.mxu0 0.0
      %535 = vmatmul.mubr.f32.gmra.mrb[0].mxu0 %v468
      %v536 = vpop.f32.mrb[0].mxu0
      %v537 = vadd.f32 0.0, %v536
      %v538 = vpop.f32.mrb[0].mxu0
      %539 = vdwg.mxu0
      %540 = vrot.lane.b32.xlu0 %v197, 112
      %v541 = vpop.permute.xlu0 %540
      %542 = vrot.lane.b32.xlu0 %v198, 112
      %v543 = vpop.permute.xlu0 %542
      %v544 = vsel %vm200, %v541, 0
      %v546 = vsel %vm200, %v543, 0
      %548 = vmatprep.subr.mxu0 0.0
      %549 = vmatpush1.xpose.msra.mxu0 %v546
      %550 = vmatprep.subr.mxu0 0.0
      %551 = vmatpush1.xpose.msra.mxu0 0.0
      %552 = vmatprep.subr.mxu0 0.0
      %553 = vmatpush1.xpose.msra.mxu0 0.0
      %554 = vmatprep.subr.mxu0 0.0
      %555 = vmatpush1.xpose.msra.mxu0 0.0
      %556 = vmatprep.subr.mxu0 0.0
      %557 = vmatpush1.xpose.msra.mxu0 0.0
      %558 = vmatprep.subr.mxu0 0.0
      %559 = vmatpush1.xpose.msra.mxu0 0.0
      %560 = vmatprep.subr.mxu0 0.0
      %561 = vmatpush1.xpose.msra.mxu0 0.0
      %562 = vmatprep.subr.mxu0 0.0
      %563 = vmatpush1.xpose.msra.mxu0 0.0
      %564 = vmatprep.subr.mxu0 0.0
      %565 = vmatpush1.xpose.msra.mxu0 0.0
      %566 = vmatprep.subr.mxu0 0.0
      %567 = vmatpush1.xpose.msra.mxu0 0.0
      %568 = vmatprep.subr.mxu0 0.0
      %569 = vmatpush1.xpose.msra.mxu0 0.0
      %570 = vmatprep.subr.mxu0 0.0
      %571 = vmatpush1.xpose.msra.mxu0 0.0
      %572 = vmatprep.subr.mxu0 0.0
      %573 = vmatpush1.xpose.msra.mxu0 0.0
      %574 = vmatprep.subr.mxu0 0.0
      %575 = vmatpush1.xpose.msra.mxu0 0.0
      %576 = vmatprep.subr.mxu0 0.0
      %577 = vmatpush1.xpose.msra.mxu0 0.0
      %578 = vmatprep.subr.mxu0 0.0
      %579 = vmatpush1.xpose.msra.mxu0 0.0
      %580 = vmatprep.subr.mxu0 0.0
      %581 = vmatpush1.xpose.msra.mxu0 0.0
      %582 = vmatprep.subr.mxu0 0.0
      %583 = vmatpush1.xpose.msra.mxu0 0.0
      %584 = vmatprep.subr.mxu0 0.0
      %585 = vmatpush1.xpose.msra.mxu0 0.0
      %586 = vmatprep.subr.mxu0 0.0
      %587 = vmatpush1.xpose.msra.mxu0 0.0
      %588 = vmatprep.subr.mxu0 0.0
      %589 = vmatpush1.xpose.msra.mxu0 0.0
      %590 = vmatprep.subr.mxu0 0.0
      %591 = vmatpush1.xpose.msra.mxu0 0.0
      %592 = vmatprep.subr.mxu0 0.0
      %593 = vmatpush1.xpose.msra.mxu0 0.0
      %594 = vmatprep.subr.mxu0 0.0
      %595 = vmatpush1.xpose.msra.mxu0 0.0
      %596 = vmatprep.subr.mxu0 0.0
      %597 = vmatpush1.xpose.msra.mxu0 0.0
      %598 = vmatprep.subr.mxu0 0.0
      %599 = vmatpush1.xpose.msra.mxu0 0.0
      %600 = vmatprep.subr.mxu0 0.0
      %601 = vmatpush1.xpose.msra.mxu0 0.0
      %602 = vmatprep.subr.mxu0 0.0
      %603 = vmatpush1.xpose.msra.mxu0 0.0
      %604 = vmatprep.subr.mxu0 0.0
      %605 = vmatpush1.xpose.msra.mxu0 0.0
      %606 = vmatprep.subr.mxu0 0.0
      %607 = vmatpush1.xpose.msra.mxu0 0.0
      %608 = vmatprep.subr.mxu0 0.0
      %609 = vmatpush1.xpose.msra.mxu0 0.0
      %610 = vmatprep.subr.mxu0 0.0
      %611 = vmatpush1.xpose.msra.mxu0 0.0
      %612 = vmatprep.mubr.f32.mxu0 0.0
      %613 = vmatmul.mubr.f32.gmra.mrb[0].mxu0 %v544
      %v614 = vpop.f32.mrb[0].mxu0
      %v615 = vadd.f32 0.0, %v614
      %v616 = vpop.f32.mrb[0].mxu0
      %617 = vdwg.mxu0
      %v618 = vmul.f32 %v615, 0.35355338
      %v619 = vsel %vm284, -1e+09, %v618
      %v620 = vsel %vm200, %v619, -inf
      %621 = vmax.xlane.f32.xlu0 %v620
      %v622 = vpop.xlane.xlu0 %621
      %v623 = vsub.f32 %v619, %v622
      %v624 = vmul.f32 %v623, 1.442695
      %v625 = vpow.pop %v624
      %v626 = vsel %vm200, %v625, 0.0
      %627 = vadd.xlane.f32.xlu0 %v626
      %v628 = vpop.xlane.xlu0 %627
      %v629 = vrcp.pop %v628
      %v630 = vmul.f32 %v625, %v629
      %631 = vrot.lane.b32.xlu0 %v198, 80
      %v632 = vpop.permute.xlu0 %631
      %v635 = vsel %vm200, %v630, 0
      %637 = vmatprep.subr.mxu0 0.0
      %638 = vmatpush1.msra.mxu0 %v632
      %639 = vmatprep.subr.mxu0 0.0
      %640 = vmatpush1.msra.mxu0 0.0
      %641 = vmatprep.subr.mxu0 0.0
      %642 = vmatpush1.msra.mxu0 0.0
      %643 = vmatprep.subr.mxu0 0.0
      %644 = vmatpush1.msra.mxu0 0.0
      %645 = vmatprep.subr.mxu0 0.0
      %646 = vmatpush1.msra.mxu0 0.0
      %647 = vmatprep.subr.mxu0 0.0
      %648 = vmatpush1.msra.mxu0 0.0
      %649 = vmatprep.subr.mxu0 0.0
      %650 = vmatpush1.msra.mxu0 0.0
      %651 = vmatprep.subr.mxu0 0.0
      %652 = vmatpush1.msra.mxu0 0.0
      %653 = vmatprep.subr.mxu0 0.0
      %654 = vmatpush1.msra.mxu0 0.0
      %655 = vmatprep.subr.mxu0 0.0
      %656 = vmatpush1.msra.mxu0 0.0
      %657 = vmatprep.subr.mxu0 0.0
      %658 = vmatpush1.msra.mxu0 0.0
      %659 = vmatprep.subr.mxu0 0.0
      %660 = vmatpush1.msra.mxu0 0.0
      %661 = vmatprep.subr.mxu0 0.0
      %662 = vmatpush1.msra.mxu0 0.0
      %663 = vmatprep.subr.mxu0 0.0
      %664 = vmatpush1.msra.mxu0 0.0
      %665 = vmatprep.subr.mxu0 0.0
      %666 = vmatpush1.msra.mxu0 0.0
      %667 = vmatprep.subr.mxu0 0.0
      %668 = vmatpush1.msra.mxu0 0.0
      %669 = vmatprep.subr.mxu0 0.0
      %670 = vmatpush1.msra.mxu0 0.0
      %671 = vmatprep.subr.mxu0 0.0
      %672 = vmatpush1.msra.mxu0 0.0
      %673 = vmatprep.subr.mxu0 0.0
      %674 = vmatpush1.msra.mxu0 0.0
      %675 = vmatprep.subr.mxu0 0.0
      %676 = vmatpush1.msra.mxu0 0.0
      %677 = vmatprep.subr.mxu0 0.0
      %678 = vmatpush1.msra.mxu0 0.0
      %679 = vmatprep.subr.mxu0 0.0
      %680 = vmatpush1.msra.mxu0 0.0
      %681 = vmatprep.subr.mxu0 0.0
      %682 = vmatpush1.msra.mxu0 0.0
      %683 = vmatprep.subr.mxu0 0.0
      %684 = vmatpush1.msra.mxu0 0.0
      %685 = vmatprep.subr.mxu0 0.0
      %686 = vmatpush1.msra.mxu0 0.0
      %687 = vmatprep.subr.mxu0 0.0
      %688 = vmatpush1.msra.mxu0 0.0
      %689 = vmatprep.subr.mxu0 0.0
      %690 = vmatpush1.msra.mxu0 0.0
      %691 = vmatprep.subr.mxu0 0.0
      %692 = vmatpush1.msra.mxu0 0.0
      %693 = vmatprep.subr.mxu0 0.0
      %694 = vmatpush1.msra.mxu0 0.0
      %695 = vmatprep.subr.mxu0 0.0
      %696 = vmatpush1.msra.mxu0 0.0
      %697 = vmatprep.subr.mxu0 0.0
      %698 = vmatpush1.msra.mxu0 0.0
      %699 = vmatprep.subr.mxu0 0.0
      %700 = vmatpush1.msra.mxu0 0.0
      %701 = vmatprep.mubr.f32.mxu0 0.0
      %702 = vmatmul.mubr.f32.gmra.mrb[0].mxu0 %v635
      %v703 = vpop.f32.mrb[0].mxu0
      %v704 = vadd.f32 0.0, %v703
      %v705 = vpop.f32.mrb[0].mxu0
      %706 = vdwg.mxu0
      %707 = vrot.lane.b32.xlu0 %v197, 104
      %v708 = vpop.permute.xlu0 %707
      %709 = vrot.lane.b32.xlu0 %v198, 104
      %v710 = vpop.permute.xlu0 %709
      %v711 = vsel %vm200, %v708, 0
      %v713 = vsel %vm200, %v710, 0
      %715 = vmatprep.subr.mxu0 0.0
      %716 = vmatpush1.xpose.msra.mxu0 %v713
      %717 = vmatprep.subr.mxu0 0.0
      %718 = vmatpush1.xpose.msra.mxu0 0.0
      %719 = vmatprep.subr.mxu0 0.0
      %720 = vmatpush1.xpose.msra.mxu0 0.0
      %721 = vmatprep.subr.mxu0 0.0
      %722 = vmatpush1.xpose.msra.mxu0 0.0
      %723 = vmatprep.subr.mxu0 0.0
      %724 = vmatpush1.xpose.msra.mxu0 0.0
      %725 = vmatprep.subr.mxu0 0.0
      %726 = vmatpush1.xpose.msra.mxu0 0.0
      %727 = vmatprep.subr.mxu0 0.0
      %728 = vmatpush1.xpose.msra.mxu0 0.0
      %729 = vmatprep.subr.mxu0 0.0
      %730 = vmatpush1.xpose.msra.mxu0 0.0
      %731 = vmatprep.subr.mxu0 0.0
      %732 = vmatpush1.xpose.msra.mxu0 0.0
      %733 = vmatprep.subr.mxu0 0.0
      %734 = vmatpush1.xpose.msra.mxu0 0.0
      %735 = vmatprep.subr.mxu0 0.0
      %736 = vmatpush1.xpose.msra.mxu0 0.0
      %737 = vmatprep.subr.mxu0 0.0
      %738 = vmatpush1.xpose.msra.mxu0 0.0
      %739 = vmatprep.subr.mxu0 0.0
      %740 = vmatpush1.xpose.msra.mxu0 0.0
      %741 = vmatprep.subr.mxu0 0.0
      %742 = vmatpush1.xpose.msra.mxu0 0.0
      %743 = vmatprep.subr.mxu0 0.0
      %744 = vmatpush1.xpose.msra.mxu0 0.0
      %745 = vmatprep.subr.mxu0 0.0
      %746 = vmatpush1.xpose.msra.mxu0 0.0
      %747 = vmatprep.subr.mxu0 0.0
      %748 = vmatpush1.xpose.msra.mxu0 0.0
      %749 = vmatprep.subr.mxu0 0.0
      %750 = vmatpush1.xpose.msra.mxu0 0.0
      %751 = vmatprep.subr.mxu0 0.0
      %752 = vmatpush1.xpose.msra.mxu0 0.0
      %753 = vmatprep.subr.mxu0 0.0
      %754 = vmatpush1.xpose.msra.mxu0 0.0
      %755 = vmatprep.subr.mxu0 0.0
      %756 = vmatpush1.xpose.msra.mxu0 0.0
      %757 = vmatprep.subr.mxu0 0.0
      %758 = vmatpush1.xpose.msra.mxu0 0.0
      %759 = vmatprep.subr.mxu0 0.0
      %760 = vmatpush1.xpose.msra.mxu0 0.0
      %761 = vmatprep.subr.mxu0 0.0
      %762 = vmatpush1.xpose.msra.mxu0 0.0
      %763 = vmatprep.subr.mxu0 0.0
      %764 = vmatpush1.xpose.msra.mxu0 0.0
      %765 = vmatprep.subr.mxu0 0.0
      %766 = vmatpush1.xpose.msra.mxu0 0.0
      %767 = vmatprep.subr.mxu0 0.0
      %768 = vmatpush1.xpose.msra.mxu0 0.0
      %769 = vmatprep.subr.mxu0 0.0
      %770 = vmatpush1.xpose.msra.mxu0 0.0
      %771 = vmatprep.subr.mxu0 0.0
      %772 = vmatpush1.xpose.msra.mxu0 0.0
      %773 = vmatprep.subr.mxu0 0.0
      %774 = vmatpush1.xpose.msra.mxu0 0.0
      %775 = vmatprep.subr.mxu0 0.0
      %776 = vmatpush1.xpose.msra.mxu0 0.0
      %777 = vmatprep.subr.mxu0 0.0
      %778 = vmatpush1.xpose.msra.mxu0 0.0
      %779 = vmatprep.mubr.f32.mxu0 0.0
      %780 = vmatmul.mubr.f32.gmra.mrb[0].mxu0 %v711
      %v781 = vpop.f32.mrb[0].mxu0
      %v782 = vadd.f32 0.0, %v781
      %v783 = vpop.f32.mrb[0].mxu0
      %784 = vdwg.mxu0
      %v785 = vmul.f32 %v782, 0.35355338
      %v786 = vsel %vm284, -1e+09, %v785
      %v787 = vsel %vm200, %v786, -inf
      %788 = vmax.xlane.f32.xlu0 %v787
      %v789 = vpop.xlane.xlu0 %788
      %v790 = vsub.f32 %v786, %v789
      %v791 = vmul.f32 %v790, 1.442695
      %v792 = vpow.pop %v791
      %v793 = vsel %vm200, %v792, 0.0
      %794 = vadd.xlane.f32.xlu0 %v793
      %v795 = vpop.xlane.xlu0 %794
      %v796 = vrcp.pop %v795
      %v797 = vmul.f32 %v792, %v796
      %798 = vrot.lane.b32.xlu0 %v198, 72
      %v799 = vpop.permute.xlu0 %798
      %v802 = vsel %vm200, %v797, 0
      %804 = vmatprep.subr.mxu0 0.0
      %805 = vmatpush1.msra.mxu0 %v799
      %806 = vmatprep.subr.mxu0 0.0
      %807 = vmatpush1.msra.mxu0 0.0
      %808 = vmatprep.subr.mxu0 0.0
      %809 = vmatpush1.msra.mxu0 0.0
      %810 = vmatprep.subr.mxu0 0.0
      %811 = vmatpush1.msra.mxu0 0.0
      %812 = vmatprep.subr.mxu0 0.0
      %813 = vmatpush1.msra.mxu0 0.0
      %814 = vmatprep.subr.mxu0 0.0
      %815 = vmatpush1.msra.mxu0 0.0
      %816 = vmatprep.subr.mxu0 0.0
      %817 = vmatpush1.msra.mxu0 0.0
      %818 = vmatprep.subr.mxu0 0.0
      %819 = vmatpush1.msra.mxu0 0.0
      %820 = vmatprep.subr.mxu0 0.0
      %821 = vmatpush1.msra.mxu0 0.0
      %822 = vmatprep.subr.mxu0 0.0
      %823 = vmatpush1.msra.mxu0 0.0
      %824 = vmatprep.subr.mxu0 0.0
      %825 = vmatpush1.msra.mxu0 0.0
      %826 = vmatprep.subr.mxu0 0.0
      %827 = vmatpush1.msra.mxu0 0.0
      %828 = vmatprep.subr.mxu0 0.0
      %829 = vmatpush1.msra.mxu0 0.0
      %830 = vmatprep.subr.mxu0 0.0
      %831 = vmatpush1.msra.mxu0 0.0
      %832 = vmatprep.subr.mxu0 0.0
      %833 = vmatpush1.msra.mxu0 0.0
      %834 = vmatprep.subr.mxu0 0.0
      %835 = vmatpush1.msra.mxu0 0.0
      %836 = vmatprep.subr.mxu0 0.0
      %837 = vmatpush1.msra.mxu0 0.0
      %838 = vmatprep.subr.mxu0 0.0
      %839 = vmatpush1.msra.mxu0 0.0
      %840 = vmatprep.subr.mxu0 0.0
      %841 = vmatpush1.msra.mxu0 0.0
      %842 = vmatprep.subr.mxu0 0.0
      %843 = vmatpush1.msra.mxu0 0.0
      %844 = vmatprep.subr.mxu0 0.0
      %845 = vmatpush1.msra.mxu0 0.0
      %846 = vmatprep.subr.mxu0 0.0
      %847 = vmatpush1.msra.mxu0 0.0
      %848 = vmatprep.subr.mxu0 0.0
      %849 = vmatpush1.msra.mxu0 0.0
      %850 = vmatprep.subr.mxu0 0.0
      %851 = vmatpush1.msra.mxu0 0.0
      %852 = vmatprep.subr.mxu0 0.0
      %853 = vmatpush1.msra.mxu0 0.0
      %854 = vmatprep.subr.mxu0 0.0
      %855 = vmatpush1.msra.mxu0 0.0
      %856 = vmatprep.subr.mxu0 0.0
      %857 = vmatpush1.msra.mxu0 0.0
      %858 = vmatprep.subr.mxu0 0.0
      %859 = vmatpush1.msra.mxu0 0.0
      %860 = vmatprep.subr.mxu0 0.0
      %861 = vmatpush1.msra.mxu0 0.0
      %862 = vmatprep.subr.mxu0 0.0
      %863 = vmatpush1.msra.mxu0 0.0
      %864 = vmatprep.subr.mxu0 0.0
      %865 = vmatpush1.msra.mxu0 0.0
      %866 = vmatprep.subr.mxu0 0.0
      %867 = vmatpush1.msra.mxu0 0.0
      %868 = vmatprep.mubr.f32.mxu0 0.0
      %869 = vmatmul.mubr.f32.gmra.mrb[0].mxu0 %v802
      %v870 = vpop.f32.mrb[0].mxu0
      %v871 = vadd.f32 0.0, %v870
      %v872 = vpop.f32.mrb[0].mxu0
      %873 = vdwg.mxu0
      %875 = vrot.lane.b32.xlu0 %v537, 8
      %v876 = vpop.permute.xlu0 %875
      %879 = vrot.lane.b32.xlu0 %v704, 16
      %v880 = vpop.permute.xlu0 %879
      %883 = vrot.lane.b32.xlu0 %v871, 24
      %v884 = vpop.permute.xlu0 %883
      %v886 = vsel %vm200, %v370, %v876
      %vm887 = vcmask 130048
      %v888 = vsel %vm887, %v886, %v880
      %vm889 = vcmask 195584
      %v890 = vsel %vm889, %v888, %v884
      %vm891 = vcmask 261120
      %892 = vst.msk [vmem:[%s196] sm:$0xff] %vm891, %v890
      %p893 = scmp.lt.s32.totalorder %s14, 1
      %s894 = scalar_select %p893, %s14, 1
      %s895 = smul.addr %s894, 8
      %s896 = scalar_lea.vmem %s3, %s895
      // Predicated region
      $region33: #{decoder_forward.21} parent=31 // pred_check
        %p897 = pneg %p110
      $region34: #{decoder_forward.21} parent=31 // pred_check_branch
        %899 = sbr.rel (%p897) target = $region36
      $region35: #{decoder_forward.21} parent=31 // pred_region
        _
      $region36: #{decoder_forward.21} parent=31 // pred_fallthru
        _
    $region32: #{decoder_forward.21} parent=5 // pred_fallthru
      _
    %p900 = scmp.le.s32.totalorder 2, %s9
    // Predicated region
    $region37: #{decoder_forward.21} parent=5 // pred_check
      %p901 = pneg %p900
    $region38: #{decoder_forward.21} parent=5 // pred_check_branch
      %903 = sbr.rel (%p901) target = $region40
    $region39: #{decoder_forward.21} parent=5 // pred_region
      %s904 = ssub.s32 %s9, 2
      // Predicated region
      $region41: #{decoder_forward.21} parent=39 // pred_check
        %p905 = pneg %p116
      $region42: #{decoder_forward.21} parent=39 // pred_check_branch
        %907 = sbr.rel (%p905) target = $region44
      $region43: #{decoder_forward.21} parent=39 // pred_region
        %p908 = scmp.lt.s32.totalorder %s15, 1
        %s909 = scalar_select %p908, %s15, 1
        %s910 = smul.addr %s909, 8
        %s911 = scalar_lea.vmem %s3, %s910
      $region44: #{decoder_forward.21} parent=39 // pred_fallthru
        _
    $region40: #{decoder_forward.21} parent=5 // pred_fallthru
      _
  $region6: #{decoder_forward.21} parent=0 // loop_footer
    %s13 = sadd.s32 1, %s9
  $region7: #{decoder_forward.21} parent=0 // loop_footer_branch
    %8 = sbr.rel target = $region3
  $region8: #{decoder_forward.21} parent=0 // loop_exit
    _

// kernel: decoder_forward.23
$region0: #{decoder_forward.23}
  #allocation0 [shape = 'u32[]', space=smem, size = 0x4, offset = 0x4, fixed_abs, tag = 'smem constant byte address 0x4 - core index']
  #allocation1 [shape = 'u32[144,128]{1,0:T(1,128)}', space=vmem, size = 0x12000, scoped, tag = 'internal scratch']
  %s0 = inlined_call_operand.vmem [shape: f32[16,32], index: 0, kind: input, shape index: {}]
  %s1 = inlined_call_operand.vmem [shape: f32[1,32], index: 1, kind: input, shape index: {}]
  %s2 = inlined_call_operand.vmem [shape: f32[1,32], index: 2, kind: input, shape index: {}]
  %s3 = inlined_call_operand.vmem [shape: f32[32,64], index: 3, kind: input, shape index: {}]
  %s4 = inlined_call_operand.vmem [shape: f32[1,64], index: 4, kind: input, shape index: {}]
  %s5 = inlined_call_operand.vmem [shape: f32[64,32], index: 5, kind: input, shape index: {}]
  %s6 = inlined_call_operand.vmem [shape: f32[1,32], index: 6, kind: input, shape index: {}]
  %s7 = inlined_call_operand.vmem [shape: f32[16,32], index: 7, kind: output, shape index: {}]
  %s8 = sld [smem:[#allocation0]]
  $region61: #{decoder_forward.23} parent=0
    _
  %s10 = ssub.s32 1, %s8
  %s11 = scalar_select 0, %s10, %s8
  loop: start=0, step=1, limit=4
  $region2: #{decoder_forward.23} parent=0 // loop_pre_header
    _
  $region3: #{decoder_forward.23} parent=0 // loop_header
    %s13 = sphi 0, %s17
    %p14 = scmp.ge.s32.totalorder %s13, 4
    %s23 = sphi 0, %s25
    %s26 = sphi 0, %s23
    %s27 = sphi 0, %s26
    %s43 = sphi 0, %s27
    %s47 = sphi 0, %s47
    %s49 = sphi 0, %s47
    %s50 = sphi 0, %s49
    %s64 = sphi 0, %s50
    %s68 = sphi 0, %s68
    %s70 = sphi 0, %s68
    %s71 = sphi 0, %s70
    %s85 = sphi 0, %s71
    %s89 = sphi 0, %s89
    %s91 = sphi 0, %s89
    %s92 = sphi 0, %s91
    %s106 = sphi 0, %s92
    %s110 = sphi 0, %s110
    %s112 = sphi 0, %s110
    %s113 = sphi 0, %s112
    %s127 = sphi 0, %s113
    %s131 = sphi 0, %s131
    %s133 = sphi 0, %s131
    %s134 = sphi 0, %s133
    %s148 = sphi 0, %s134
    %s152 = sphi 0, %s152
    %s154 = sphi 0, %s152
    %s155 = sphi 0, %s154
    %s169 = sphi 0, %s155
    %s175 = sphi 0, %s177
    %s178 = sphi 0, %s175
    %s179 = sphi 0, %s178
    %s195 = sphi 0, %s179
  $region4: #{decoder_forward.23} parent=0 // loop_header_branch
    %16 = sbr.rel (%p14) target = $region8
  $region5: #{decoder_forward.23} parent=0 // loop_body
    %s18 = ssub.s32 %s13, 1
    %s19 = ssub.s32 %s13, 2
    %s20 = sadd.s32 %s13, 1
    %s21 = ssub.s32 %s13, %s20
    %p22 = scmp.eq.s32.totalorder %s21, 0
    %s24 = sadd.s32 %s23, 1
    %s25 = scalar_select %p22, %s23, %s24
    %p28 = pneg %p22
    %p29 = scmp.eq.s32.totalorder %s13, 1
    %p30 = por %p28, %p29
    %p31 = scmp.ne.s32.totalorder %s23, %s26
    %p32 = scmp.eq.s32.totalorder %s13, 0
    %p33 = por %p31, %p32
    %p34 = scmp.ne.s32.totalorder %s23, %s26
    %p35 = scmp.eq.s32.totalorder %s18, 1
    %p36 = por %p34, %p35
    %p37 = scmp.ne.s32.totalorder %s26, %s27
    %p38 = scmp.eq.s32.totalorder %s18, 0
    %p39 = por %p37, %p38
    %p40 = scmp.ne.s32.totalorder %s26, %s27
    %p41 = scmp.eq.s32.totalorder %s19, 1
    %p42 = por %p40, %p41
    %p44 = scmp.ne.s32.totalorder %s27, %s43
    %p45 = scmp.eq.s32.totalorder %s19, 0
    %p46 = por %p44, %p45
    %s48 = sadd.s32 %s47, 1
    %p51 = scmp.eq.s32.totalorder %s13, 1
    %p52 = scmp.ne.s32.totalorder %s47, %s49
    %p53 = scmp.eq.s32.totalorder %s13, 0
    %p54 = por %p52, %p53
    %p55 = scmp.ne.s32.totalorder %s47, %s49
    %p56 = scmp.eq.s32.totalorder %s18, 1
    %p57 = por %p55, %p56
    %p58 = scmp.ne.s32.totalorder %s49, %s50
    %p59 = scmp.eq.s32.totalorder %s18, 0
    %p60 = por %p58, %p59
    %p61 = scmp.ne.s32.totalorder %s49, %s50
    %p62 = scmp.eq.s32.totalorder %s19, 1
    %p63 = por %p61, %p62
    %p65 = scmp.ne.s32.totalorder %s50, %s64
    %p66 = scmp.eq.s32.totalorder %s19, 0
    %p67 = por %p65, %p66
    %s69 = sadd.s32 %s68, 1
    %p72 = scmp.eq.s32.totalorder %s13, 1
    %p73 = scmp.ne.s32.totalorder %s68, %s70
    %p74 = scmp.eq.s32.totalorder %s13, 0
    %p75 = por %p73, %p74
    %p76 = scmp.ne.s32.totalorder %s68, %s70
    %p77 = scmp.eq.s32.totalorder %s18, 1
    %p78 = por %p76, %p77
    %p79 = scmp.ne.s32.totalorder %s70, %s71
    %p80 = scmp.eq.s32.totalorder %s18, 0
    %p81 = por %p79, %p80
    %p82 = scmp.ne.s32.totalorder %s70, %s71
    %p83 = scmp.eq.s32.totalorder %s19, 1
    %p84 = por %p82, %p83
    %p86 = scmp.ne.s32.totalorder %s71, %s85
    %p87 = scmp.eq.s32.totalorder %s19, 0
    %p88 = por %p86, %p87
    %s90 = sadd.s32 %s89, 1
    %p93 = scmp.eq.s32.totalorder %s13, 1
    %p94 = scmp.ne.s32.totalorder %s89, %s91
    %p95 = scmp.eq.s32.totalorder %s13, 0
    %p96 = por %p94, %p95
    %p97 = scmp.ne.s32.totalorder %s89, %s91
    %p98 = scmp.eq.s32.totalorder %s18, 1
    %p99 = por %p97, %p98
    %p100 = scmp.ne.s32.totalorder %s91, %s92
    %p101 = scmp.eq.s32.totalorder %s18, 0
    %p102 = por %p100, %p101
    %p103 = scmp.ne.s32.totalorder %s91, %s92
    %p104 = scmp.eq.s32.totalorder %s19, 1
    %p105 = por %p103, %p104
    %p107 = scmp.ne.s32.totalorder %s92, %s106
    %p108 = scmp.eq.s32.totalorder %s19, 0
    %p109 = por %p107, %p108
    %s111 = sadd.s32 %s110, 1
    %p114 = scmp.eq.s32.totalorder %s13, 1
    %p115 = scmp.ne.s32.totalorder %s110, %s112
    %p116 = scmp.eq.s32.totalorder %s13, 0
    %p117 = por %p115, %p116
    %p118 = scmp.ne.s32.totalorder %s110, %s112
    %p119 = scmp.eq.s32.totalorder %s18, 1
    %p120 = por %p118, %p119
    %p121 = scmp.ne.s32.totalorder %s112, %s113
    %p122 = scmp.eq.s32.totalorder %s18, 0
    %p123 = por %p121, %p122
    %p124 = scmp.ne.s32.totalorder %s112, %s113
    %p125 = scmp.eq.s32.totalorder %s19, 1
    %p126 = por %p124, %p125
    %p128 = scmp.ne.s32.totalorder %s113, %s127
    %p129 = scmp.eq.s32.totalorder %s19, 0
    %p130 = por %p128, %p129
    %s132 = sadd.s32 %s131, 1
    %p135 = scmp.eq.s32.totalorder %s13, 1
    %p136 = scmp.ne.s32.totalorder %s131, %s133
    %p137 = scmp.eq.s32.totalorder %s13, 0
    %p138 = por %p136, %p137
    %p139 = scmp.ne.s32.totalorder %s131, %s133
    %p140 = scmp.eq.s32.totalorder %s18, 1
    %p141 = por %p139, %p140
    %p142 = scmp.ne.s32.totalorder %s133, %s134
    %p143 = scmp.eq.s32.totalorder %s18, 0
    %p144 = por %p142, %p143
    %p145 = scmp.ne.s32.totalorder %s133, %s134
    %p146 = scmp.eq.s32.totalorder %s19, 1
    %p147 = por %p145, %p146
    %p149 = scmp.ne.s32.totalorder %s134, %s148
    %p150 = scmp.eq.s32.totalorder %s19, 0
    %p151 = por %p149, %p150
    %s153 = sadd.s32 %s152, 1
    %p156 = scmp.eq.s32.totalorder %s13, 1
    %p157 = scmp.ne.s32.totalorder %s152, %s154
    %p158 = scmp.eq.s32.totalorder %s13, 0
    %p159 = por %p157, %p158
    %p160 = scmp.ne.s32.totalorder %s152, %s154
    %p161 = scmp.eq.s32.totalorder %s18, 1
    %p162 = por %p160, %p161
    %p163 = scmp.ne.s32.totalorder %s154, %s155
    %p164 = scmp.eq.s32.totalorder %s18, 0
    %p165 = por %p163, %p164
    %p166 = scmp.ne.s32.totalorder %s154, %s155
    %p167 = scmp.eq.s32.totalorder %s19, 1
    %p168 = por %p166, %p167
    %p170 = scmp.ne.s32.totalorder %s155, %s169
    %p171 = scmp.eq.s32.totalorder %s19, 0
    %p172 = por %p170, %p171
    %s173 = ssub.s32 %s13, %s20
    %p174 = scmp.eq.s32.totalorder %s173, 0
    %s176 = sadd.s32 %s175, 1
    %s177 = scalar_select %p174, %s175, %s176
    %p180 = pneg %p174
    %p181 = scmp.eq.s32.totalorder %s13, 1
    %p182 = por %p180, %p181
    %p183 = scmp.ne.s32.totalorder %s175, %s178
    %p184 = scmp.eq.s32.totalorder %s13, 0
    %p185 = por %p183, %p184
    %p186 = scmp.ne.s32.totalorder %s175, %s178
    %p187 = scmp.eq.s32.totalorder %s18, 1
    %p188 = por %p186, %p187
    %p189 = scmp.ne.s32.totalorder %s178, %s179
    %p190 = scmp.eq.s32.totalorder %s18, 0
    %p191 = por %p189, %p190
    %p192 = scmp.ne.s32.totalorder %s178, %s179
    %p193 = scmp.eq.s32.totalorder %s19, 1
    %p194 = por %p192, %p193
    %p196 = scmp.ne.s32.totalorder %s179, %s195
    %p197 = scmp.eq.s32.totalorder %s19, 0
    %p198 = por %p196, %p197
    %p199 = scmp.le.s32.totalorder 1, %s13
    %p200 = scmp.lt.s32.totalorder %s13, 3
    %p201 = pnand %p199, %p200
    %p202 = pneg %p201
    // Predicated region
    $region9: #{decoder_forward.23} parent=5 // pred_check
      _
    $region10: #{decoder_forward.23} parent=5 // pred_check_branch
      %204 = sbr.rel (%p201) target = $region12
    $region11: #{decoder_forward.23} parent=5 // pred_region
      %s205 = ssub.s32 %s13, 1
      // Predicated region
      $region13: #{decoder_forward.23} parent=11 // pred_check
        %p206 = pneg %p60
      $region14: #{decoder_forward.23} parent=11 // pred_check_branch
        %208 = sbr.rel (%p206) target = $region16
      $region15: #{decoder_forward.23} parent=11 // pred_region
        _
      $region16: #{decoder_forward.23} parent=11 // pred_fallthru
        _
      // Predicated region
      $region17: #{decoder_forward.23} parent=11 // pred_check
        %p209 = pneg %p81
      $region18: #{decoder_forward.23} parent=11 // pred_check_branch
        %211 = sbr.rel (%p209) target = $region20
      $region19: #{decoder_forward.23} parent=11 // pred_region
        _
      $region20: #{decoder_forward.23} parent=11 // pred_fallthru
        _
      // Predicated region
      $region21: #{decoder_forward.23} parent=11 // pred_check
        %p212 = pneg %p102
      $region22: #{decoder_forward.23} parent=11 // pred_check_branch
        %214 = sbr.rel (%p212) target = $region24
      $region23: #{decoder_forward.23} parent=11 // pred_region
        _
      $region24: #{decoder_forward.23} parent=11 // pred_fallthru
        _
      // Predicated region
      $region25: #{decoder_forward.23} parent=11 // pred_check
        %p215 = pneg %p123
      $region26: #{decoder_forward.23} parent=11 // pred_check_branch
        %217 = sbr.rel (%p215) target = $region28
      $region27: #{decoder_forward.23} parent=11 // pred_region
        _
      $region28: #{decoder_forward.23} parent=11 // pred_fallthru
        _
      // Predicated region
      $region29: #{decoder_forward.23} parent=11 // pred_check
        %p218 = pneg %p144
      $region30: #{decoder_forward.23} parent=11 // pred_check_branch
        %220 = sbr.rel (%p218) target = $region32
      $region31: #{decoder_forward.23} parent=11 // pred_region
        _
      $region32: #{decoder_forward.23} parent=11 // pred_fallthru
        _
      // Predicated region
      $region33: #{decoder_forward.23} parent=11 // pred_check
        %p221 = pneg %p165
      $region34: #{decoder_forward.23} parent=11 // pred_check_branch
        %223 = sbr.rel (%p221) target = $region36
      $region35: #{decoder_forward.23} parent=11 // pred_region
        _
      $region36: #{decoder_forward.23} parent=11 // pred_fallthru
        _
    $region12: #{decoder_forward.23} parent=5 // pred_fallthru
      _
    %p224 = scmp.lt.s32.totalorder %s13, 2
    // Predicated region
    $region37: #{decoder_forward.23} parent=5 // pred_check
      %p225 = pneg %p224
    $region38: #{decoder_forward.23} parent=5 // pred_check_branch
      %227 = sbr.rel (%p225) target = $region40
    $region39: #{decoder_forward.23} parent=5 // pred_region
      // Predicated region
      $region41: #{decoder_forward.23} parent=39 // pred_check
        %p228 = pneg %p33
      $region42: #{decoder_forward.23} parent=39 // pred_check_branch
        %230 = sbr.rel (%p228) target = $region44
      $region43: #{decoder_forward.23} parent=39 // pred_region
        %p231 = scmp.lt.s32.totalorder %s13, 1
        %s232 = scalar_select %p231, %s13, 1
        %s233 = smul.addr %s232, 8
        %s234 = scalar_lea.vmem %s0, %s233
      $region44: #{decoder_forward.23} parent=39 // pred_fallthru
        _
    $region40: #{decoder_forward.23} parent=5 // pred_fallthru
      _
    %p235 = scmp.le.s32.totalorder 1, %s13
    %p236 = scmp.lt.s32.totalorder %s13, 3
    %p237 = pnand %p235, %p236
    %p238 = pneg %p237
    // Predicated region
    $region45: #{decoder_forward.23} parent=5 // pred_check
      _
    $region46: #{decoder_forward.23} parent=5 // pred_check_branch
      %240 = sbr.rel (%p237) target = $region48
    $region47: #{decoder_forward.23} parent=5 // pred_region
      %s241 = ssub.s32 %s13, 1
      %p242 = scmp.lt.s32.totalorder %s18, 1
      %s243 = scalar_select %p242, %s18, 1
      %s244 = smul.addr %s243, 8
      %s245 = scalar_lea.vmem %s0, %s244
      %p246 = pneg %p39
      %p247 = pneg %p36
      %p248 = pneg %p60
      %p249 = pneg %p57
      %p250 = pneg %p81
      %p251 = pneg %p78
      %p252 = pneg %p102
      %p253 = pneg %p99
      %p254 = pneg %p123
      %p255 = pneg %p120
      %p256 = pneg %p144
      %p257 = pneg %p141
      %p258 = pneg %p165
      %p259 = pneg %p162
      %p260 = pneg %p191
      %p261 = pneg %p188
      %p262 = scmp.lt.s32.totalorder %s18, 1
      %s263 = scalar_select %p262, %s18, 1
      %s264 = smul.addr %s263, 8
      %s265 = scalar_lea.vmem %s7, %s264
      %p266 = scmp.lt.s32.totalorder %s18, 1
      %s267 = scalar_select %p266, %s18, 1
      %s268 = smul.addr %s267, 8
      %s269 = scalar_lea.vmem %s0, %s268
      %p270 = scmp.lt.s32.totalorder %s18, 1
      %s271 = scalar_select %p270, %s18, 1
      %s272 = smul.addr %s271, 8
      %s273 = scalar_lea.vmem %s7, %s272
      %v274 = vld [vmem:[%s269] sm:$0xff]
      %v275 = vld [vmem:[%s1] sm:$0x1]
      %v276 = vld [vmem:[%s2] sm:$0x1]
      %vm277 = vcmask 261120
      %v278 = vsel %vm277, %v274, 0.0
      %279 = vadd.xlane.f32.xlu0 %v278
      %v280 = vpop.xlane.xlu0 %279
      %v281 = vrcp.pop 32.0
      %v282 = vmul.f32 %v280, %v281
      %v283 = vsub.f32 %v274, %v282
      %v284 = vmul.f32 %v283, %v283
      %v285 = vsel %vm277, %v284, 0.0
      %286 = vadd.xlane.f32.xlu0 %v285
      %v287 = vpop.xlane.xlu0 %286
      %v288 = vmul.f32 %v287, 0.032258064
      %v289 = vrsqrt.pop %v288
      %v290 = vmul.f32 %v288, %v289
      %vm291 = vcmp.eq.f32.partialorder %v288, inf
      %v292 = vsel %vm291, %v288, %v290
      %vm293 = vcmp.eq.f32.partialorder %v288, 0.0
      %v294 = vand.u32 %v288, 2147483648
      %v295 = vsel %vm293, %v294, %v292
      %v297 = vlaneseq
      %v298 = vshrl.u32 %v297, 7
      %v299 = vsub.s32 0, %v298
      %v300 = vrot.slane %v275, %v299
      %v302 = vmul.f32 %v300, %v283
      %v303 = vadd.f32 %v295, 1e-06
      %v304 = vrcp.pop %v303
      %v305 = vmul.f32 %v302, %v304
      %v307 = vlaneseq
      %v308 = vshrl.u32 %v307, 7
      %v309 = vsub.s32 0, %v308
      %v310 = vrot.slane %v276, %v309
      %v312 = vadd.f32 %v305, %v310
      %v313 = vld [vmem:[%s3] sm:$0xff]
      %v314 = vld [vmem:[%s3 + $0x8] sm:$0xff]
      %v315 = vld [vmem:[%s3 + $0x10] sm:$0xff]
      %v316 = vld [vmem:[%s3 + $0x18] sm:$0xff]
      %v317 = vld [vmem:[%s4] sm:$0x1]
      %v319 = vlaneseq
      %v320 = vshrl.u32 %v319, 7
      %v321 = vsub.s32 0, %v320
      %v322 = vrot.slane %v317, %v321
      %v325 = vsel %vm277, %v312, 0
      %327 = vmatprep.subr.mxu0 0.0
      %328 = vmatpush1.msra.mxu0 %v313
      %329 = vmatprep.subr.mxu0 0.0
      %330 = vmatpush1.msra.mxu0 %v314
      %331 = vmatprep.subr.mxu0 0.0
      %332 = vmatpush1.msra.mxu0 %v315
      %333 = vmatprep.subr.mxu0 0.0
      %334 = vmatpush1.msra.mxu0 %v316
      %335 = vmatprep.subr.mxu0 0.0
      %336 = vmatpush1.msra.mxu0 0.0
      %337 = vmatprep.subr.mxu0 0.0
      %338 = vmatpush1.msra.mxu0 0.0
      %339 = vmatprep.subr.mxu0 0.0
      %340 = vmatpush1.msra.mxu0 0.0
      %341 = vmatprep.subr.mxu0 0.0
      %342 = vmatpush1.msra.mxu0 0.0
      %343 = vmatprep.subr.mxu0 0.0
      %344 = vmatpush1.msra.mxu0 0.0
      %345 = vmatprep.subr.mxu0 0.0
      %346 = vmatpush1.msra.mxu0 0.0
      %347 = vmatprep.subr.mxu0 0.0
      %348 = vmatpush1.msra.mxu0 0.0
      %349 = vmatprep.subr.mxu0 0.0
      %350 = vmatpush1.msra.mxu0 0.0
      %351 = vmatprep.subr.mxu0 0.0
      %352 = vmatpush1.msra.mxu0 0.0
      %353 = vmatprep.subr.mxu0 0.0
      %354 = vmatpush1.msra.mxu0 0.0
      %355 = vmatprep.subr.mxu0 0.0
      %356 = vmatpush1.msra.mxu0 0.0
      %357 = vmatprep.subr.mxu0 0.0
      %358 = vmatpush1.msra.mxu0 0.0
      %359 = vmatprep.subr.mxu0 0.0
      %360 = vmatpush1.msra.mxu0 0.0
      %361 = vmatprep.subr.mxu0 0.0
      %362 = vmatpush1.msra.mxu0 0.0
      %363 = vmatprep.subr.mxu0 0.0
      %364 = vmatpush1.msra.mxu0 0.0
      %365 = vmatprep.subr.mxu0 0.0
      %366 = vmatpush1.msra.mxu0 0.0
      %367 = vmatprep.subr.mxu0 0.0
      %368 = vmatpush1.msra.mxu0 0.0
      %369 = vmatprep.subr.mxu0 0.0
      %370 = vmatpush1.msra.mxu0 0.0
      %371 = vmatprep.subr.mxu0 0.0
      %372 = vmatpush1.msra.mxu0 0.0
      %373 = vmatprep.subr.mxu0 0.0
      %374 = vmatpush1.msra.mxu0 0.0
      %375 = vmatprep.subr.mxu0 0.0
      %376 = vmatpush1.msra.mxu0 0.0
      %377 = vmatprep.subr.mxu0 0.0
      %378 = vmatpush1.msra.mxu0 0.0
      %379 = vmatprep.subr.mxu0 0.0
      %380 = vmatpush1.msra.mxu0 0.0
      %381 = vmatprep.subr.mxu0 0.0
      %382 = vmatpush1.msra.mxu0 0.0
      %383 = vmatprep.subr.mxu0 0.0
      %384 = vmatpush1.msra.mxu0 0.0
      %385 = vmatprep.subr.mxu0 0.0
      %386 = vmatpush1.msra.mxu0 0.0
      %387 = vmatprep.subr.mxu0 0.0
      %388 = vmatpush1.msra.mxu0 0.0
      %389 = vmatprep.subr.mxu0 0.0
      %390 = vmatpush1.msra.mxu0 0.0
      %391 = vmatprep.mubr.f32.mxu0 0.0
      %392 = vmatmul.mubr.f32.gmra.mrb[0].mxu0 %v325
      %v393 = vpop.f32.mrb[0].mxu0
      %v394 = vadd.f32 %v322, %v393
      %v395 = vpop.f32.mrb[0].mxu0
      %396 = vdwg.mxu0
      %v397 = vmax.f32 %v394, 0.0
      %v398 = vld [vmem:[%s5] sm:$0xff]
      %v399 = vld [vmem:[%s5 + $0x8] sm:$0xff]
      %v400 = vld [vmem:[%s5 + $0x10] sm:$0xff]
      %v401 = vld [vmem:[%s5 + $0x18] sm:$0xff]
      %v402 = vld [vmem:[%s5 + $0x20] sm:$0xff]
      %v403 = vld [vmem:[%s5 + $0x28] sm:$0xff]
      %v404 = vld [vmem:[%s5 + $0x30] sm:$0xff]
      %v405 = vld [vmem:[%s5 + $0x38] sm:$0xff]
      %v406 = vld [vmem:[%s6] sm:$0x1]
      %v408 = vlaneseq
      %v409 = vshrl.u32 %v408, 7
      %v410 = vsub.s32 0, %v409
      %v411 = vrot.slane %v406, %v410
      %vm413 = vcmask 523264
      %v415 = vsel %vm413, %v397, 0
      %417 = vmatprep.subr.mxu0 0.0
      %418 = vmatpush1.msra.mxu0 %v398
      %419 = vmatprep.subr.mxu0 0.0
      %420 = vmatpush1.msra.mxu0 %v399
      %421 = vmatprep.subr.mxu0 0.0
      %422 = vmatpush1.msra.mxu0 %v400
      %423 = vmatprep.subr.mxu0 0.0
      %424 = vmatpush1.msra.mxu0 %v401
      %425 = vmatprep.subr.mxu0 0.0
      %426 = vmatpush1.msra.mxu0 %v402
      %427 = vmatprep.subr.mxu0 0.0
      %428 = vmatpush1.msra.mxu0 %v403
      %429 = vmatprep.subr.mxu0 0.0
      %430 = vmatpush1.msra.mxu0 %v404
      %431 = vmatprep.subr.mxu0 0.0
      %432 = vmatpush1.msra.mxu0 %v405
      %433 = vmatprep.subr.mxu0 0.0
      %434 = vmatpush1.msra.mxu0 0.0
      %435 = vmatprep.subr.mxu0 0.0
      %436 = vmatpush1.msra.mxu0 0.0
      %437 = vmatprep.subr.mxu0 0.0
      %438 = vmatpush1.msra.mxu0 0.0
      %439 = vmatprep.subr.mxu0 0.0
      %440 = vmatpush1.msra.mxu0 0.0
      %441 = vmatprep.subr.mxu0 0.0
      %442 = vmatpush1.msra.mxu0 0.0
      %443 = vmatprep.subr.mxu0 0.0
      %444 = vmatpush1.msra.mxu0 0.0
      %445 = vmatprep.subr.mxu0 0.0
      %446 = vmatpush1.msra.mxu0 0.0
      %447 = vmatprep.subr.mxu0 0.0
      %448 = vmatpush1.msra.mxu0 0.0
      %449 = vmatprep.subr.mxu0 0.0
      %450 = vmatpush1.msra.mxu0 0.0
      %451 = vmatprep.subr.mxu0 0.0
      %452 = vmatpush1.msra.mxu0 0.0
      %453 = vmatprep.subr.mxu0 0.0
      %454 = vmatpush1.msra.mxu0 0.0
      %455 = vmatprep.subr.mxu0 0.0
      %456 = vmatpush1.msra.mxu0 0.0
      %457 = vmatprep.subr.mxu0 0.0
      %458 = vmatpush1.msra.mxu0 0.0
      %459 = vmatprep.subr.mxu0 0.0
      %460 = vmatpush1.msra.mxu0 0.0
      %461 = vmatprep.subr.mxu0 0.0
      %462 = vmatpush1.msra.mxu0 0.0
      %463 = vmatprep.subr.mxu0 0.0
      %464 = vmatpush1.msra.mxu0 0.0
      %465 = vmatprep.subr.mxu0 0.0
      %466 = vmatpush1.msra.mxu0 0.0
      %467 = vmatprep.subr.mxu0 0.0
      %468 = vmatpush1.msra.mxu0 0.0
      %469 = vmatprep.subr.mxu0 0.0
      %470 = vmatpush1.msra.mxu0 0.0
      %471 = vmatprep.subr.mxu0 0.0
      %472 = vmatpush1.msra.mxu0 0.0
      %473 = vmatprep.subr.mxu0 0.0
      %474 = vmatpush1.msra.mxu0 0.0
      %475 = vmatprep.subr.mxu0 0.0
      %476 = vmatpush1.msra.mxu0 0.0
      %477 = vmatprep.subr.mxu0 0.0
      %478 = vmatpush1.msra.mxu0 0.0
      %479 = vmatprep.subr.mxu0 0.0
      %480 = vmatpush1.msra.mxu0 0.0
      %481 = vmatprep.mubr.f32.mxu0 0.0
      %482 = vmatmul.mubr.f32.gmra.mrb[0].mxu0 %v415
      %v483 = vpop.f32.mrb[0].mxu0
      %v484 = vadd.f32 %v411, %v483
      %v485 = vpop.f32.mrb[0].mxu0
      %486 = vdwg.mxu0
      %v487 = vadd.f32 %v274, %v484
      %488 = vst.msk [vmem:[%s273] sm:$0xff] %vm277, %v487
      %p489 = scmp.lt.s32.totalorder %s18, 1
      %s490 = scalar_select %p489, %s18, 1
      %s491 = smul.addr %s490, 8
      %s492 = scalar_lea.vmem %s7, %s491
      // Predicated region
      $region49: #{decoder_forward.23} parent=47 // pred_check
        %p493 = pneg %p188
      $region50: #{decoder_forward.23} parent=47 // pred_check_branch
        %495 = sbr.rel (%p493) target = $region52
      $region51: #{decoder_forward.23} parent=47 // pred_region
        _
      $region52: #{decoder_forward.23} parent=47 // pred_fallthru
        _
    $region48: #{decoder_forward.23} parent=5 // pred_fallthru
      _
    %p496 = scmp.le.s32.totalorder 2, %s13
    // Predicated region
    $region53: #{decoder_forward.23} parent=5 // pred_check
      %p497 = pneg %p496
    $region54: #{decoder_forward.23} parent=5 // pred_check_branch
      %499 = sbr.rel (%p497) target = $region56
    $region55: #{decoder_forward.23} parent=5 // pred_region
      %s500 = ssub.s32 %s13, 2
      // Predicated region
      $region57: #{decoder_forward.23} parent=55 // pred_check
        %p501 = pneg %p194
      $region58: #{decoder_forward.23} parent=55 // pred_check_branch
        %503 = sbr.rel (%p501) target = $region60
      $region59: #{decoder_forward.23} parent=55 // pred_region
        %p504 = scmp.lt.s32.totalorder %s19, 1
        %s505 = scalar_select %p504, %s19, 1
        %s506 = smul.addr %s505, 8
        %s507 = scalar_lea.vmem %s7, %s506
      $region60: #{decoder_forward.23} parent=55 // pred_fallthru
        _
    $region56: #{decoder_forward.23} parent=5 // pred_fallthru
      _
  $region6: #{decoder_forward.23} parent=0 // loop_footer
    %s17 = sadd.s32 1, %s13
  $region7: #{decoder_forward.23} parent=0 // loop_footer_branch
    %12 = sbr.rel target = $region3
  $region8: #{decoder_forward.23} parent=0 // loop_exit
    _

// kernel: decoder_forward.31
$region0: #{decoder_forward.31}
  #allocation0 [shape = 'u32[]', space=smem, size = 0x4, offset = 0x4, fixed_abs, tag = 'smem constant byte address 0x4 - core index']
  #allocation1 [shape = 'u32[144,128]{1,0:T(1,128)}', space=vmem, size = 0x12000, scoped, tag = 'internal scratch']
  %s0 = inlined_call_operand.vmem [shape: f32[16,32], index: 0, kind: input, shape index: {}]
  %s1 = inlined_call_operand.vmem [shape: f32[1,32], index: 1, kind: input, shape index: {}]
  %s2 = inlined_call_operand.vmem [shape: f32[1,32], index: 2, kind: input, shape index: {}]
  %s3 = inlined_call_operand.hbm [shape: f32[16,32], index: 3, kind: output, shape index: {}]
  %s4 = sld [smem:[#allocation0]]
  $region45: #{decoder_forward.31} parent=0
    _
  %s6 = ssub.s32 1, %s4
  %s7 = scalar_select 0, %s6, %s4
  $region1: #{decoder_forward.31} parent=0
    #allocation2 [shape = 'u8[8192]{0}', space=vmem, size = 0x2000, scoped, tag = 'output window, operand 0']
    #allocation3 [shape = 's32[2]{0}', space=sflag, size = 0x8, scoped, tag = 'scoped memory for decoder_forward.31']
    %8 = vsyncpa [#allocation3], 0
    %s9 = scalar_lea.sflag [#allocation3], 1
    %10 = vsyncpa %s9, 0
    loop: start=0, step=1, limit=4
    $region2: #{decoder_forward.31} parent=1 // loop_pre_header
      _
    $region3: #{decoder_forward.31} parent=1 // loop_header
      %s12 = sphi 0, %s16
      %p13 = scmp.ge.s32.totalorder %s12, 4
      %s22 = sphi 0, %s24
      %s25 = sphi 0, %s22
      %s26 = sphi 0, %s25
      %s42 = sphi 0, %s26
      %s46 = sphi 0, %s46
      %s48 = sphi 0, %s46
      %s49 = sphi 0, %s48
      %s63 = sphi 0, %s49
      %s67 = sphi 0, %s67
      %s69 = sphi 0, %s67
      %s70 = sphi 0, %s69
      %s84 = sphi 0, %s70
      %s90 = sphi 0, %s92
      %s93 = sphi 0, %s90
      %s94 = sphi 0, %s93
      %s110 = sphi 0, %s94
    $region4: #{decoder_forward.31} parent=1 // loop_header_branch
      %15 = sbr.rel (%p13) target = $region8
    $region5: #{decoder_forward.31} parent=1 // loop_body
      %s17 = ssub.s32 %s12, 1
      %s18 = ssub.s32 %s12, 2
      %s19 = sadd.s32 %s12, 1
      %s20 = ssub.s32 %s12, %s19
      %p21 = scmp.eq.s32.totalorder %s20, 0
      %s23 = sadd.s32 %s22, 1
      %s24 = scalar_select %p21, %s22, %s23
      %p27 = pneg %p21
      %p28 = scmp.eq.s32.totalorder %s12, 1
      %p29 = por %p27, %p28
      %p30 = scmp.ne.s32.totalorder %s22, %s25
      %p31 = scmp.eq.s32.totalorder %s12, 0
      %p32 = por %p30, %p31
      %p33 = scmp.ne.s32.totalorder %s22, %s25
      %p34 = scmp.eq.s32.totalorder %s17, 1
      %p35 = por %p33, %p34
      %p36 = scmp.ne.s32.totalorder %s25, %s26
      %p37 = scmp.eq.s32.totalorder %s17, 0
      %p38 = por %p36, %p37
      %p39 = scmp.ne.s32.totalorder %s25, %s26
      %p40 = scmp.eq.s32.totalorder %s18, 1
      %p41 = por %p39, %p40
      %p43 = scmp.ne.s32.totalorder %s26, %s42
      %p44 = scmp.eq.s32.totalorder %s18, 0
      %p45 = por %p43, %p44
      %s47 = sadd.s32 %s46, 1
      %p50 = scmp.eq.s32.totalorder %s12, 1
      %p51 = scmp.ne.s32.totalorder %s46, %s48
      %p52 = scmp.eq.s32.totalorder %s12, 0
      %p53 = por %p51, %p52
      %p54 = scmp.ne.s32.totalorder %s46, %s48
      %p55 = scmp.eq.s32.totalorder %s17, 1
      %p56 = por %p54, %p55
      %p57 = scmp.ne.s32.totalorder %s48, %s49
      %p58 = scmp.eq.s32.totalorder %s17, 0
      %p59 = por %p57, %p58
      %p60 = scmp.ne.s32.totalorder %s48, %s49
      %p61 = scmp.eq.s32.totalorder %s18, 1
      %p62 = por %p60, %p61
      %p64 = scmp.ne.s32.totalorder %s49, %s63
      %p65 = scmp.eq.s32.totalorder %s18, 0
      %p66 = por %p64, %p65
      %s68 = sadd.s32 %s67, 1
      %p71 = scmp.eq.s32.totalorder %s12, 1
      %p72 = scmp.ne.s32.totalorder %s67, %s69
      %p73 = scmp.eq.s32.totalorder %s12, 0
      %p74 = por %p72, %p73
      %p75 = scmp.ne.s32.totalorder %s67, %s69
      %p76 = scmp.eq.s32.totalorder %s17, 1
      %p77 = por %p75, %p76
      %p78 = scmp.ne.s32.totalorder %s69, %s70
      %p79 = scmp.eq.s32.totalorder %s17, 0
      %p80 = por %p78, %p79
      %p81 = scmp.ne.s32.totalorder %s69, %s70
      %p82 = scmp.eq.s32.totalorder %s18, 1
      %p83 = por %p81, %p82
      %p85 = scmp.ne.s32.totalorder %s70, %s84
      %p86 = scmp.eq.s32.totalorder %s18, 0
      %p87 = por %p85, %p86
      %s88 = ssub.s32 %s12, %s19
      %p89 = scmp.eq.s32.totalorder %s88, 0
      %s91 = sadd.s32 %s90, 1
      %s92 = scalar_select %p89, %s90, %s91
      %p95 = pneg %p89
      %p96 = scmp.eq.s32.totalorder %s12, 1
      %p97 = por %p95, %p96
      %p98 = scmp.ne.s32.totalorder %s90, %s93
      %p99 = scmp.eq.s32.totalorder %s12, 0
      %p100 = por %p98, %p99
      %p101 = scmp.ne.s32.totalorder %s90, %s93
      %p102 = scmp.eq.s32.totalorder %s17, 1
      %p103 = por %p101, %p102
      %p104 = scmp.ne.s32.totalorder %s93, %s94
      %p105 = scmp.eq.s32.totalorder %s17, 0
      %p106 = por %p104, %p105
      %p107 = scmp.ne.s32.totalorder %s93, %s94
      %p108 = scmp.eq.s32.totalorder %s18, 1
      %p109 = por %p107, %p108
      %p111 = scmp.ne.s32.totalorder %s94, %s110
      %p112 = scmp.eq.s32.totalorder %s18, 0
      %p113 = por %p111, %p112
      %p114 = scmp.le.s32.totalorder 1, %s12
      %p115 = scmp.lt.s32.totalorder %s12, 3
      %p116 = pnand %p114, %p115
      %p117 = pneg %p116
      // Predicated region
      $region9: #{decoder_forward.31} parent=5 // pred_check
        _
      $region10: #{decoder_forward.31} parent=5 // pred_check_branch
        %119 = sbr.rel (%p116) target = $region12
      $region11: #{decoder_forward.31} parent=5 // pred_region
        %s120 = ssub.s32 %s12, 1
        // Predicated region
        $region13: #{decoder_forward.31} parent=11 // pred_check
          %p121 = pneg %p59
        $region14: #{decoder_forward.31} parent=11 // pred_check_branch
          %123 = sbr.rel (%p121) target = $region16
        $region15: #{decoder_forward.31} parent=11 // pred_region
          _
        $region16: #{decoder_forward.31} parent=11 // pred_fallthru
          _
        // Predicated region
        $region17: #{decoder_forward.31} parent=11 // pred_check
          %p124 = pneg %p80
        $region18: #{decoder_forward.31} parent=11 // pred_check_branch
          %126 = sbr.rel (%p124) target = $region20
        $region19: #{decoder_forward.31} parent=11 // pred_region
          _
        $region20: #{decoder_forward.31} parent=11 // pred_fallthru
          _
      $region12: #{decoder_forward.31} parent=5 // pred_fallthru
        _
      %p127 = scmp.lt.s32.totalorder %s12, 2
      // Predicated region
      $region21: #{decoder_forward.31} parent=5 // pred_check
        %p128 = pneg %p127
      $region22: #{decoder_forward.31} parent=5 // pred_check_branch
        %130 = sbr.rel (%p128) target = $region24
      $region23: #{decoder_forward.31} parent=5 // pred_region
        // Predicated region
        $region25: #{decoder_forward.31} parent=23 // pred_check
          %p131 = pneg %p32
        $region26: #{decoder_forward.31} parent=23 // pred_check_branch
          %133 = sbr.rel (%p131) target = $region28
        $region27: #{decoder_forward.31} parent=23 // pred_region
          %p134 = scmp.lt.s32.totalorder %s12, 1
          %s135 = scalar_select %p134, %s12, 1
          %s136 = smul.addr %s135, 8
          %s137 = scalar_lea.vmem %s0, %s136
        $region28: #{decoder_forward.31} parent=23 // pred_fallthru
          _
      $region24: #{decoder_forward.31} parent=5 // pred_fallthru
        _
      %p138 = scmp.le.s32.totalorder 1, %s12
      %p139 = scmp.lt.s32.totalorder %s12, 3
      %p140 = pnand %p138, %p139
      %p141 = pneg %p140
      // Predicated region
      $region29: #{decoder_forward.31} parent=5 // pred_check
        _
      $region30: #{decoder_forward.31} parent=5 // pred_check_branch
        %143 = sbr.rel (%p140) target = $region32
      $region31: #{decoder_forward.31} parent=5 // pred_region
        %s144 = ssub.s32 %s12, 1
        %p145 = scmp.lt.s32.totalorder %s17, 1
        %s146 = scalar_select %p145, %s17, 1
        %s147 = smul.addr %s146, 8
        %s148 = scalar_lea.vmem %s0, %s147
        %p149 = pneg %p38
        %p150 = pneg %p35
        %p151 = pneg %p59
        %p152 = pneg %p56
        %p153 = pneg %p80
        %p154 = pneg %p77
        %p155 = pneg %p106
        %p156 = pneg %p103
        %s157 = sand.u32 %s93, 1
        %s158 = scalar_lea.sflag [#allocation3], %s157
        %s159 = sand.u32 %s93, 1
        %s160 = smul.addr %s159, 8
        %s161 = scalar_lea.vmem [#allocation2], %s160
        %p162 = scmp.lt.s32.totalorder %s17, 1
        %s163 = scalar_select %p162, %s17, 1
        %s164 = smul.addr %s163, 8
        %s165 = scalar_lea.vmem %s0, %s164
        %v166 = vld [vmem:[%s165] sm:$0xff]
        %v167 = vld [vmem:[%s1] sm:$0x1]
        %v168 = vld [vmem:[%s2] sm:$0x1]
        %vm169 = vcmask 261120
        %v170 = vsel %vm169, %v166, 0.0
        %171 = vadd.xlane.f32.xlu0 %v170
        %v172 = vpop.xlane.xlu0 %171
        %v173 = vrcp.pop 32.0
        %v174 = vmul.f32 %v172, %v173
        %v175 = vsub.f32 %v166, %v174
        %v176 = vmul.f32 %v175, %v175
        %v177 = vsel %vm169, %v176, 0.0
        %178 = vadd.xlane.f32.xlu0 %v177
        %v179 = vpop.xlane.xlu0 %178
        %v180 = vmul.f32 %v179, 0.032258064
        %v181 = vrsqrt.pop %v180
        %v182 = vmul.f32 %v180, %v181
        %vm183 = vcmp.eq.f32.partialorder %v180, inf
        %v184 = vsel %vm183, %v180, %v182
        %vm185 = vcmp.eq.f32.partialorder %v180, 0.0
        %v186 = vand.u32 %v180, 2147483648
        %v187 = vsel %vm185, %v186, %v184
        %v189 = vlaneseq
        %v190 = vshrl.u32 %v189, 7
        %v191 = vsub.s32 0, %v190
        %v192 = vrot.slane %v167, %v191
        %v194 = vmul.f32 %v192, %v175
        %v195 = vadd.f32 %v187, 1e-06
        %v196 = vrcp.pop %v195
        %v197 = vmul.f32 %v194, %v196
        %v199 = vlaneseq
        %v200 = vshrl.u32 %v199, 7
        %v201 = vsub.s32 0, %v200
        %v202 = vrot.slane %v168, %v201
        %v204 = vadd.f32 %v197, %v202
        %205 = vst.msk [vmem:[%s161] sm:$0xff] %vm169, %v204
        %s206 = sand.u32 %s93, 1
        %s207 = scalar_lea.sflag [#allocation3], %s206
        %s208 = sand.u32 %s93, 1
        %s209 = smul.addr %s208, 8
        %s210 = scalar_lea.vmem [#allocation2], %s209
        // Predicated region
        $region33: #{decoder_forward.31} parent=31 // pred_check
          %p211 = pneg %p103
        $region34: #{decoder_forward.31} parent=31 // pred_check_branch
          %213 = sbr.rel (%p211) target = $region36
        $region35: #{decoder_forward.31} parent=31 // pred_region
          %s215 = ssub.s32 128, 128
          %216 = vsyncadd %s207, %s215
          %s217 = smul.addr %s17, 128
          %s218 = scalar_lea.hbm %s3, %s217
          %s220 = sshll.u32 %s210, 4
          %s221 = int_to_ptr.vmem [resolvable:$true] %s220
          %223 = dma.vmem_to_hbm [thread:$0]  %s221, 128, %s218, %s207
        $region36: #{decoder_forward.31} parent=31 // pred_fallthru
          _
      $region32: #{decoder_forward.31} parent=5 // pred_fallthru
        _
      %p224 = scmp.le.s32.totalorder 2, %s12
      // Predicated region
      $region37: #{decoder_forward.31} parent=5 // pred_check
        %p225 = pneg %p224
      $region38: #{decoder_forward.31} parent=5 // pred_check_branch
        %227 = sbr.rel (%p225) target = $region40
      $region39: #{decoder_forward.31} parent=5 // pred_region
        %s228 = ssub.s32 %s12, 2
        // Predicated region
        $region41: #{decoder_forward.31} parent=39 // pred_check
          %p229 = pneg %p109
        $region42: #{decoder_forward.31} parent=39 // pred_check_branch
          %231 = sbr.rel (%p229) target = $region44
        $region43: #{decoder_forward.31} parent=39 // pred_region
          %s232 = sand.u32 %s94, 1
          %s233 = scalar_lea.sflag [#allocation3], %s232
          %s234 = sand.u32 %s94, 1
          %s235 = smul.addr %s234, 8
          %s236 = scalar_lea.vmem [#allocation2], %s235
          %237 = dma.done %s233, 128
        $region44: #{decoder_forward.31} parent=39 // pred_fallthru
          _
      $region40: #{decoder_forward.31} parent=5 // pred_fallthru
        _
    $region6: #{decoder_forward.31} parent=1 // loop_footer
      %s16 = sadd.s32 1, %s12
    $region7: #{decoder_forward.31} parent=1 // loop_footer_branch
      %11 = sbr.rel target = $region3
    $region8: #{decoder_forward.31} parent=1 // loop_exit
      _
    %238 = vsyncpa [#allocation3], 1
    %s239 = scalar_lea.sflag [#allocation3], 1
    %240 = vsyncpa %s239, 1

</llo_original>
